<compile_context>
chip_gen: v5e
topology: v5e:2x2
jax: 0.10.0
libtpu: 0.0.40
codegen_flags: <defaults>
</compile_context>

<pallas_src>
import math

import jax
import jax.numpy as jnp
from jax import lax
from jax.experimental import pallas as pl
from jax.experimental.pallas import tpu as pltpu


_SQRT_HALF = 1.0 / math.sqrt(2.0)


def _gelu_exact(x):
    # nn.GELU() default (approximate='none'): 0.5 * x * (1 + erf(x / sqrt(2)))
    return 0.5 * x * (1.0 + lax.erf(x * _SQRT_HALF))


def _round_up(v, m):
    return (v + m - 1) // m * m


def _vmem_capacity_bytes():
    # Generation-aware physical VMEM per core (v5e/v6e: 128 MiB, v7x: 64 MiB).
    try:
        return int(pltpu.get_tpu_info().vmem_capacity_bytes)
    except Exception:
        return 64 * 1024 * 1024  # conservative fallback, valid on all generations


def _vmem_request(estimate_bytes, capacity_bytes):
    # Ask for the estimate with 1.5x headroom for compiler-internal scratch, but never
    # less than the 32 MiB scoped default and never more than ~80% of physical VMEM
    # (leaves room on v7x, unlocks >64 MiB on v5e/v6e).
    cap = int(0.8 * capacity_bytes)
    want = max(32 * 1024 * 1024, int(1.5 * estimate_bytes))
    return min(want, cap)


# ---------------------------------------------------------------------------
# Pass 1: fused MLP (3 Linears + exact GELU) + L2 normalize, per batch tile.
# ---------------------------------------------------------------------------
def dino_mlp_kernel(x_ref, w1_ref, b1_ref, w2_ref, b2_ref, w3_ref, b3_ref, z_ref):
    # bf16 MXU operands, f32 accumulation; activations kept in f32.
    x = x_ref[...].astype(jnp.bfloat16)                       # (bm, in_dim)
    h = jnp.dot(x, w1_ref[...], preferred_element_type=jnp.float32)
    h = _gelu_exact(h + b1_ref[...])
    h = jnp.dot(h.astype(jnp.bfloat16), w2_ref[...],
                preferred_element_type=jnp.float32)
    h = _gelu_exact(h + b2_ref[...])
    z = jnp.dot(h.astype(jnp.bfloat16), w3_ref[...],
                preferred_element_type=jnp.float32) + b3_ref[...]
    # F.normalize(z, dim=-1, p=2): z / max(||z||, 1e-12) == z * rsqrt(max(||z||^2, 1e-24))
    # (rsqrt runs on the EUP slot instead of a VPU divide).
    ssq = jnp.sum(z * z, axis=-1, keepdims=True)
    inv = lax.rsqrt(jnp.maximum(ssq, 1e-24))
    z_ref[...] = (z * inv).astype(z_ref.dtype)                 # bf16 (bm, bottleneck)


# ---------------------------------------------------------------------------
# Pass 2: weight-normalized last layer.  grid = (out tiles j OUTER, batch tiles i
# INNER) -> the W_last block index depends only on j, so each (bottleneck, bn)
# W_last tile is DMA'd from HBM exactly once for the whole batch.
# ---------------------------------------------------------------------------
def dino_last_kernel(z_ref, wl_ref, o_ref):
    o_ref[...] = jnp.dot(z_ref[...], wl_ref[...],
                         preferred_element_type=jnp.float32).astype(o_ref.dtype)


# ---------------------------------------------------------------------------
# Parameter preprocessing (done once, outside the per-call path)
# ---------------------------------------------------------------------------
def prepare_params(params):
    """Transpose weights to (in, out), fold weight_norm into the last layer,
    cast matmul operands to bf16; biases stay f32 rows."""
    w1, b1, w2, b2, w3, b3, v_last, g_last = params
    # weight_norm(Linear, dim=0): w = g * v / ||v||  (norm over in_features per row)
    v_norm = jnp.sqrt(jnp.sum(v_last * v_last, axis=1, keepdims=True))
    w_last = g_last * v_last / v_norm                          # (out_dim, bottleneck)
    bf16 = jnp.bfloat16
    return (
        jnp.transpose(w1).astype(bf16), b1[None, :].astype(jnp.float32),
        jnp.transpose(w2).astype(bf16), b2[None, :].astype(jnp.float32),
        jnp.transpose(w3).astype(bf16), b3[None, :].astype(jnp.float32),
        jnp.transpose(w_last).astype(bf16),                    # (bottleneck, out_dim)
    )


# ---------------------------------------------------------------------------
# Wrapper
# ---------------------------------------------------------------------------
def dino_head_forward(x, prepared, *, block_m=256, block_n=2048,
                      out_dtype=jnp.float32):
    """x: (B, in_dim) float32. Returns (B, out_dim) in out_dtype (default f32;
    pass jnp.bfloat16 to halve the output writeback if the consumer tolerates it)."""
    w1_t, b1, w2_t, b2, w3_t, b3, wl_t = prepared
    B, in_dim = x.shape
    hidden = w1_t.shape[1]
    bottleneck = w3_t.shape[1]
    out_dim = wl_t.shape[1]
    out_itemsize = jnp.dtype(out_dtype).itemsize

    cap = _vmem_capacity_bytes()
    budget = int(0.8 * cap)

    # ---- batch tiling: 16-row granularity (bf16 sublane packing) ----
    bm = min(_round_up(block_m, 16), _round_up(B, 16))

    def _p1_footprint(bm_):
        # x tiles (f32, x2) + double-buffered bf16 weights + f32 bias rows (x2)
        # + z out tiles (bf16, x2) + f32 (bm, hidden) MLP temporaries.
        return (2 * bm_ * in_dim * 4
                + 2 * 2 * (w1_t.size + w2_t.size + w3_t.size)
                + 2 * 4 * (b1.size + b2.size + b3.size)
                + 2 * bm_ * bottleneck * 2
                + 3 * bm_ * hidden * 4)

    while _p1_footprint(bm) > budget and bm > 16:
        bm = max(16, bm // 2)

    Bp = _round_up(B, bm)
    num_i = Bp // bm
    x_in = x if Bp == B else jnp.pad(x, ((0, Bp - B), (0, 0)))

    p1_cost = pl.CostEstimate(
        flops=int(2 * Bp * (in_dim * hidden + hidden * hidden + hidden * bottleneck)),
        transcendentals=int(2 * Bp * hidden + Bp),
        bytes_accessed=int(Bp * in_dim * 4
                           + 2 * (w1_t.size + w2_t.size + w3_t.size)
                           + 4 * (b1.size + b2.size + b3.size)
                           + Bp * bottleneck * 2))

    const1 = lambda i: (0, 0)
    z = pl.pallas_call(
        dino_mlp_kernel,
        out_shape=jax.ShapeDtypeStruct((Bp, bottleneck), jnp.bfloat16),
        grid_spec=pltpu.PrefetchScalarGridSpec(
            num_scalar_prefetch=0,
            grid=(num_i,),
            in_specs=[
                pl.BlockSpec((bm, in_dim), lambda i: (i, 0)),
                pl.BlockSpec((in_dim, hidden), const1),
                pl.BlockSpec((1, hidden), const1),
                pl.BlockSpec((hidden, hidden), const1),
                pl.BlockSpec((1, hidden), const1),
                pl.BlockSpec((hidden, bottleneck), const1),
                pl.BlockSpec((1, bottleneck), const1),
            ],
            out_specs=pl.BlockSpec((bm, bottleneck), lambda i: (i, 0)),
        ),
        compiler_params=pltpu.CompilerParams(
            dimension_semantics=("parallel",),
            vmem_limit_bytes=_vmem_request(_p1_footprint(bm), cap)),
        cost_estimate=p1_cost,
    )(x_in, w1_t, b1, w2_t, b2, w3_t, b3)

    # ---- out_dim tiling for the weight-norm matmul (lane-dense, multiple of 128) ----
    if out_dim <= block_n:
        bn = out_dim
    else:
        bn = _round_up(min(block_n, out_dim), 128)

    def _p2_footprint(bn_):
        # z tiles (x2) + W_last tiles (x2) + output tiles (x2).
        return (2 * bm * bottleneck * 2
                + 2 * bottleneck * bn_ * 2
                + 2 * bm * bn_ * out_itemsize)

    while _p2_footprint(bn) > budget and bn > 128:
        bn = max(128, bn // 2)

    Np = _round_up(out_dim, bn)
    num_j = Np // bn
    wl = wl_t if Np == out_dim else jnp.pad(wl_t, ((0, 0), (0, Np - out_dim)))

    p2_cost = pl.CostEstimate(
        flops=int(2 * Bp * bottleneck * Np),
        transcendentals=0,
        bytes_accessed=int(bottleneck * Np * 2            # W_last streamed exactly once
                           + num_j * Bp * bottleneck * 2  # Z re-read once per out tile
                           + Bp * Np * out_itemsize))     # output writeback

    y = pl.pallas_call(
        dino_last_kernel,
        out_shape=jax.ShapeDtypeStruct((Bp, Np), out_dtype),
        grid_spec=pltpu.PrefetchScalarGridSpec(
            num_scalar_prefetch=0,
            grid=(num_j, num_i),     # j outer, i inner -> W_last tile reused across batch
            in_specs=[
                pl.BlockSpec((bm, bottleneck), lambda j, i: (i, 0)),
                pl.BlockSpec((bottleneck, bn), lambda j, i: (0, j)),
            ],
            out_specs=pl.BlockSpec((bm, bn), lambda j, i: (i, j)),
        ),
        compiler_params=pltpu.CompilerParams(
            dimension_semantics=("parallel", "parallel"),   # both axes megacore-safe
            vmem_limit_bytes=_vmem_request(_p2_footprint(bn), cap)),
        cost_estimate=p2_cost,
    )(z, wl)

    if Bp != B or Np != out_dim:
        y = y[:B, :out_dim]
    return y


# ---------------------------------------------------------------------------
# Init + references
# ---------------------------------------------------------------------------
def init_params(key, in_dim, out_dim, hidden_dim, bottleneck_dim):
    """Deterministic synthetic init mirroring the module's parameter shapes.
    Linear weights: trunc_normal(std=0.02); biases: 0; weight_norm g: 1."""
    ks = jax.random.split(key, 4)
    tn = lambda k, shape: 0.02 * jax.random.truncated_normal(
        k, -2.0, 2.0, shape, jnp.float32)
    w1 = tn(ks[0], (hidden_dim, in_dim))            # PyTorch Linear weight: (out, in)
    b1 = jnp.zeros((hidden_dim,), jnp.float32)
    w2 = tn(ks[1], (hidden_dim, hidden_dim))
    b2 = jnp.zeros((hidden_dim,), jnp.float32)
    w3 = tn(ks[2], (bottleneck_dim, hidden_dim))
    b3 = jnp.zeros((bottleneck_dim,), jnp.float32)
    v_last = tn(ks[3], (out_dim, bottleneck_dim))   # weight_norm "v"
    g_last = jnp.ones((out_dim, 1), jnp.float32)    # weight_norm "g" (filled with 1)
    return (w1, b1, w2, b2, w3, b3, v_last, g_last)


def reference_forward_bf16(x, prepared):
    """Pure-JAX reference applying the SAME bf16-operand / f32-accum casts as the kernels."""
    w1_t, b1, w2_t, b2, w3_t, b3, wl_t = prepared
    f32, bf16 = jnp.float32, jnp.bfloat16
    h = _gelu_exact(jnp.dot(x.astype(bf16), w1_t, preferred_element_type=f32) + b1)
    h = _gelu_exact(jnp.dot(h.astype(bf16), w2_t, preferred_element_type=f32) + b2)
    z = jnp.dot(h.astype(bf16), w3_t, preferred_element_type=f32) + b3
    ssq = jnp.sum(z * z, axis=-1, keepdims=True)
    z = (z * lax.rsqrt(jnp.maximum(ssq, 1e-24))).astype(bf16)
    return jnp.dot(z, wl_t, preferred_element_type=f32)


def reference_forward_f32(x, params):
    """Full-f32 (HIGHEST precision) reference matching the PyTorch module semantics."""
    w1, b1, w2, b2, w3, b3, v_last, g_last = params
    hp = lax.Precision.HIGHEST
    h = _gelu_exact(jnp.dot(x, w1.T, precision=hp) + b1)
    h = _gelu_exact(jnp.dot(h, w2.T, precision=hp) + b2)
    z = jnp.dot(h, w3.T, precision=hp) + b3
    z = z / jnp.maximum(jnp.linalg.norm(z, axis=-1, keepdims=True), 1e-12)
    w_last = g_last * v_last / jnp.linalg.norm(v_last, axis=1, keepdims=True)
    return jnp.dot(z, w_last.T, precision=hp)


if __name__ == "__main__":
    # Small shapes consistent with DINOHead(in_dim, out_dim, hidden_dim, bottleneck_dim).
    # block_m=128 / block_n=256 give >1 tile on both grid axes (exercises the
    # batch tiling, the out_dim tiling, and the once-only W_last streaming),
    # and divide B / out_dim exactly so no padding or output-slice copy occurs.
    B, IN_DIM, HIDDEN, BOTTLENECK, OUT_DIM = 256, 64, 256, 128, 512

    key = jax.random.PRNGKey(0)
    kx, kp = jax.random.split(key)
    x = jax.random.normal(kx, (B, IN_DIM), jnp.float32)
    params = init_params(kp, IN_DIM, OUT_DIM, HIDDEN, BOTTLENECK)
    prepared = prepare_params(params)

    out = dino_head_forward(x, prepared, block_m=128, block_n=256)
    out = jax.block_until_ready(out)
    assert out.shape == (B, OUT_DIM)

    # Tight check against the cast-matched reference (same bf16/f32 arithmetic).
    ref_bf16 = reference_forward_bf16(x, prepared)
    assert jnp.allclose(out, ref_bf16, atol=5e-3, rtol=5e-3), "mismatch vs bf16 reference"

    # Loose sanity check against the full-f32 module-semantics reference
    # (tolerance accounts for bf16 matmul operands in the kernels).
    ref_f32 = reference_forward_f32(x, params)
    assert jnp.allclose(out, ref_f32, atol=5e-2, rtol=5e-2), "mismatch vs f32 reference"

    print("KERNEL_OK")
</pallas_src>

<mosaic_0001>
module attributes {stable_mosaic.version = 11 : i64} {
  func.func @dino_mlp_kernel(%arg0: i32, %arg1: memref<128x64xf32, #tpu.memory_space<vmem>>, %arg2: memref<64x256xbf16, #tpu.memory_space<vmem>>, %arg3: memref<1x256xf32, #tpu.memory_space<vmem>>, %arg4: memref<256x256xbf16, #tpu.memory_space<vmem>>, %arg5: memref<1x256xf32, #tpu.memory_space<vmem>>, %arg6: memref<256x128xbf16, #tpu.memory_space<vmem>>, %arg7: memref<1x128xf32, #tpu.memory_space<vmem>>, %arg8: memref<128x128xbf16, #tpu.memory_space<vmem>>) attributes {dimension_semantics = [#tpu.dimension_semantics<parallel>], iteration_bounds = array<i64: 2>, scalar_prefetch = 0 : i64, scratch_operands = 0 : i64, tpu.core_type = #tpu.core_type<tc>, window_params = [{transform_indices = @transform_0, window_bounds = array<i64: 128, 64>}, {pipeline_mode = #tpu.pipeline_mode<synchronous>, transform_indices = @transform_1, window_bounds = array<i64: 64, 256>}, {pipeline_mode = #tpu.pipeline_mode<synchronous>, transform_indices = @transform_2, window_bounds = array<i64: 1, 256>}, {pipeline_mode = #tpu.pipeline_mode<synchronous>, transform_indices = @transform_3, window_bounds = array<i64: 256, 256>}, {pipeline_mode = #tpu.pipeline_mode<synchronous>, transform_indices = @transform_4, window_bounds = array<i64: 1, 256>}, {pipeline_mode = #tpu.pipeline_mode<synchronous>, transform_indices = @transform_5, window_bounds = array<i64: 256, 128>}, {pipeline_mode = #tpu.pipeline_mode<synchronous>, transform_indices = @transform_6, window_bounds = array<i64: 1, 128>}, {transform_indices = @transform_7, window_bounds = array<i64: 128, 128>}]} {
    %c0 = arith.constant 0 : index
    %c0_0 = arith.constant 0 : index
    %0 = vector.load %arg1[%c0, %c0_0] : memref<128x64xf32, #tpu.memory_space<vmem>>, vector<128x64xf32>
    %1 = arith.truncf %0 : vector<128x64xf32> to vector<128x64xbf16>
    %c0_1 = arith.constant 0 : index
    %c0_2 = arith.constant 0 : index
    %2 = vector.load %arg2[%c0_1, %c0_2] : memref<64x256xbf16, #tpu.memory_space<vmem>>, vector<64x256xbf16>
    %cst = arith.constant dense<0.000000e+00> : vector<128x256xf32>
    %3 = tpu.matmul %1, %2, %cst {dimension_numbers = #tpu.dot_dimension_numbers<[1], [0], [0], [1], [0, 0, 1, 1], [], []>} : vector<128x64xbf16>, vector<64x256xbf16>, vector<128x256xf32> -> vector<128x256xf32>
    %c0_3 = arith.constant 0 : index
    %c0_4 = arith.constant 0 : index
    %4 = vector.load %arg3[%c0_3, %c0_4] : memref<1x256xf32, #tpu.memory_space<vmem>>, vector<1x256xf32>
    %5 = vector.broadcast %4 : vector<1x256xf32> to vector<128x256xf32>
    %6 = arith.addf %3, %5 : vector<128x256xf32>
    %cst_5 = arith.constant 5.000000e-01 : f32
    %7 = vector.broadcast %cst_5 : f32 to vector<128x256xf32>
    %8 = arith.mulf %7, %6 : vector<128x256xf32>
    %cst_6 = arith.constant 0.707106769 : f32
    %9 = vector.broadcast %cst_6 : f32 to vector<128x256xf32>
    %10 = arith.mulf %6, %9 : vector<128x256xf32>
    %11 = math.erf %10 : vector<128x256xf32>
    %cst_7 = arith.constant 1.000000e+00 : f32
    %12 = vector.broadcast %cst_7 : f32 to vector<128x256xf32>
    %13 = arith.addf %12, %11 : vector<128x256xf32>
    %14 = arith.mulf %8, %13 : vector<128x256xf32>
    %15 = arith.truncf %14 : vector<128x256xf32> to vector<128x256xbf16>
    %c0_8 = arith.constant 0 : index
    %c0_9 = arith.constant 0 : index
    %16 = vector.load %arg4[%c0_8, %c0_9] : memref<256x256xbf16, #tpu.memory_space<vmem>>, vector<256x256xbf16>
    %cst_10 = arith.constant dense<0.000000e+00> : vector<128x256xf32>
    %17 = tpu.matmul %15, %16, %cst_10 {dimension_numbers = #tpu.dot_dimension_numbers<[1], [0], [0], [1], [0, 0, 1, 1], [], []>} : vector<128x256xbf16>, vector<256x256xbf16>, vector<128x256xf32> -> vector<128x256xf32>
    %c0_11 = arith.constant 0 : index
    %c0_12 = arith.constant 0 : index
    %18 = vector.load %arg5[%c0_11, %c0_12] : memref<1x256xf32, #tpu.memory_space<vmem>>, vector<1x256xf32>
    %19 = vector.broadcast %18 : vector<1x256xf32> to vector<128x256xf32>
    %20 = arith.addf %17, %19 : vector<128x256xf32>
    %cst_13 = arith.constant 5.000000e-01 : f32
    %21 = vector.broadcast %cst_13 : f32 to vector<128x256xf32>
    %22 = arith.mulf %21, %20 : vector<128x256xf32>
    %cst_14 = arith.constant 0.707106769 : f32
    %23 = vector.broadcast %cst_14 : f32 to vector<128x256xf32>
    %24 = arith.mulf %20, %23 : vector<128x256xf32>
    %25 = math.erf %24 : vector<128x256xf32>
    %cst_15 = arith.constant 1.000000e+00 : f32
    %26 = vector.broadcast %cst_15 : f32 to vector<128x256xf32>
    %27 = arith.addf %26, %25 : vector<128x256xf32>
    %28 = arith.mulf %22, %27 : vector<128x256xf32>
    %29 = arith.truncf %28 : vector<128x256xf32> to vector<128x256xbf16>
    %c0_16 = arith.constant 0 : index
    %c0_17 = arith.constant 0 : index
    %30 = vector.load %arg6[%c0_16, %c0_17] : memref<256x128xbf16, #tpu.memory_space<vmem>>, vector<256x128xbf16>
    %cst_18 = arith.constant dense<0.000000e+00> : vector<128x128xf32>
    %31 = tpu.matmul %29, %30, %cst_18 {dimension_numbers = #tpu.dot_dimension_numbers<[1], [0], [0], [1], [0, 0, 1, 1], [], []>} : vector<128x256xbf16>, vector<256x128xbf16>, vector<128x128xf32> -> vector<128x128xf32>
    %c0_19 = arith.constant 0 : index
    %c0_20 = arith.constant 0 : index
    %32 = vector.load %arg7[%c0_19, %c0_20] : memref<1x128xf32, #tpu.memory_space<vmem>>, vector<1x128xf32>
    %33 = vector.broadcast %32 : vector<1x128xf32> to vector<128x128xf32>
    %34 = arith.addf %31, %33 : vector<128x128xf32>
    %35 = arith.mulf %34, %34 : vector<128x128xf32>
    %cst_21 = arith.constant dense<0.000000e+00> : vector<128xf32>
    %36 = vector.multi_reduction <add>, %35, %cst_21 [1] : vector<128x128xf32> to vector<128xf32>
    %37 = vector.shape_cast %36 : vector<128xf32> to vector<128x1xf32>
    %cst_22 = arith.constant 1.000000e-24 : f32
    %38 = vector.broadcast %cst_22 : f32 to vector<128x1xf32>
    %39 = arith.maximumf %37, %38 : vector<128x1xf32>
    %40 = math.rsqrt %39 : vector<128x1xf32>
    %41 = vector.broadcast %40 : vector<128x1xf32> to vector<128x128xf32>
    %42 = arith.mulf %34, %41 : vector<128x128xf32>
    %43 = arith.truncf %42 : vector<128x128xf32> to vector<128x128xbf16>
    %c0_23 = arith.constant 0 : index
    %c0_24 = arith.constant 0 : index
    %44 = vector.load %arg8[%c0_23, %c0_24] : memref<128x128xbf16, #tpu.memory_space<vmem>>, vector<128x128xbf16>
    tpu.vector_store %arg8[%c0_23, %c0_24], %43 {strides = array<i32>} : memref<128x128xbf16, #tpu.memory_space<vmem>>, vector<128x128xbf16>,
    return
  }
  func.func @transform_0(%arg0: i32) -> (i32, i32) {
    %c0_i32 = arith.constant 0 : i32
    %c0_i32_0 = arith.constant 0 : i32
    return %arg0, %c0_i32 : i32, i32
  }
  func.func @transform_1(%arg0: i32) -> (i32, i32) {
    %c0_i32 = arith.constant 0 : i32
    %c0_i32_0 = arith.constant 0 : i32
    %c0_i32_1 = arith.constant 0 : i32
    return %c0_i32, %c0_i32_0 : i32, i32
  }
  func.func @transform_2(%arg0: i32) -> (i32, i32) {
    %c0_i32 = arith.constant 0 : i32
    %c0_i32_0 = arith.constant 0 : i32
    %c0_i32_1 = arith.constant 0 : i32
    return %c0_i32, %c0_i32_0 : i32, i32
  }
  func.func @transform_3(%arg0: i32) -> (i32, i32) {
    %c0_i32 = arith.constant 0 : i32
    %c0_i32_0 = arith.constant 0 : i32
    %c0_i32_1 = arith.constant 0 : i32
    return %c0_i32, %c0_i32_0 : i32, i32
  }
  func.func @transform_4(%arg0: i32) -> (i32, i32) {
    %c0_i32 = arith.constant 0 : i32
    %c0_i32_0 = arith.constant 0 : i32
    %c0_i32_1 = arith.constant 0 : i32
    return %c0_i32, %c0_i32_0 : i32, i32
  }
  func.func @transform_5(%arg0: i32) -> (i32, i32) {
    %c0_i32 = arith.constant 0 : i32
    %c0_i32_0 = arith.constant 0 : i32
    %c0_i32_1 = arith.constant 0 : i32
    return %c0_i32, %c0_i32_0 : i32, i32
  }
  func.func @transform_6(%arg0: i32) -> (i32, i32) {
    %c0_i32 = arith.constant 0 : i32
    %c0_i32_0 = arith.constant 0 : i32
    %c0_i32_1 = arith.constant 0 : i32
    return %c0_i32, %c0_i32_0 : i32, i32
  }
  func.func @transform_7(%arg0: i32) -> (i32, i32) {
    %c0_i32 = arith.constant 0 : i32
    %c0_i32_0 = arith.constant 0 : i32
    return %arg0, %c0_i32 : i32, i32
  }
}

</mosaic_0001>

<llo_original>
// kernel: tpu_custom_call.1
$region0: #{tpu_custom_call.1}
  #allocation0 [shape = 'u32[]', space=smem, size = 0x4, offset = 0x4, fixed_abs, tag = 'smem constant byte address 0x4 - core index']
  #allocation1 [shape = 'u32[72,128]{1,0:T(1,128)}', space=vmem, size = 0x9000, scoped, tag = 'internal scratch']
  %s0 = inlined_call_operand.vmem [shape: f32[256,64], index: 0, kind: input, shape index: {}]
  %s1 = inlined_call_operand.hbm [shape: bf16[64,256], index: 1, kind: input, shape index: {}]
  %s2 = inlined_call_operand.vmem [shape: f32[1,256], index: 2, kind: input, shape index: {}]
  %s3 = inlined_call_operand.vmem [shape: bf16[256,256], index: 3, kind: input, shape index: {}]
  %s4 = inlined_call_operand.hbm [shape: f32[1,256], index: 4, kind: input, shape index: {}]
  %s5 = inlined_call_operand.vmem [shape: bf16[256,128], index: 5, kind: input, shape index: {}]
  %s6 = inlined_call_operand.vmem [shape: f32[1,128], index: 6, kind: input, shape index: {}]
  %s7 = inlined_call_operand.hbm [shape: bf16[256,128], index: 7, kind: output, shape index: {}]
  %s8 = sld [smem:[#allocation0]]
  $region69: #{tpu_custom_call.1} parent=0
    _
  %s10 = ssub.s32 1, %s8
  %s11 = scalar_select 0, %s10, %s8
  $region1: #{tpu_custom_call.1} parent=0
    #allocation2 [shape = 'u8[32768]{0}', space=vmem, size = 0x8000, scoped, tag = 'input window, operand 1, single buffered']
    #allocation3 [shape = 's32[2]{0}', space=sflag, size = 0x8, scoped, tag = 'scoped memory for tpu_custom_call.1']
    #allocation4 [shape = 's32[2]{0}', space=sflag, size = 0x8, scoped, tag = 'scoped memory for tpu_custom_call.1']
    #allocation5 [shape = 'u8[1024]{0}', space=vmem, size = 0x400, scoped, tag = 'input window, operand 4, single buffered']
    #allocation6 [shape = 's32[1]{0}', space=sflag, size = 0x4, scoped, tag = 'scoped memory for tpu_custom_call.1']
    #allocation7 [shape = 'u8[65536]{0}', space=vmem, size = 0x10000, scoped, tag = 'output window, operand 0']
    %12 = vsyncpa [#allocation3], 0
    %13 = vsyncpa [#allocation6], 0
    %14 = vsyncpa [#allocation4], 0
    %s15 = scalar_lea.sflag [#allocation4], 1
    %16 = vsyncpa %s15, 0
    loop: start=0, step=1, limit=4
    $region2: #{tpu_custom_call.1} parent=1 // loop_pre_header
      _
    $region3: #{tpu_custom_call.1} parent=1 // loop_header
      %s18 = sphi 0, %s22
      %p19 = scmp.ge.s32.totalorder %s18, 4
      %s28 = sphi 0, %s30
      %s31 = sphi 0, %s28
      %s32 = sphi 0, %s31
      %s48 = sphi 0, %s32
      %s52 = sphi 0, %s52
      %s54 = sphi 0, %s52
      %s55 = sphi 0, %s54
      %s69 = sphi 0, %s55
      %s73 = sphi 0, %s73
      %s75 = sphi 0, %s73
      %s76 = sphi 0, %s75
      %s90 = sphi 0, %s76
      %s94 = sphi 0, %s94
      %s96 = sphi 0, %s94
      %s97 = sphi 0, %s96
      %s111 = sphi 0, %s97
      %s115 = sphi 0, %s115
      %s117 = sphi 0, %s115
      %s118 = sphi 0, %s117
      %s132 = sphi 0, %s118
      %s136 = sphi 0, %s136
      %s138 = sphi 0, %s136
      %s139 = sphi 0, %s138
      %s153 = sphi 0, %s139
      %s157 = sphi 0, %s157
      %s159 = sphi 0, %s157
      %s160 = sphi 0, %s159
      %s174 = sphi 0, %s160
      %s180 = sphi 0, %s182
      %s183 = sphi 0, %s180
      %s184 = sphi 0, %s183
      %s200 = sphi 0, %s184
    $region4: #{tpu_custom_call.1} parent=1 // loop_header_branch
      %21 = sbr.rel (%p19) target = $region8
    $region5: #{tpu_custom_call.1} parent=1 // loop_body
      %s23 = ssub.s32 %s18, 1
      %s24 = ssub.s32 %s18, 2
      %s25 = sadd.s32 %s18, 1
      %s26 = ssub.s32 %s18, %s25
      %p27 = scmp.eq.s32.totalorder %s26, 0
      %s29 = sadd.s32 %s28, 1
      %s30 = scalar_select %p27, %s28, %s29
      %p33 = pneg %p27
      %p34 = scmp.eq.s32.totalorder %s18, 1
      %p35 = por %p33, %p34
      %p36 = scmp.ne.s32.totalorder %s28, %s31
      %p37 = scmp.eq.s32.totalorder %s18, 0
      %p38 = por %p36, %p37
      %p39 = scmp.ne.s32.totalorder %s28, %s31
      %p40 = scmp.eq.s32.totalorder %s23, 1
      %p41 = por %p39, %p40
      %p42 = scmp.ne.s32.totalorder %s31, %s32
      %p43 = scmp.eq.s32.totalorder %s23, 0
      %p44 = por %p42, %p43
      %p45 = scmp.ne.s32.totalorder %s31, %s32
      %p46 = scmp.eq.s32.totalorder %s24, 1
      %p47 = por %p45, %p46
      %p49 = scmp.ne.s32.totalorder %s32, %s48
      %p50 = scmp.eq.s32.totalorder %s24, 0
      %p51 = por %p49, %p50
      %s53 = sadd.s32 %s52, 1
      %p56 = scmp.eq.s32.totalorder %s18, 1
      %p57 = scmp.ne.s32.totalorder %s52, %s54
      %p58 = scmp.eq.s32.totalorder %s18, 0
      %p59 = por %p57, %p58
      %p60 = scmp.ne.s32.totalorder %s52, %s54
      %p61 = scmp.eq.s32.totalorder %s23, 1
      %p62 = por %p60, %p61
      %p63 = scmp.ne.s32.totalorder %s54, %s55
      %p64 = scmp.eq.s32.totalorder %s23, 0
      %p65 = por %p63, %p64
      %p66 = scmp.ne.s32.totalorder %s54, %s55
      %p67 = scmp.eq.s32.totalorder %s24, 1
      %p68 = por %p66, %p67
      %p70 = scmp.ne.s32.totalorder %s55, %s69
      %p71 = scmp.eq.s32.totalorder %s24, 0
      %p72 = por %p70, %p71
      %s74 = sadd.s32 %s73, 1
      %p77 = scmp.eq.s32.totalorder %s18, 1
      %p78 = scmp.ne.s32.totalorder %s73, %s75
      %p79 = scmp.eq.s32.totalorder %s18, 0
      %p80 = por %p78, %p79
      %p81 = scmp.ne.s32.totalorder %s73, %s75
      %p82 = scmp.eq.s32.totalorder %s23, 1
      %p83 = por %p81, %p82
      %p84 = scmp.ne.s32.totalorder %s75, %s76
      %p85 = scmp.eq.s32.totalorder %s23, 0
      %p86 = por %p84, %p85
      %p87 = scmp.ne.s32.totalorder %s75, %s76
      %p88 = scmp.eq.s32.totalorder %s24, 1
      %p89 = por %p87, %p88
      %p91 = scmp.ne.s32.totalorder %s76, %s90
      %p92 = scmp.eq.s32.totalorder %s24, 0
      %p93 = por %p91, %p92
      %s95 = sadd.s32 %s94, 1
      %p98 = scmp.eq.s32.totalorder %s18, 1
      %p99 = scmp.ne.s32.totalorder %s94, %s96
      %p100 = scmp.eq.s32.totalorder %s18, 0
      %p101 = por %p99, %p100
      %p102 = scmp.ne.s32.totalorder %s94, %s96
      %p103 = scmp.eq.s32.totalorder %s23, 1
      %p104 = por %p102, %p103
      %p105 = scmp.ne.s32.totalorder %s96, %s97
      %p106 = scmp.eq.s32.totalorder %s23, 0
      %p107 = por %p105, %p106
      %p108 = scmp.ne.s32.totalorder %s96, %s97
      %p109 = scmp.eq.s32.totalorder %s24, 1
      %p110 = por %p108, %p109
      %p112 = scmp.ne.s32.totalorder %s97, %s111
      %p113 = scmp.eq.s32.totalorder %s24, 0
      %p114 = por %p112, %p113
      %s116 = sadd.s32 %s115, 1
      %p119 = scmp.eq.s32.totalorder %s18, 1
      %p120 = scmp.ne.s32.totalorder %s115, %s117
      %p121 = scmp.eq.s32.totalorder %s18, 0
      %p122 = por %p120, %p121
      %p123 = scmp.ne.s32.totalorder %s115, %s117
      %p124 = scmp.eq.s32.totalorder %s23, 1
      %p125 = por %p123, %p124
      %p126 = scmp.ne.s32.totalorder %s117, %s118
      %p127 = scmp.eq.s32.totalorder %s23, 0
      %p128 = por %p126, %p127
      %p129 = scmp.ne.s32.totalorder %s117, %s118
      %p130 = scmp.eq.s32.totalorder %s24, 1
      %p131 = por %p129, %p130
      %p133 = scmp.ne.s32.totalorder %s118, %s132
      %p134 = scmp.eq.s32.totalorder %s24, 0
      %p135 = por %p133, %p134
      %s137 = sadd.s32 %s136, 1
      %p140 = scmp.eq.s32.totalorder %s18, 1
      %p141 = scmp.ne.s32.totalorder %s136, %s138
      %p142 = scmp.eq.s32.totalorder %s18, 0
      %p143 = por %p141, %p142
      %p144 = scmp.ne.s32.totalorder %s136, %s138
      %p145 = scmp.eq.s32.totalorder %s23, 1
      %p146 = por %p144, %p145
      %p147 = scmp.ne.s32.totalorder %s138, %s139
      %p148 = scmp.eq.s32.totalorder %s23, 0
      %p149 = por %p147, %p148
      %p150 = scmp.ne.s32.totalorder %s138, %s139
      %p151 = scmp.eq.s32.totalorder %s24, 1
      %p152 = por %p150, %p151
      %p154 = scmp.ne.s32.totalorder %s139, %s153
      %p155 = scmp.eq.s32.totalorder %s24, 0
      %p156 = por %p154, %p155
      %s158 = sadd.s32 %s157, 1
      %p161 = scmp.eq.s32.totalorder %s18, 1
      %p162 = scmp.ne.s32.totalorder %s157, %s159
      %p163 = scmp.eq.s32.totalorder %s18, 0
      %p164 = por %p162, %p163
      %p165 = scmp.ne.s32.totalorder %s157, %s159
      %p166 = scmp.eq.s32.totalorder %s23, 1
      %p167 = por %p165, %p166
      %p168 = scmp.ne.s32.totalorder %s159, %s160
      %p169 = scmp.eq.s32.totalorder %s23, 0
      %p170 = por %p168, %p169
      %p171 = scmp.ne.s32.totalorder %s159, %s160
      %p172 = scmp.eq.s32.totalorder %s24, 1
      %p173 = por %p171, %p172
      %p175 = scmp.ne.s32.totalorder %s160, %s174
      %p176 = scmp.eq.s32.totalorder %s24, 0
      %p177 = por %p175, %p176
      %s178 = ssub.s32 %s18, %s25
      %p179 = scmp.eq.s32.totalorder %s178, 0
      %s181 = sadd.s32 %s180, 1
      %s182 = scalar_select %p179, %s180, %s181
      %p185 = pneg %p179
      %p186 = scmp.eq.s32.totalorder %s18, 1
      %p187 = por %p185, %p186
      %p188 = scmp.ne.s32.totalorder %s180, %s183
      %p189 = scmp.eq.s32.totalorder %s18, 0
      %p190 = por %p188, %p189
      %p191 = scmp.ne.s32.totalorder %s180, %s183
      %p192 = scmp.eq.s32.totalorder %s23, 1
      %p193 = por %p191, %p192
      %p194 = scmp.ne.s32.totalorder %s183, %s184
      %p195 = scmp.eq.s32.totalorder %s23, 0
      %p196 = por %p194, %p195
      %p197 = scmp.ne.s32.totalorder %s183, %s184
      %p198 = scmp.eq.s32.totalorder %s24, 1
      %p199 = por %p197, %p198
      %p201 = scmp.ne.s32.totalorder %s184, %s200
      %p202 = scmp.eq.s32.totalorder %s24, 0
      %p203 = por %p201, %p202
      %p204 = scmp.le.s32.totalorder 1, %s18
      %p205 = scmp.lt.s32.totalorder %s18, 3
      %p206 = pnand %p204, %p205
      %p207 = pneg %p206
      // Predicated region
      $region9: #{tpu_custom_call.1} parent=5 // pred_check
        _
      $region10: #{tpu_custom_call.1} parent=5 // pred_check_branch
        %209 = sbr.rel (%p206) target = $region12
      $region11: #{tpu_custom_call.1} parent=5 // pred_region
        %s210 = ssub.s32 %s18, 1
        // Predicated region
        $region13: #{tpu_custom_call.1} parent=11 // pred_check
          %p211 = pneg %p65
        $region14: #{tpu_custom_call.1} parent=11 // pred_check_branch
          %213 = sbr.rel (%p211) target = $region16
        $region15: #{tpu_custom_call.1} parent=11 // pred_region
          %215 = vsyncadd [#allocation3], 0
          %s216 = sshll.u32 %s1, 4
          %s217 = int_to_ptr.hbm [resolvable:$true] %s216
          %s218 = sshll.u32 [#allocation2], 4
          %s219 = int_to_ptr.vmem [resolvable:$true] %s218
          %224 = dma.hbm_to_vmem [thread:$0]  %s217, 1024, %s219, [#allocation3], 128, 128, 8
        $region16: #{tpu_custom_call.1} parent=11 // pred_fallthru
          _
        // Predicated region
        $region17: #{tpu_custom_call.1} parent=11 // pred_check
          %p225 = pneg %p86
        $region18: #{tpu_custom_call.1} parent=11 // pred_check_branch
          %227 = sbr.rel (%p225) target = $region20
        $region19: #{tpu_custom_call.1} parent=11 // pred_region
          _
        $region20: #{tpu_custom_call.1} parent=11 // pred_fallthru
          _
        // Predicated region
        $region21: #{tpu_custom_call.1} parent=11 // pred_check
          %p228 = pneg %p107
        $region22: #{tpu_custom_call.1} parent=11 // pred_check_branch
          %230 = sbr.rel (%p228) target = $region24
        $region23: #{tpu_custom_call.1} parent=11 // pred_region
          _
        $region24: #{tpu_custom_call.1} parent=11 // pred_fallthru
          _
        // Predicated region
        $region25: #{tpu_custom_call.1} parent=11 // pred_check
          %p231 = pneg %p128
        $region26: #{tpu_custom_call.1} parent=11 // pred_check_branch
          %233 = sbr.rel (%p231) target = $region28
        $region27: #{tpu_custom_call.1} parent=11 // pred_region
          %235 = vsyncadd [#allocation6], 0
          %s237 = sshll.u32 %s4, 4
          %s238 = int_to_ptr.hbm [resolvable:$true] %s237
          %s239 = sshll.u32 [#allocation5], 4
          %s240 = int_to_ptr.vmem [resolvable:$true] %s239
          %242 = dma.hbm_to_vmem [thread:$0]  %s238, 32, %s240, [#allocation6]
        $region28: #{tpu_custom_call.1} parent=11 // pred_fallthru
          _
        // Predicated region
        $region29: #{tpu_custom_call.1} parent=11 // pred_check
          %p243 = pneg %p149
        $region30: #{tpu_custom_call.1} parent=11 // pred_check_branch
          %245 = sbr.rel (%p243) target = $region32
        $region31: #{tpu_custom_call.1} parent=11 // pred_region
          _
        $region32: #{tpu_custom_call.1} parent=11 // pred_fallthru
          _
        // Predicated region
        $region33: #{tpu_custom_call.1} parent=11 // pred_check
          %p246 = pneg %p170
        $region34: #{tpu_custom_call.1} parent=11 // pred_check_branch
          %248 = sbr.rel (%p246) target = $region36
        $region35: #{tpu_custom_call.1} parent=11 // pred_region
          _
        $region36: #{tpu_custom_call.1} parent=11 // pred_fallthru
          _
      $region12: #{tpu_custom_call.1} parent=5 // pred_fallthru
        _
      %p249 = scmp.lt.s32.totalorder %s18, 2
      // Predicated region
      $region37: #{tpu_custom_call.1} parent=5 // pred_check
        %p250 = pneg %p249
      $region38: #{tpu_custom_call.1} parent=5 // pred_check_branch
        %252 = sbr.rel (%p250) target = $region40
      $region39: #{tpu_custom_call.1} parent=5 // pred_region
        // Predicated region
        $region41: #{tpu_custom_call.1} parent=39 // pred_check
          %p253 = pneg %p38
        $region42: #{tpu_custom_call.1} parent=39 // pred_check_branch
          %255 = sbr.rel (%p253) target = $region44
        $region43: #{tpu_custom_call.1} parent=39 // pred_region
          %s256 = smul.u32 16, %s18
          %p257 = scmp.lt.s32.totalorder %s256, 31
          %s258 = scalar_select %p257, %s256, 31
          %s259 = smul.addr %s258, 8
          %s260 = scalar_lea.vmem %s0, %s259
          %s261 = smul.u32 16, %s18
        $region44: #{tpu_custom_call.1} parent=39 // pred_fallthru
          _
      $region40: #{tpu_custom_call.1} parent=5 // pred_fallthru
        _
      %p262 = scmp.le.s32.totalorder 1, %s18
      %p263 = scmp.lt.s32.totalorder %s18, 3
      %p264 = pnand %p262, %p263
      %p265 = pneg %p264
      // Predicated region
      $region45: #{tpu_custom_call.1} parent=5 // pred_check
        _
      $region46: #{tpu_custom_call.1} parent=5 // pred_check_branch
        %267 = sbr.rel (%p264) target = $region48
      $region47: #{tpu_custom_call.1} parent=5 // pred_region
        %s268 = ssub.s32 %s18, 1
        // Predicated region
        $region49: #{tpu_custom_call.1} parent=47 // pred_check
          %p269 = pneg %p65
        $region50: #{tpu_custom_call.1} parent=47 // pred_check_branch
          %271 = sbr.rel (%p269) target = $region52
        $region51: #{tpu_custom_call.1} parent=47 // pred_region
          %273 = dma.done [#allocation3], 1024
        $region52: #{tpu_custom_call.1} parent=47 // pred_fallthru
          _
        // Predicated region
        $region53: #{tpu_custom_call.1} parent=47 // pred_check
          %p274 = pneg %p128
        $region54: #{tpu_custom_call.1} parent=47 // pred_check_branch
          %276 = sbr.rel (%p274) target = $region56
        $region55: #{tpu_custom_call.1} parent=47 // pred_region
          %278 = dma.done [#allocation6], 32
        $region56: #{tpu_custom_call.1} parent=47 // pred_fallthru
          _
        %s279 = smul.u32 16, %s23
        %p280 = scmp.lt.s32.totalorder %s279, 31
        %s281 = scalar_select %p280, %s279, 31
        %s282 = smul.addr %s281, 8
        %s283 = scalar_lea.vmem %s0, %s282
        %p284 = pneg %p44
        %p285 = pneg %p41
        %p286 = pneg %p65
        %p287 = pneg %p62
        %p288 = pneg %p86
        %p289 = pneg %p83
        %p290 = pneg %p107
        %p291 = pneg %p104
        %p292 = pneg %p128
        %p293 = pneg %p125
        %p294 = pneg %p149
        %p295 = pneg %p146
        %p296 = pneg %p170
        %p297 = pneg %p167
        %p298 = pneg %p196
        %p299 = pneg %p193
        %s300 = sand.u32 %s183, 1
        %s301 = scalar_lea.sflag [#allocation4], %s300
        %s302 = sand.u32 %s183, 1
        %s303 = smul.addr %s302, 64
        %s304 = scalar_lea.vmem [#allocation7], %s303
        %s305 = smul.u32 16, %s23
        %p306 = scmp.lt.s32.totalorder %s305, 31
        %s307 = scalar_select %p306, %s305, 31
        %s308 = smul.addr %s307, 8
        %s309 = scalar_lea.vmem %s0, %s308
        %s310 = smul.u32 16, %s23
        %s311 = smul.u32 16, %s23
        %v313 = vld [vmem:[%s309] sm:$0xff]
        %v314 = vld [vmem:[%s309 + $0x8] sm:$0xff]
        %v315 = vld [vmem:[%s309 + $0x10] sm:$0xff]
        %v316 = vld [vmem:[%s309 + $0x18] sm:$0xff]
        %v317 = vld [vmem:[%s309 + $0x20] sm:$0xff]
        %v318 = vld [vmem:[%s309 + $0x28] sm:$0xff]
        %v319 = vld [vmem:[%s309 + $0x30] sm:$0xff]
        %v320 = vld [vmem:[%s309 + $0x38] sm:$0xff]
        %v321 = vld [vmem:[%s309 + $0x40] sm:$0xff]
        %v322 = vld [vmem:[%s309 + $0x48] sm:$0xff]
        %v323 = vld [vmem:[%s309 + $0x50] sm:$0xff]
        %v324 = vld [vmem:[%s309 + $0x58] sm:$0xff]
        %v325 = vld [vmem:[%s309 + $0x60] sm:$0xff]
        %v326 = vld [vmem:[%s309 + $0x68] sm:$0xff]
        %v327 = vld [vmem:[%s309 + $0x70] sm:$0xff]
        %v328 = vld [vmem:[%s309 + $0x78] sm:$0xff]
        %v329 = vpack.c.bf16 %v314, %v313
        %v330 = vpack.c.bf16 %v316, %v315
        %v331 = vpack.c.bf16 %v318, %v317
        %v332 = vpack.c.bf16 %v320, %v319
        %v333 = vpack.c.bf16 %v322, %v321
        %v334 = vpack.c.bf16 %v324, %v323
        %v335 = vpack.c.bf16 %v326, %v325
        %v336 = vpack.c.bf16 %v328, %v327
        %v337 = vld [vmem:[#allocation2] sm:$0xff]
        %v338 = vld [vmem:[#allocation2 + $0x8] sm:$0xff]
        %v339 = vld [vmem:[#allocation2 + $0x10] sm:$0xff]
        %v340 = vld [vmem:[#allocation2 + $0x18] sm:$0xff]
        %v341 = vld [vmem:[#allocation2 + $0x20] sm:$0xff]
        %v342 = vld [vmem:[#allocation2 + $0x28] sm:$0xff]
        %v343 = vld [vmem:[#allocation2 + $0x30] sm:$0xff]
        %v344 = vld [vmem:[#allocation2 + $0x38] sm:$0xff]
        %v345 = vld [vmem:[%s2] sm:$0x3]
        %v347 = vperm.slane %v345, 0
        %v348 = vperm.slane %v345, 1
        %v359 = vunpack.c.l.b16 %v337
        %v360 = vunpack.c.h.b16 %v337
        %v361 = vunpack.c.l.b16 %v338
        %v362 = vunpack.c.h.b16 %v338
        %v363 = vunpack.c.l.b16 %v339
        %v364 = vunpack.c.h.b16 %v339
        %v365 = vunpack.c.l.b16 %v340
        %v366 = vunpack.c.h.b16 %v340
        %v367 = vunpack.c.l.b16 %v341
        %v368 = vunpack.c.h.b16 %v341
        %v369 = vunpack.c.l.b16 %v342
        %v370 = vunpack.c.h.b16 %v342
        %v371 = vunpack.c.l.b16 %v343
        %v372 = vunpack.c.h.b16 %v343
        %v373 = vunpack.c.l.b16 %v344
        %v374 = vunpack.c.h.b16 %v344
        %v375 = vpack.c.b16 %v361, %v359
        %v376 = vpack.c.b16 %v362, %v360
        %v377 = vpack.c.b16 %v365, %v363
        %v378 = vpack.c.b16 %v366, %v364
        %v379 = vpack.c.b16 %v369, %v367
        %v380 = vpack.c.b16 %v370, %v368
        %v381 = vpack.c.b16 %v373, %v371
        %v382 = vpack.c.b16 %v374, %v372
        %vm391 = vcmask 523264
        %v393 = vsel %vm391, %v329, 0
        %v396 = vsel %vm391, %v330, 0
        %v399 = vsel %vm391, %v331, 0
        %v402 = vsel %vm391, %v332, 0
        %v405 = vsel %vm391, %v333, 0
        %v408 = vsel %vm391, %v334, 0
        %v411 = vsel %vm391, %v335, 0
        %v414 = vsel %vm391, %v336, 0
        %416 = vmatpush.bf16.msra.mxu0 0
        %417 = vmatpush.bf16.msra.mxu0 0
        %418 = vmatpush.bf16.msra.mxu0 0
        %419 = vmatpush.bf16.msra.mxu0 0
        %420 = vmatpush.bf16.msra.mxu0 %v381
        %421 = vmatpush.bf16.msra.mxu0 %v379
        %422 = vmatpush.bf16.msra.mxu0 %v377
        %423 = vmatpush.bf16.msra.mxu0 %v375
        %424 = vmatmul.bf16.gmra.mxu0 %v393
        %v425 = vpop.f32.mrf.mxu0
        %v426 = vadd.f32 %v347, %v425
        %v427 = vpop.f32.mrf.mxu0
        %v428 = vadd.f32 %v347, %v427
        %429 = vmatmul.bf16.gmra.mxu0 %v396
        %v430 = vpop.f32.mrf.mxu0
        %v431 = vadd.f32 %v347, %v430
        %v432 = vpop.f32.mrf.mxu0
        %v433 = vadd.f32 %v347, %v432
        %434 = vmatmul.bf16.gmra.mxu0 %v399
        %v435 = vpop.f32.mrf.mxu0
        %v436 = vadd.f32 %v347, %v435
        %v437 = vpop.f32.mrf.mxu0
        %v438 = vadd.f32 %v347, %v437
        %439 = vmatmul.bf16.gmra.mxu0 %v402
        %v440 = vpop.f32.mrf.mxu0
        %v441 = vadd.f32 %v347, %v440
        %v442 = vpop.f32.mrf.mxu0
        %v443 = vadd.f32 %v347, %v442
        %444 = vmatmul.bf16.gmra.mxu0 %v405
        %v445 = vpop.f32.mrf.mxu0
        %v446 = vadd.f32 %v347, %v445
        %v447 = vpop.f32.mrf.mxu0
        %v448 = vadd.f32 %v347, %v447
        %449 = vmatmul.bf16.gmra.mxu0 %v408
        %v450 = vpop.f32.mrf.mxu0
        %v451 = vadd.f32 %v347, %v450
        %v452 = vpop.f32.mrf.mxu0
        %v453 = vadd.f32 %v347, %v452
        %454 = vmatmul.bf16.gmra.mxu0 %v411
        %v455 = vpop.f32.mrf.mxu0
        %v456 = vadd.f32 %v347, %v455
        %v457 = vpop.f32.mrf.mxu0
        %v458 = vadd.f32 %v347, %v457
        %459 = vmatmul.bf16.gmra.mxu0 %v414
        %v460 = vpop.f32.mrf.mxu0
        %v461 = vadd.f32 %v347, %v460
        %v462 = vpop.f32.mrf.mxu0
        %v463 = vadd.f32 %v347, %v462
        %464 = vdwg.mxu0
        %465 = vmatpush.bf16.msra.mxu0 0
        %466 = vmatpush.bf16.msra.mxu0 0
        %467 = vmatpush.bf16.msra.mxu0 0
        %468 = vmatpush.bf16.msra.mxu0 0
        %469 = vmatpush.bf16.msra.mxu0 %v382
        %470 = vmatpush.bf16.msra.mxu0 %v380
        %471 = vmatpush.bf16.msra.mxu0 %v378
        %472 = vmatpush.bf16.msra.mxu0 %v376
        %473 = vmatmul.bf16.gmra.mxu0 %v393
        %v474 = vpop.f32.mrf.mxu0
        %v475 = vadd.f32 %v348, %v474
        %v476 = vpop.f32.mrf.mxu0
        %v477 = vadd.f32 %v348, %v476
        %478 = vmatmul.bf16.gmra.mxu0 %v396
        %v479 = vpop.f32.mrf.mxu0
        %v480 = vadd.f32 %v348, %v479
        %v481 = vpop.f32.mrf.mxu0
        %v482 = vadd.f32 %v348, %v481
        %483 = vmatmul.bf16.gmra.mxu0 %v399
        %v484 = vpop.f32.mrf.mxu0
        %v485 = vadd.f32 %v348, %v484
        %v486 = vpop.f32.mrf.mxu0
        %v487 = vadd.f32 %v348, %v486
        %488 = vmatmul.bf16.gmra.mxu0 %v402
        %v489 = vpop.f32.mrf.mxu0
        %v490 = vadd.f32 %v348, %v489
        %v491 = vpop.f32.mrf.mxu0
        %v492 = vadd.f32 %v348, %v491
        %493 = vmatmul.bf16.gmra.mxu0 %v405
        %v494 = vpop.f32.mrf.mxu0
        %v495 = vadd.f32 %v348, %v494
        %v496 = vpop.f32.mrf.mxu0
        %v497 = vadd.f32 %v348, %v496
        %498 = vmatmul.bf16.gmra.mxu0 %v408
        %v499 = vpop.f32.mrf.mxu0
        %v500 = vadd.f32 %v348, %v499
        %v501 = vpop.f32.mrf.mxu0
        %v502 = vadd.f32 %v348, %v501
        %503 = vmatmul.bf16.gmra.mxu0 %v411
        %v504 = vpop.f32.mrf.mxu0
        %v505 = vadd.f32 %v348, %v504
        %v506 = vpop.f32.mrf.mxu0
        %v507 = vadd.f32 %v348, %v506
        %508 = vmatmul.bf16.gmra.mxu0 %v414
        %v509 = vpop.f32.mrf.mxu0
        %v510 = vadd.f32 %v348, %v509
        %v511 = vpop.f32.mrf.mxu0
        %v512 = vadd.f32 %v348, %v511
        %513 = vdwg.mxu0
        %v514 = vmul.f32 %v426, 0.5
        %v515 = vmul.f32 %v475, 0.5
        %v516 = vmul.f32 %v428, 0.5
        %v517 = vmul.f32 %v477, 0.5
        %v518 = vmul.f32 %v431, 0.5
        %v519 = vmul.f32 %v480, 0.5
        %v520 = vmul.f32 %v433, 0.5
        %v521 = vmul.f32 %v482, 0.5
        %v522 = vmul.f32 %v436, 0.5
        %v523 = vmul.f32 %v485, 0.5
        %v524 = vmul.f32 %v438, 0.5
        %v525 = vmul.f32 %v487, 0.5
        %v526 = vmul.f32 %v441, 0.5
        %v527 = vmul.f32 %v490, 0.5
        %v528 = vmul.f32 %v443, 0.5
        %v529 = vmul.f32 %v492, 0.5
        %v530 = vmul.f32 %v446, 0.5
        %v531 = vmul.f32 %v495, 0.5
        %v532 = vmul.f32 %v448, 0.5
        %v533 = vmul.f32 %v497, 0.5
        %v534 = vmul.f32 %v451, 0.5
        %v535 = vmul.f32 %v500, 0.5
        %v536 = vmul.f32 %v453, 0.5
        %v537 = vmul.f32 %v502, 0.5
        %v538 = vmul.f32 %v456, 0.5
        %v539 = vmul.f32 %v505, 0.5
        %v540 = vmul.f32 %v458, 0.5
        %v541 = vmul.f32 %v507, 0.5
        %v542 = vmul.f32 %v461, 0.5
        %v543 = vmul.f32 %v510, 0.5
        %v544 = vmul.f32 %v463, 0.5
        %v545 = vmul.f32 %v512, 0.5
        %v546 = vmul.f32 %v426, 0.70710677
        %v547 = vmul.f32 %v475, 0.70710677
        %v548 = vmul.f32 %v428, 0.70710677
        %v549 = vmul.f32 %v477, 0.70710677
        %v550 = vmul.f32 %v431, 0.70710677
        %v551 = vmul.f32 %v480, 0.70710677
        %v552 = vmul.f32 %v433, 0.70710677
        %v553 = vmul.f32 %v482, 0.70710677
        %v554 = vmul.f32 %v436, 0.70710677
        %v555 = vmul.f32 %v485, 0.70710677
        %v556 = vmul.f32 %v438, 0.70710677
        %v557 = vmul.f32 %v487, 0.70710677
        %v558 = vmul.f32 %v441, 0.70710677
        %v559 = vmul.f32 %v490, 0.70710677
        %v560 = vmul.f32 %v443, 0.70710677
        %v561 = vmul.f32 %v492, 0.70710677
        %v562 = vmul.f32 %v446, 0.70710677
        %v563 = vmul.f32 %v495, 0.70710677
        %v564 = vmul.f32 %v448, 0.70710677
        %v565 = vmul.f32 %v497, 0.70710677
        %v566 = vmul.f32 %v451, 0.70710677
        %v567 = vmul.f32 %v500, 0.70710677
        %v568 = vmul.f32 %v453, 0.70710677
        %v569 = vmul.f32 %v502, 0.70710677
        %v570 = vmul.f32 %v456, 0.70710677
        %v571 = vmul.f32 %v505, 0.70710677
        %v572 = vmul.f32 %v458, 0.70710677
        %v573 = vmul.f32 %v507, 0.70710677
        %v574 = vmul.f32 %v461, 0.70710677
        %v575 = vmul.f32 %v510, 0.70710677
        %v576 = vmul.f32 %v463, 0.70710677
        %v577 = vmul.f32 %v512, 0.70710677
        %v578 = vmul.f32 %v546, %v546
        %v579 = vmin.f32 16.0, %v578
        %v580 = vmul.f32 %v579, 2.1237322e-06
        %v581 = vadd.f32 %v580, 0.00028619796
        %v582 = vmul.f32 %v579, %v581
        %v583 = vadd.f32 %v582, 0.0036580483
        %v584 = vmul.f32 %v579, %v583
        %v585 = vadd.f32 %v584, 0.05243302
        %v586 = vmul.f32 %v579, %v585
        %v587 = vadd.f32 %v586, 0.18741608
        %v588 = vmul.f32 %v579, %v587
        %v589 = vadd.f32 %v588, 1.1283791
        %v590 = vmul.f32 %v546, %v589
        %v591 = vmul.f32 %v579, 3.8918573e-05
        %v592 = vadd.f32 %v591, 0.001143296
        %v593 = vmul.f32 %v579, %v592
        %v594 = vadd.f32 %v593, 0.014752088
        %v595 = vmul.f32 %v579, %v594
        %v596 = vadd.f32 %v595, 0.112945676
        %v597 = vmul.f32 %v579, %v596
        %v598 = vadd.f32 %v597, 0.4994258
        %v599 = vmul.f32 %v579, %v598
        %v600 = vadd.f32 %v599, 1.0
        %v601 = vrcp.pop %v600
        %v602 = vmul.f32 %v600, %v601
        %v603 = vsub.f32 1.0, %v602
        %v604 = vmul.f32 %v601, %v603
        %v605 = vadd.f32 %v601, %v604
        %vm606 = vweird.f32 %v600
        %vm607 = vweird.f32 %v601
        %vm608 = vmor %vm606, %vm607
        %v609 = vsel %vm608, %v601, %v605
        %v610 = vand.u32 2147483647, %v600
        %vm611 = vcmp.eq.f32.partialorder %v610, 8.507059e+37
        %v612 = vand.u32 %v600, 2147483648
        %v613 = vor.u32 1.1754944e-38, %v612
        %v614 = vsel %vm611, %v613, %v609
        %v615 = vmul.f32 %v590, %v614
        %v616 = vmin.f32 %v615, 1.0
        %v617 = vmax.f32 %v616, -1.0
        %v618 = vmul.f32 %v547, %v547
        %v619 = vmin.f32 16.0, %v618
        %v620 = vmul.f32 %v619, 2.1237322e-06
        %v621 = vadd.f32 %v620, 0.00028619796
        %v622 = vmul.f32 %v619, %v621
        %v623 = vadd.f32 %v622, 0.0036580483
        %v624 = vmul.f32 %v619, %v623
        %v625 = vadd.f32 %v624, 0.05243302
        %v626 = vmul.f32 %v619, %v625
        %v627 = vadd.f32 %v626, 0.18741608
        %v628 = vmul.f32 %v619, %v627
        %v629 = vadd.f32 %v628, 1.1283791
        %v630 = vmul.f32 %v547, %v629
        %v631 = vmul.f32 %v619, 3.8918573e-05
        %v632 = vadd.f32 %v631, 0.001143296
        %v633 = vmul.f32 %v619, %v632
        %v634 = vadd.f32 %v633, 0.014752088
        %v635 = vmul.f32 %v619, %v634
        %v636 = vadd.f32 %v635, 0.112945676
        %v637 = vmul.f32 %v619, %v636
        %v638 = vadd.f32 %v637, 0.4994258
        %v639 = vmul.f32 %v619, %v638
        %v640 = vadd.f32 %v639, 1.0
        %v641 = vrcp.pop %v640
        %v642 = vmul.f32 %v640, %v641
        %v643 = vsub.f32 1.0, %v642
        %v644 = vmul.f32 %v641, %v643
        %v645 = vadd.f32 %v641, %v644
        %vm646 = vweird.f32 %v640
        %vm647 = vweird.f32 %v641
        %vm648 = vmor %vm646, %vm647
        %v649 = vsel %vm648, %v641, %v645
        %v650 = vand.u32 2147483647, %v640
        %vm651 = vcmp.eq.f32.partialorder %v650, 8.507059e+37
        %v652 = vand.u32 %v640, 2147483648
        %v653 = vor.u32 1.1754944e-38, %v652
        %v654 = vsel %vm651, %v653, %v649
        %v655 = vmul.f32 %v630, %v654
        %v656 = vmin.f32 %v655, 1.0
        %v657 = vmax.f32 %v656, -1.0
        %v658 = vmul.f32 %v548, %v548
        %v659 = vmin.f32 16.0, %v658
        %v660 = vmul.f32 %v659, 2.1237322e-06
        %v661 = vadd.f32 %v660, 0.00028619796
        %v662 = vmul.f32 %v659, %v661
        %v663 = vadd.f32 %v662, 0.0036580483
        %v664 = vmul.f32 %v659, %v663
        %v665 = vadd.f32 %v664, 0.05243302
        %v666 = vmul.f32 %v659, %v665
        %v667 = vadd.f32 %v666, 0.18741608
        %v668 = vmul.f32 %v659, %v667
        %v669 = vadd.f32 %v668, 1.1283791
        %v670 = vmul.f32 %v548, %v669
        %v671 = vmul.f32 %v659, 3.8918573e-05
        %v672 = vadd.f32 %v671, 0.001143296
        %v673 = vmul.f32 %v659, %v672
        %v674 = vadd.f32 %v673, 0.014752088
        %v675 = vmul.f32 %v659, %v674
        %v676 = vadd.f32 %v675, 0.112945676
        %v677 = vmul.f32 %v659, %v676
        %v678 = vadd.f32 %v677, 0.4994258
        %v679 = vmul.f32 %v659, %v678
        %v680 = vadd.f32 %v679, 1.0
        %v681 = vrcp.pop %v680
        %v682 = vmul.f32 %v680, %v681
        %v683 = vsub.f32 1.0, %v682
        %v684 = vmul.f32 %v681, %v683
        %v685 = vadd.f32 %v681, %v684
        %vm686 = vweird.f32 %v680
        %vm687 = vweird.f32 %v681
        %vm688 = vmor %vm686, %vm687
        %v689 = vsel %vm688, %v681, %v685
        %v690 = vand.u32 2147483647, %v680
        %vm691 = vcmp.eq.f32.partialorder %v690, 8.507059e+37
        %v692 = vand.u32 %v680, 2147483648
        %v693 = vor.u32 1.1754944e-38, %v692
        %v694 = vsel %vm691, %v693, %v689
        %v695 = vmul.f32 %v670, %v694
        %v696 = vmin.f32 %v695, 1.0
        %v697 = vmax.f32 %v696, -1.0
        %v698 = vmul.f32 %v549, %v549
        %v699 = vmin.f32 16.0, %v698
        %v700 = vmul.f32 %v699, 2.1237322e-06
        %v701 = vadd.f32 %v700, 0.00028619796
        %v702 = vmul.f32 %v699, %v701
        %v703 = vadd.f32 %v702, 0.0036580483
        %v704 = vmul.f32 %v699, %v703
        %v705 = vadd.f32 %v704, 0.05243302
        %v706 = vmul.f32 %v699, %v705
        %v707 = vadd.f32 %v706, 0.18741608
        %v708 = vmul.f32 %v699, %v707
        %v709 = vadd.f32 %v708, 1.1283791
        %v710 = vmul.f32 %v549, %v709
        %v711 = vmul.f32 %v699, 3.8918573e-05
        %v712 = vadd.f32 %v711, 0.001143296
        %v713 = vmul.f32 %v699, %v712
        %v714 = vadd.f32 %v713, 0.014752088
        %v715 = vmul.f32 %v699, %v714
        %v716 = vadd.f32 %v715, 0.112945676
        %v717 = vmul.f32 %v699, %v716
        %v718 = vadd.f32 %v717, 0.4994258
        %v719 = vmul.f32 %v699, %v718
        %v720 = vadd.f32 %v719, 1.0
        %v721 = vrcp.pop %v720
        %v722 = vmul.f32 %v720, %v721
        %v723 = vsub.f32 1.0, %v722
        %v724 = vmul.f32 %v721, %v723
        %v725 = vadd.f32 %v721, %v724
        %vm726 = vweird.f32 %v720
        %vm727 = vweird.f32 %v721
        %vm728 = vmor %vm726, %vm727
        %v729 = vsel %vm728, %v721, %v725
        %v730 = vand.u32 2147483647, %v720
        %vm731 = vcmp.eq.f32.partialorder %v730, 8.507059e+37
        %v732 = vand.u32 %v720, 2147483648
        %v733 = vor.u32 1.1754944e-38, %v732
        %v734 = vsel %vm731, %v733, %v729
        %v735 = vmul.f32 %v710, %v734
        %v736 = vmin.f32 %v735, 1.0
        %v737 = vmax.f32 %v736, -1.0
        %v738 = vmul.f32 %v550, %v550
        %v739 = vmin.f32 16.0, %v738
        %v740 = vmul.f32 %v739, 2.1237322e-06
        %v741 = vadd.f32 %v740, 0.00028619796
        %v742 = vmul.f32 %v739, %v741
        %v743 = vadd.f32 %v742, 0.0036580483
        %v744 = vmul.f32 %v739, %v743
        %v745 = vadd.f32 %v744, 0.05243302
        %v746 = vmul.f32 %v739, %v745
        %v747 = vadd.f32 %v746, 0.18741608
        %v748 = vmul.f32 %v739, %v747
        %v749 = vadd.f32 %v748, 1.1283791
        %v750 = vmul.f32 %v550, %v749
        %v751 = vmul.f32 %v739, 3.8918573e-05
        %v752 = vadd.f32 %v751, 0.001143296
        %v753 = vmul.f32 %v739, %v752
        %v754 = vadd.f32 %v753, 0.014752088
        %v755 = vmul.f32 %v739, %v754
        %v756 = vadd.f32 %v755, 0.112945676
        %v757 = vmul.f32 %v739, %v756
        %v758 = vadd.f32 %v757, 0.4994258
        %v759 = vmul.f32 %v739, %v758
        %v760 = vadd.f32 %v759, 1.0
        %v761 = vrcp.pop %v760
        %v762 = vmul.f32 %v760, %v761
        %v763 = vsub.f32 1.0, %v762
        %v764 = vmul.f32 %v761, %v763
        %v765 = vadd.f32 %v761, %v764
        %vm766 = vweird.f32 %v760
        %vm767 = vweird.f32 %v761
        %vm768 = vmor %vm766, %vm767
        %v769 = vsel %vm768, %v761, %v765
        %v770 = vand.u32 2147483647, %v760
        %vm771 = vcmp.eq.f32.partialorder %v770, 8.507059e+37
        %v772 = vand.u32 %v760, 2147483648
        %v773 = vor.u32 1.1754944e-38, %v772
        %v774 = vsel %vm771, %v773, %v769
        %v775 = vmul.f32 %v750, %v774
        %v776 = vmin.f32 %v775, 1.0
        %v777 = vmax.f32 %v776, -1.0
        %v778 = vmul.f32 %v551, %v551
        %v779 = vmin.f32 16.0, %v778
        %v780 = vmul.f32 %v779, 2.1237322e-06
        %v781 = vadd.f32 %v780, 0.00028619796
        %v782 = vmul.f32 %v779, %v781
        %v783 = vadd.f32 %v782, 0.0036580483
        %v784 = vmul.f32 %v779, %v783
        %v785 = vadd.f32 %v784, 0.05243302
        %v786 = vmul.f32 %v779, %v785
        %v787 = vadd.f32 %v786, 0.18741608
        %v788 = vmul.f32 %v779, %v787
        %v789 = vadd.f32 %v788, 1.1283791
        %v790 = vmul.f32 %v551, %v789
        %v791 = vmul.f32 %v779, 3.8918573e-05
        %v792 = vadd.f32 %v791, 0.001143296
        %v793 = vmul.f32 %v779, %v792
        %v794 = vadd.f32 %v793, 0.014752088
        %v795 = vmul.f32 %v779, %v794
        %v796 = vadd.f32 %v795, 0.112945676
        %v797 = vmul.f32 %v779, %v796
        %v798 = vadd.f32 %v797, 0.4994258
        %v799 = vmul.f32 %v779, %v798
        %v800 = vadd.f32 %v799, 1.0
        %v801 = vrcp.pop %v800
        %v802 = vmul.f32 %v800, %v801
        %v803 = vsub.f32 1.0, %v802
        %v804 = vmul.f32 %v801, %v803
        %v805 = vadd.f32 %v801, %v804
        %vm806 = vweird.f32 %v800
        %vm807 = vweird.f32 %v801
        %vm808 = vmor %vm806, %vm807
        %v809 = vsel %vm808, %v801, %v805
        %v810 = vand.u32 2147483647, %v800
        %vm811 = vcmp.eq.f32.partialorder %v810, 8.507059e+37
        %v812 = vand.u32 %v800, 2147483648
        %v813 = vor.u32 1.1754944e-38, %v812
        %v814 = vsel %vm811, %v813, %v809
        %v815 = vmul.f32 %v790, %v814
        %v816 = vmin.f32 %v815, 1.0
        %v817 = vmax.f32 %v816, -1.0
        %v818 = vmul.f32 %v552, %v552
        %v819 = vmin.f32 16.0, %v818
        %v820 = vmul.f32 %v819, 2.1237322e-06
        %v821 = vadd.f32 %v820, 0.00028619796
        %v822 = vmul.f32 %v819, %v821
        %v823 = vadd.f32 %v822, 0.0036580483
        %v824 = vmul.f32 %v819, %v823
        %v825 = vadd.f32 %v824, 0.05243302
        %v826 = vmul.f32 %v819, %v825
        %v827 = vadd.f32 %v826, 0.18741608
        %v828 = vmul.f32 %v819, %v827
        %v829 = vadd.f32 %v828, 1.1283791
        %v830 = vmul.f32 %v552, %v829
        %v831 = vmul.f32 %v819, 3.8918573e-05
        %v832 = vadd.f32 %v831, 0.001143296
        %v833 = vmul.f32 %v819, %v832
        %v834 = vadd.f32 %v833, 0.014752088
        %v835 = vmul.f32 %v819, %v834
        %v836 = vadd.f32 %v835, 0.112945676
        %v837 = vmul.f32 %v819, %v836
        %v838 = vadd.f32 %v837, 0.4994258
        %v839 = vmul.f32 %v819, %v838
        %v840 = vadd.f32 %v839, 1.0
        %v841 = vrcp.pop %v840
        %v842 = vmul.f32 %v840, %v841
        %v843 = vsub.f32 1.0, %v842
        %v844 = vmul.f32 %v841, %v843
        %v845 = vadd.f32 %v841, %v844
        %vm846 = vweird.f32 %v840
        %vm847 = vweird.f32 %v841
        %vm848 = vmor %vm846, %vm847
        %v849 = vsel %vm848, %v841, %v845
        %v850 = vand.u32 2147483647, %v840
        %vm851 = vcmp.eq.f32.partialorder %v850, 8.507059e+37
        %v852 = vand.u32 %v840, 2147483648
        %v853 = vor.u32 1.1754944e-38, %v852
        %v854 = vsel %vm851, %v853, %v849
        %v855 = vmul.f32 %v830, %v854
        %v856 = vmin.f32 %v855, 1.0
        %v857 = vmax.f32 %v856, -1.0
        %v858 = vmul.f32 %v553, %v553
        %v859 = vmin.f32 16.0, %v858
        %v860 = vmul.f32 %v859, 2.1237322e-06
        %v861 = vadd.f32 %v860, 0.00028619796
        %v862 = vmul.f32 %v859, %v861
        %v863 = vadd.f32 %v862, 0.0036580483
        %v864 = vmul.f32 %v859, %v863
        %v865 = vadd.f32 %v864, 0.05243302
        %v866 = vmul.f32 %v859, %v865
        %v867 = vadd.f32 %v866, 0.18741608
        %v868 = vmul.f32 %v859, %v867
        %v869 = vadd.f32 %v868, 1.1283791
        %v870 = vmul.f32 %v553, %v869
        %v871 = vmul.f32 %v859, 3.8918573e-05
        %v872 = vadd.f32 %v871, 0.001143296
        %v873 = vmul.f32 %v859, %v872
        %v874 = vadd.f32 %v873, 0.014752088
        %v875 = vmul.f32 %v859, %v874
        %v876 = vadd.f32 %v875, 0.112945676
        %v877 = vmul.f32 %v859, %v876
        %v878 = vadd.f32 %v877, 0.4994258
        %v879 = vmul.f32 %v859, %v878
        %v880 = vadd.f32 %v879, 1.0
        %v881 = vrcp.pop %v880
        %v882 = vmul.f32 %v880, %v881
        %v883 = vsub.f32 1.0, %v882
        %v884 = vmul.f32 %v881, %v883
        %v885 = vadd.f32 %v881, %v884
        %vm886 = vweird.f32 %v880
        %vm887 = vweird.f32 %v881
        %vm888 = vmor %vm886, %vm887
        %v889 = vsel %vm888, %v881, %v885
        %v890 = vand.u32 2147483647, %v880
        %vm891 = vcmp.eq.f32.partialorder %v890, 8.507059e+37
        %v892 = vand.u32 %v880, 2147483648
        %v893 = vor.u32 1.1754944e-38, %v892
        %v894 = vsel %vm891, %v893, %v889
        %v895 = vmul.f32 %v870, %v894
        %v896 = vmin.f32 %v895, 1.0
        %v897 = vmax.f32 %v896, -1.0
        %v898 = vmul.f32 %v554, %v554
        %v899 = vmin.f32 16.0, %v898
        %v900 = vmul.f32 %v899, 2.1237322e-06
        %v901 = vadd.f32 %v900, 0.00028619796
        %v902 = vmul.f32 %v899, %v901
        %v903 = vadd.f32 %v902, 0.0036580483
        %v904 = vmul.f32 %v899, %v903
        %v905 = vadd.f32 %v904, 0.05243302
        %v906 = vmul.f32 %v899, %v905
        %v907 = vadd.f32 %v906, 0.18741608
        %v908 = vmul.f32 %v899, %v907
        %v909 = vadd.f32 %v908, 1.1283791
        %v910 = vmul.f32 %v554, %v909
        %v911 = vmul.f32 %v899, 3.8918573e-05
        %v912 = vadd.f32 %v911, 0.001143296
        %v913 = vmul.f32 %v899, %v912
        %v914 = vadd.f32 %v913, 0.014752088
        %v915 = vmul.f32 %v899, %v914
        %v916 = vadd.f32 %v915, 0.112945676
        %v917 = vmul.f32 %v899, %v916
        %v918 = vadd.f32 %v917, 0.4994258
        %v919 = vmul.f32 %v899, %v918
        %v920 = vadd.f32 %v919, 1.0
        %v921 = vrcp.pop %v920
        %v922 = vmul.f32 %v920, %v921
        %v923 = vsub.f32 1.0, %v922
        %v924 = vmul.f32 %v921, %v923
        %v925 = vadd.f32 %v921, %v924
        %vm926 = vweird.f32 %v920
        %vm927 = vweird.f32 %v921
        %vm928 = vmor %vm926, %vm927
        %v929 = vsel %vm928, %v921, %v925
        %v930 = vand.u32 2147483647, %v920
        %vm931 = vcmp.eq.f32.partialorder %v930, 8.507059e+37
        %v932 = vand.u32 %v920, 2147483648
        %v933 = vor.u32 1.1754944e-38, %v932
        %v934 = vsel %vm931, %v933, %v929
        %v935 = vmul.f32 %v910, %v934
        %v936 = vmin.f32 %v935, 1.0
        %v937 = vmax.f32 %v936, -1.0
        %v938 = vmul.f32 %v555, %v555
        %v939 = vmin.f32 16.0, %v938
        %v940 = vmul.f32 %v939, 2.1237322e-06
        %v941 = vadd.f32 %v940, 0.00028619796
        %v942 = vmul.f32 %v939, %v941
        %v943 = vadd.f32 %v942, 0.0036580483
        %v944 = vmul.f32 %v939, %v943
        %v945 = vadd.f32 %v944, 0.05243302
        %v946 = vmul.f32 %v939, %v945
        %v947 = vadd.f32 %v946, 0.18741608
        %v948 = vmul.f32 %v939, %v947
        %v949 = vadd.f32 %v948, 1.1283791
        %v950 = vmul.f32 %v555, %v949
        %v951 = vmul.f32 %v939, 3.8918573e-05
        %v952 = vadd.f32 %v951, 0.001143296
        %v953 = vmul.f32 %v939, %v952
        %v954 = vadd.f32 %v953, 0.014752088
        %v955 = vmul.f32 %v939, %v954
        %v956 = vadd.f32 %v955, 0.112945676
        %v957 = vmul.f32 %v939, %v956
        %v958 = vadd.f32 %v957, 0.4994258
        %v959 = vmul.f32 %v939, %v958
        %v960 = vadd.f32 %v959, 1.0
        %v961 = vrcp.pop %v960
        %v962 = vmul.f32 %v960, %v961
        %v963 = vsub.f32 1.0, %v962
        %v964 = vmul.f32 %v961, %v963
        %v965 = vadd.f32 %v961, %v964
        %vm966 = vweird.f32 %v960
        %vm967 = vweird.f32 %v961
        %vm968 = vmor %vm966, %vm967
        %v969 = vsel %vm968, %v961, %v965
        %v970 = vand.u32 2147483647, %v960
        %vm971 = vcmp.eq.f32.partialorder %v970, 8.507059e+37
        %v972 = vand.u32 %v960, 2147483648
        %v973 = vor.u32 1.1754944e-38, %v972
        %v974 = vsel %vm971, %v973, %v969
        %v975 = vmul.f32 %v950, %v974
        %v976 = vmin.f32 %v975, 1.0
        %v977 = vmax.f32 %v976, -1.0
        %v978 = vmul.f32 %v556, %v556
        %v979 = vmin.f32 16.0, %v978
        %v980 = vmul.f32 %v979, 2.1237322e-06
        %v981 = vadd.f32 %v980, 0.00028619796
        %v982 = vmul.f32 %v979, %v981
        %v983 = vadd.f32 %v982, 0.0036580483
        %v984 = vmul.f32 %v979, %v983
        %v985 = vadd.f32 %v984, 0.05243302
        %v986 = vmul.f32 %v979, %v985
        %v987 = vadd.f32 %v986, 0.18741608
        %v988 = vmul.f32 %v979, %v987
        %v989 = vadd.f32 %v988, 1.1283791
        %v990 = vmul.f32 %v556, %v989
        %v991 = vmul.f32 %v979, 3.8918573e-05
        %v992 = vadd.f32 %v991, 0.001143296
        %v993 = vmul.f32 %v979, %v992
        %v994 = vadd.f32 %v993, 0.014752088
        %v995 = vmul.f32 %v979, %v994
        %v996 = vadd.f32 %v995, 0.112945676
        %v997 = vmul.f32 %v979, %v996
        %v998 = vadd.f32 %v997, 0.4994258
        %v999 = vmul.f32 %v979, %v998
        %v1000 = vadd.f32 %v999, 1.0
        %v1001 = vrcp.pop %v1000
        %v1002 = vmul.f32 %v1000, %v1001
        %v1003 = vsub.f32 1.0, %v1002
        %v1004 = vmul.f32 %v1001, %v1003
        %v1005 = vadd.f32 %v1001, %v1004
        %vm1006 = vweird.f32 %v1000
        %vm1007 = vweird.f32 %v1001
        %vm1008 = vmor %vm1006, %vm1007
        %v1009 = vsel %vm1008, %v1001, %v1005
        %v1010 = vand.u32 2147483647, %v1000
        %vm1011 = vcmp.eq.f32.partialorder %v1010, 8.507059e+37
        %v1012 = vand.u32 %v1000, 2147483648
        %v1013 = vor.u32 1.1754944e-38, %v1012
        %v1014 = vsel %vm1011, %v1013, %v1009
        %v1015 = vmul.f32 %v990, %v1014
        %v1016 = vmin.f32 %v1015, 1.0
        %v1017 = vmax.f32 %v1016, -1.0
        %v1018 = vmul.f32 %v557, %v557
        %v1019 = vmin.f32 16.0, %v1018
        %v1020 = vmul.f32 %v1019, 2.1237322e-06
        %v1021 = vadd.f32 %v1020, 0.00028619796
        %v1022 = vmul.f32 %v1019, %v1021
        %v1023 = vadd.f32 %v1022, 0.0036580483
        %v1024 = vmul.f32 %v1019, %v1023
        %v1025 = vadd.f32 %v1024, 0.05243302
        %v1026 = vmul.f32 %v1019, %v1025
        %v1027 = vadd.f32 %v1026, 0.18741608
        %v1028 = vmul.f32 %v1019, %v1027
        %v1029 = vadd.f32 %v1028, 1.1283791
        %v1030 = vmul.f32 %v557, %v1029
        %v1031 = vmul.f32 %v1019, 3.8918573e-05
        %v1032 = vadd.f32 %v1031, 0.001143296
        %v1033 = vmul.f32 %v1019, %v1032
        %v1034 = vadd.f32 %v1033, 0.014752088
        %v1035 = vmul.f32 %v1019, %v1034
        %v1036 = vadd.f32 %v1035, 0.112945676
        %v1037 = vmul.f32 %v1019, %v1036
        %v1038 = vadd.f32 %v1037, 0.4994258
        %v1039 = vmul.f32 %v1019, %v1038
        %v1040 = vadd.f32 %v1039, 1.0
        %v1041 = vrcp.pop %v1040
        %v1042 = vmul.f32 %v1040, %v1041
        %v1043 = vsub.f32 1.0, %v1042
        %v1044 = vmul.f32 %v1041, %v1043
        %v1045 = vadd.f32 %v1041, %v1044
        %vm1046 = vweird.f32 %v1040
        %vm1047 = vweird.f32 %v1041
        %vm1048 = vmor %vm1046, %vm1047
        %v1049 = vsel %vm1048, %v1041, %v1045
        %v1050 = vand.u32 2147483647, %v1040
        %vm1051 = vcmp.eq.f32.partialorder %v1050, 8.507059e+37
        %v1052 = vand.u32 %v1040, 2147483648
        %v1053 = vor.u32 1.1754944e-38, %v1052
        %v1054 = vsel %vm1051, %v1053, %v1049
        %v1055 = vmul.f32 %v1030, %v1054
        %v1056 = vmin.f32 %v1055, 1.0
        %v1057 = vmax.f32 %v1056, -1.0
        %v1058 = vmul.f32 %v558, %v558
        %v1059 = vmin.f32 16.0, %v1058
        %v1060 = vmul.f32 %v1059, 2.1237322e-06
        %v1061 = vadd.f32 %v1060, 0.00028619796
        %v1062 = vmul.f32 %v1059, %v1061
        %v1063 = vadd.f32 %v1062, 0.0036580483
        %v1064 = vmul.f32 %v1059, %v1063
        %v1065 = vadd.f32 %v1064, 0.05243302
        %v1066 = vmul.f32 %v1059, %v1065
        %v1067 = vadd.f32 %v1066, 0.18741608
        %v1068 = vmul.f32 %v1059, %v1067
        %v1069 = vadd.f32 %v1068, 1.1283791
        %v1070 = vmul.f32 %v558, %v1069
        %v1071 = vmul.f32 %v1059, 3.8918573e-05
        %v1072 = vadd.f32 %v1071, 0.001143296
        %v1073 = vmul.f32 %v1059, %v1072
        %v1074 = vadd.f32 %v1073, 0.014752088
        %v1075 = vmul.f32 %v1059, %v1074
        %v1076 = vadd.f32 %v1075, 0.112945676
        %v1077 = vmul.f32 %v1059, %v1076
        %v1078 = vadd.f32 %v1077, 0.4994258
        %v1079 = vmul.f32 %v1059, %v1078
        %v1080 = vadd.f32 %v1079, 1.0
        %v1081 = vrcp.pop %v1080
        %v1082 = vmul.f32 %v1080, %v1081
        %v1083 = vsub.f32 1.0, %v1082
        %v1084 = vmul.f32 %v1081, %v1083
        %v1085 = vadd.f32 %v1081, %v1084
        %vm1086 = vweird.f32 %v1080
        %vm1087 = vweird.f32 %v1081
        %vm1088 = vmor %vm1086, %vm1087
        %v1089 = vsel %vm1088, %v1081, %v1085
        %v1090 = vand.u32 2147483647, %v1080
        %vm1091 = vcmp.eq.f32.partialorder %v1090, 8.507059e+37
        %v1092 = vand.u32 %v1080, 2147483648
        %v1093 = vor.u32 1.1754944e-38, %v1092
        %v1094 = vsel %vm1091, %v1093, %v1089
        %v1095 = vmul.f32 %v1070, %v1094
        %v1096 = vmin.f32 %v1095, 1.0
        %v1097 = vmax.f32 %v1096, -1.0
        %v1098 = vmul.f32 %v559, %v559
        %v1099 = vmin.f32 16.0, %v1098
        %v1100 = vmul.f32 %v1099, 2.1237322e-06
        %v1101 = vadd.f32 %v1100, 0.00028619796
        %v1102 = vmul.f32 %v1099, %v1101
        %v1103 = vadd.f32 %v1102, 0.0036580483
        %v1104 = vmul.f32 %v1099, %v1103
        %v1105 = vadd.f32 %v1104, 0.05243302
        %v1106 = vmul.f32 %v1099, %v1105
        %v1107 = vadd.f32 %v1106, 0.18741608
        %v1108 = vmul.f32 %v1099, %v1107
        %v1109 = vadd.f32 %v1108, 1.1283791
        %v1110 = vmul.f32 %v559, %v1109
        %v1111 = vmul.f32 %v1099, 3.8918573e-05
        %v1112 = vadd.f32 %v1111, 0.001143296
        %v1113 = vmul.f32 %v1099, %v1112
        %v1114 = vadd.f32 %v1113, 0.014752088
        %v1115 = vmul.f32 %v1099, %v1114
        %v1116 = vadd.f32 %v1115, 0.112945676
        %v1117 = vmul.f32 %v1099, %v1116
        %v1118 = vadd.f32 %v1117, 0.4994258
        %v1119 = vmul.f32 %v1099, %v1118
        %v1120 = vadd.f32 %v1119, 1.0
        %v1121 = vrcp.pop %v1120
        %v1122 = vmul.f32 %v1120, %v1121
        %v1123 = vsub.f32 1.0, %v1122
        %v1124 = vmul.f32 %v1121, %v1123
        %v1125 = vadd.f32 %v1121, %v1124
        %vm1126 = vweird.f32 %v1120
        %vm1127 = vweird.f32 %v1121
        %vm1128 = vmor %vm1126, %vm1127
        %v1129 = vsel %vm1128, %v1121, %v1125
        %v1130 = vand.u32 2147483647, %v1120
        %vm1131 = vcmp.eq.f32.partialorder %v1130, 8.507059e+37
        %v1132 = vand.u32 %v1120, 2147483648
        %v1133 = vor.u32 1.1754944e-38, %v1132
        %v1134 = vsel %vm1131, %v1133, %v1129
        %v1135 = vmul.f32 %v1110, %v1134
        %v1136 = vmin.f32 %v1135, 1.0
        %v1137 = vmax.f32 %v1136, -1.0
        %v1138 = vmul.f32 %v560, %v560
        %v1139 = vmin.f32 16.0, %v1138
        %v1140 = vmul.f32 %v1139, 2.1237322e-06
        %v1141 = vadd.f32 %v1140, 0.00028619796
        %v1142 = vmul.f32 %v1139, %v1141
        %v1143 = vadd.f32 %v1142, 0.0036580483
        %v1144 = vmul.f32 %v1139, %v1143
        %v1145 = vadd.f32 %v1144, 0.05243302
        %v1146 = vmul.f32 %v1139, %v1145
        %v1147 = vadd.f32 %v1146, 0.18741608
        %v1148 = vmul.f32 %v1139, %v1147
        %v1149 = vadd.f32 %v1148, 1.1283791
        %v1150 = vmul.f32 %v560, %v1149
        %v1151 = vmul.f32 %v1139, 3.8918573e-05
        %v1152 = vadd.f32 %v1151, 0.001143296
        %v1153 = vmul.f32 %v1139, %v1152
        %v1154 = vadd.f32 %v1153, 0.014752088
        %v1155 = vmul.f32 %v1139, %v1154
        %v1156 = vadd.f32 %v1155, 0.112945676
        %v1157 = vmul.f32 %v1139, %v1156
        %v1158 = vadd.f32 %v1157, 0.4994258
        %v1159 = vmul.f32 %v1139, %v1158
        %v1160 = vadd.f32 %v1159, 1.0
        %v1161 = vrcp.pop %v1160
        %v1162 = vmul.f32 %v1160, %v1161
        %v1163 = vsub.f32 1.0, %v1162
        %v1164 = vmul.f32 %v1161, %v1163
        %v1165 = vadd.f32 %v1161, %v1164
        %vm1166 = vweird.f32 %v1160
        %vm1167 = vweird.f32 %v1161
        %vm1168 = vmor %vm1166, %vm1167
        %v1169 = vsel %vm1168, %v1161, %v1165
        %v1170 = vand.u32 2147483647, %v1160
        %vm1171 = vcmp.eq.f32.partialorder %v1170, 8.507059e+37
        %v1172 = vand.u32 %v1160, 2147483648
        %v1173 = vor.u32 1.1754944e-38, %v1172
        %v1174 = vsel %vm1171, %v1173, %v1169
        %v1175 = vmul.f32 %v1150, %v1174
        %v1176 = vmin.f32 %v1175, 1.0
        %v1177 = vmax.f32 %v1176, -1.0
        %v1178 = vmul.f32 %v561, %v561
        %v1179 = vmin.f32 16.0, %v1178
        %v1180 = vmul.f32 %v1179, 2.1237322e-06
        %v1181 = vadd.f32 %v1180, 0.00028619796
        %v1182 = vmul.f32 %v1179, %v1181
        %v1183 = vadd.f32 %v1182, 0.0036580483
        %v1184 = vmul.f32 %v1179, %v1183
        %v1185 = vadd.f32 %v1184, 0.05243302
        %v1186 = vmul.f32 %v1179, %v1185
        %v1187 = vadd.f32 %v1186, 0.18741608
        %v1188 = vmul.f32 %v1179, %v1187
        %v1189 = vadd.f32 %v1188, 1.1283791
        %v1190 = vmul.f32 %v561, %v1189
        %v1191 = vmul.f32 %v1179, 3.8918573e-05
        %v1192 = vadd.f32 %v1191, 0.001143296
        %v1193 = vmul.f32 %v1179, %v1192
        %v1194 = vadd.f32 %v1193, 0.014752088
        %v1195 = vmul.f32 %v1179, %v1194
        %v1196 = vadd.f32 %v1195, 0.112945676
        %v1197 = vmul.f32 %v1179, %v1196
        %v1198 = vadd.f32 %v1197, 0.4994258
        %v1199 = vmul.f32 %v1179, %v1198
        %v1200 = vadd.f32 %v1199, 1.0
        %v1201 = vrcp.pop %v1200
        %v1202 = vmul.f32 %v1200, %v1201
        %v1203 = vsub.f32 1.0, %v1202
        %v1204 = vmul.f32 %v1201, %v1203
        %v1205 = vadd.f32 %v1201, %v1204
        %vm1206 = vweird.f32 %v1200
        %vm1207 = vweird.f32 %v1201
        %vm1208 = vmor %vm1206, %vm1207
        %v1209 = vsel %vm1208, %v1201, %v1205
        %v1210 = vand.u32 2147483647, %v1200
        %vm1211 = vcmp.eq.f32.partialorder %v1210, 8.507059e+37
        %v1212 = vand.u32 %v1200, 2147483648
        %v1213 = vor.u32 1.1754944e-38, %v1212
        %v1214 = vsel %vm1211, %v1213, %v1209
        %v1215 = vmul.f32 %v1190, %v1214
        %v1216 = vmin.f32 %v1215, 1.0
        %v1217 = vmax.f32 %v1216, -1.0
        %v1218 = vmul.f32 %v562, %v562
        %v1219 = vmin.f32 16.0, %v1218
        %v1220 = vmul.f32 %v1219, 2.1237322e-06
        %v1221 = vadd.f32 %v1220, 0.00028619796
        %v1222 = vmul.f32 %v1219, %v1221
        %v1223 = vadd.f32 %v1222, 0.0036580483
        %v1224 = vmul.f32 %v1219, %v1223
        %v1225 = vadd.f32 %v1224, 0.05243302
        %v1226 = vmul.f32 %v1219, %v1225
        %v1227 = vadd.f32 %v1226, 0.18741608
        %v1228 = vmul.f32 %v1219, %v1227
        %v1229 = vadd.f32 %v1228, 1.1283791
        %v1230 = vmul.f32 %v562, %v1229
        %v1231 = vmul.f32 %v1219, 3.8918573e-05
        %v1232 = vadd.f32 %v1231, 0.001143296
        %v1233 = vmul.f32 %v1219, %v1232
        %v1234 = vadd.f32 %v1233, 0.014752088
        %v1235 = vmul.f32 %v1219, %v1234
        %v1236 = vadd.f32 %v1235, 0.112945676
        %v1237 = vmul.f32 %v1219, %v1236
        %v1238 = vadd.f32 %v1237, 0.4994258
        %v1239 = vmul.f32 %v1219, %v1238
        %v1240 = vadd.f32 %v1239, 1.0
        %v1241 = vrcp.pop %v1240
        %v1242 = vmul.f32 %v1240, %v1241
        %v1243 = vsub.f32 1.0, %v1242
        %v1244 = vmul.f32 %v1241, %v1243
        %v1245 = vadd.f32 %v1241, %v1244
        %vm1246 = vweird.f32 %v1240
        %vm1247 = vweird.f32 %v1241
        %vm1248 = vmor %vm1246, %vm1247
        %v1249 = vsel %vm1248, %v1241, %v1245
        %v1250 = vand.u32 2147483647, %v1240
        %vm1251 = vcmp.eq.f32.partialorder %v1250, 8.507059e+37
        %v1252 = vand.u32 %v1240, 2147483648
        %v1253 = vor.u32 1.1754944e-38, %v1252
        %v1254 = vsel %vm1251, %v1253, %v1249
        %v1255 = vmul.f32 %v1230, %v1254
        %v1256 = vmin.f32 %v1255, 1.0
        %v1257 = vmax.f32 %v1256, -1.0
        %v1258 = vmul.f32 %v563, %v563
        %v1259 = vmin.f32 16.0, %v1258
        %v1260 = vmul.f32 %v1259, 2.1237322e-06
        %v1261 = vadd.f32 %v1260, 0.00028619796
        %v1262 = vmul.f32 %v1259, %v1261
        %v1263 = vadd.f32 %v1262, 0.0036580483
        %v1264 = vmul.f32 %v1259, %v1263
        %v1265 = vadd.f32 %v1264, 0.05243302
        %v1266 = vmul.f32 %v1259, %v1265
        %v1267 = vadd.f32 %v1266, 0.18741608
        %v1268 = vmul.f32 %v1259, %v1267
        %v1269 = vadd.f32 %v1268, 1.1283791
        %v1270 = vmul.f32 %v563, %v1269
        %v1271 = vmul.f32 %v1259, 3.8918573e-05
        %v1272 = vadd.f32 %v1271, 0.001143296
        %v1273 = vmul.f32 %v1259, %v1272
        %v1274 = vadd.f32 %v1273, 0.014752088
        %v1275 = vmul.f32 %v1259, %v1274
        %v1276 = vadd.f32 %v1275, 0.112945676
        %v1277 = vmul.f32 %v1259, %v1276
        %v1278 = vadd.f32 %v1277, 0.4994258
        %v1279 = vmul.f32 %v1259, %v1278
        %v1280 = vadd.f32 %v1279, 1.0
        %v1281 = vrcp.pop %v1280
        %v1282 = vmul.f32 %v1280, %v1281
        %v1283 = vsub.f32 1.0, %v1282
        %v1284 = vmul.f32 %v1281, %v1283
        %v1285 = vadd.f32 %v1281, %v1284
        %vm1286 = vweird.f32 %v1280
        %vm1287 = vweird.f32 %v1281
        %vm1288 = vmor %vm1286, %vm1287
        %v1289 = vsel %vm1288, %v1281, %v1285
        %v1290 = vand.u32 2147483647, %v1280
        %vm1291 = vcmp.eq.f32.partialorder %v1290, 8.507059e+37
        %v1292 = vand.u32 %v1280, 2147483648
        %v1293 = vor.u32 1.1754944e-38, %v1292
        %v1294 = vsel %vm1291, %v1293, %v1289
        %v1295 = vmul.f32 %v1270, %v1294
        %v1296 = vmin.f32 %v1295, 1.0
        %v1297 = vmax.f32 %v1296, -1.0
        %v1298 = vmul.f32 %v564, %v564
        %v1299 = vmin.f32 16.0, %v1298
        %v1300 = vmul.f32 %v1299, 2.1237322e-06
        %v1301 = vadd.f32 %v1300, 0.00028619796
        %v1302 = vmul.f32 %v1299, %v1301
        %v1303 = vadd.f32 %v1302, 0.0036580483
        %v1304 = vmul.f32 %v1299, %v1303
        %v1305 = vadd.f32 %v1304, 0.05243302
        %v1306 = vmul.f32 %v1299, %v1305
        %v1307 = vadd.f32 %v1306, 0.18741608
        %v1308 = vmul.f32 %v1299, %v1307
        %v1309 = vadd.f32 %v1308, 1.1283791
        %v1310 = vmul.f32 %v564, %v1309
        %v1311 = vmul.f32 %v1299, 3.8918573e-05
        %v1312 = vadd.f32 %v1311, 0.001143296
        %v1313 = vmul.f32 %v1299, %v1312
        %v1314 = vadd.f32 %v1313, 0.014752088
        %v1315 = vmul.f32 %v1299, %v1314
        %v1316 = vadd.f32 %v1315, 0.112945676
        %v1317 = vmul.f32 %v1299, %v1316
        %v1318 = vadd.f32 %v1317, 0.4994258
        %v1319 = vmul.f32 %v1299, %v1318
        %v1320 = vadd.f32 %v1319, 1.0
        %v1321 = vrcp.pop %v1320
        %v1322 = vmul.f32 %v1320, %v1321
        %v1323 = vsub.f32 1.0, %v1322
        %v1324 = vmul.f32 %v1321, %v1323
        %v1325 = vadd.f32 %v1321, %v1324
        %vm1326 = vweird.f32 %v1320
        %vm1327 = vweird.f32 %v1321
        %vm1328 = vmor %vm1326, %vm1327
        %v1329 = vsel %vm1328, %v1321, %v1325
        %v1330 = vand.u32 2147483647, %v1320
        %vm1331 = vcmp.eq.f32.partialorder %v1330, 8.507059e+37
        %v1332 = vand.u32 %v1320, 2147483648
        %v1333 = vor.u32 1.1754944e-38, %v1332
        %v1334 = vsel %vm1331, %v1333, %v1329
        %v1335 = vmul.f32 %v1310, %v1334
        %v1336 = vmin.f32 %v1335, 1.0
        %v1337 = vmax.f32 %v1336, -1.0
        %v1338 = vmul.f32 %v565, %v565
        %v1339 = vmin.f32 16.0, %v1338
        %v1340 = vmul.f32 %v1339, 2.1237322e-06
        %v1341 = vadd.f32 %v1340, 0.00028619796
        %v1342 = vmul.f32 %v1339, %v1341
        %v1343 = vadd.f32 %v1342, 0.0036580483
        %v1344 = vmul.f32 %v1339, %v1343
        %v1345 = vadd.f32 %v1344, 0.05243302
        %v1346 = vmul.f32 %v1339, %v1345
        %v1347 = vadd.f32 %v1346, 0.18741608
        %v1348 = vmul.f32 %v1339, %v1347
        %v1349 = vadd.f32 %v1348, 1.1283791
        %v1350 = vmul.f32 %v565, %v1349
        %v1351 = vmul.f32 %v1339, 3.8918573e-05
        %v1352 = vadd.f32 %v1351, 0.001143296
        %v1353 = vmul.f32 %v1339, %v1352
        %v1354 = vadd.f32 %v1353, 0.014752088
        %v1355 = vmul.f32 %v1339, %v1354
        %v1356 = vadd.f32 %v1355, 0.112945676
        %v1357 = vmul.f32 %v1339, %v1356
        %v1358 = vadd.f32 %v1357, 0.4994258
        %v1359 = vmul.f32 %v1339, %v1358
        %v1360 = vadd.f32 %v1359, 1.0
        %v1361 = vrcp.pop %v1360
        %v1362 = vmul.f32 %v1360, %v1361
        %v1363 = vsub.f32 1.0, %v1362
        %v1364 = vmul.f32 %v1361, %v1363
        %v1365 = vadd.f32 %v1361, %v1364
        %vm1366 = vweird.f32 %v1360
        %vm1367 = vweird.f32 %v1361
        %vm1368 = vmor %vm1366, %vm1367
        %v1369 = vsel %vm1368, %v1361, %v1365
        %v1370 = vand.u32 2147483647, %v1360
        %vm1371 = vcmp.eq.f32.partialorder %v1370, 8.507059e+37
        %v1372 = vand.u32 %v1360, 2147483648
        %v1373 = vor.u32 1.1754944e-38, %v1372
        %v1374 = vsel %vm1371, %v1373, %v1369
        %v1375 = vmul.f32 %v1350, %v1374
        %v1376 = vmin.f32 %v1375, 1.0
        %v1377 = vmax.f32 %v1376, -1.0
        %v1378 = vmul.f32 %v566, %v566
        %v1379 = vmin.f32 16.0, %v1378
        %v1380 = vmul.f32 %v1379, 2.1237322e-06
        %v1381 = vadd.f32 %v1380, 0.00028619796
        %v1382 = vmul.f32 %v1379, %v1381
        %v1383 = vadd.f32 %v1382, 0.0036580483
        %v1384 = vmul.f32 %v1379, %v1383
        %v1385 = vadd.f32 %v1384, 0.05243302
        %v1386 = vmul.f32 %v1379, %v1385
        %v1387 = vadd.f32 %v1386, 0.18741608
        %v1388 = vmul.f32 %v1379, %v1387
        %v1389 = vadd.f32 %v1388, 1.1283791
        %v1390 = vmul.f32 %v566, %v1389
        %v1391 = vmul.f32 %v1379, 3.8918573e-05
        %v1392 = vadd.f32 %v1391, 0.001143296
        %v1393 = vmul.f32 %v1379, %v1392
        %v1394 = vadd.f32 %v1393, 0.014752088
        %v1395 = vmul.f32 %v1379, %v1394
        %v1396 = vadd.f32 %v1395, 0.112945676
        %v1397 = vmul.f32 %v1379, %v1396
        %v1398 = vadd.f32 %v1397, 0.4994258
        %v1399 = vmul.f32 %v1379, %v1398
        %v1400 = vadd.f32 %v1399, 1.0
        %v1401 = vrcp.pop %v1400
        %v1402 = vmul.f32 %v1400, %v1401
        %v1403 = vsub.f32 1.0, %v1402
        %v1404 = vmul.f32 %v1401, %v1403
        %v1405 = vadd.f32 %v1401, %v1404
        %vm1406 = vweird.f32 %v1400
        %vm1407 = vweird.f32 %v1401
        %vm1408 = vmor %vm1406, %vm1407
        %v1409 = vsel %vm1408, %v1401, %v1405
        %v1410 = vand.u32 2147483647, %v1400
        %vm1411 = vcmp.eq.f32.partialorder %v1410, 8.507059e+37
        %v1412 = vand.u32 %v1400, 2147483648
        %v1413 = vor.u32 1.1754944e-38, %v1412
        %v1414 = vsel %vm1411, %v1413, %v1409
        %v1415 = vmul.f32 %v1390, %v1414
        %v1416 = vmin.f32 %v1415, 1.0
        %v1417 = vmax.f32 %v1416, -1.0
        %v1418 = vmul.f32 %v567, %v567
        %v1419 = vmin.f32 16.0, %v1418
        %v1420 = vmul.f32 %v1419, 2.1237322e-06
        %v1421 = vadd.f32 %v1420, 0.00028619796
        %v1422 = vmul.f32 %v1419, %v1421
        %v1423 = vadd.f32 %v1422, 0.0036580483
        %v1424 = vmul.f32 %v1419, %v1423
        %v1425 = vadd.f32 %v1424, 0.05243302
        %v1426 = vmul.f32 %v1419, %v1425
        %v1427 = vadd.f32 %v1426, 0.18741608
        %v1428 = vmul.f32 %v1419, %v1427
        %v1429 = vadd.f32 %v1428, 1.1283791
        %v1430 = vmul.f32 %v567, %v1429
        %v1431 = vmul.f32 %v1419, 3.8918573e-05
        %v1432 = vadd.f32 %v1431, 0.001143296
        %v1433 = vmul.f32 %v1419, %v1432
        %v1434 = vadd.f32 %v1433, 0.014752088
        %v1435 = vmul.f32 %v1419, %v1434
        %v1436 = vadd.f32 %v1435, 0.112945676
        %v1437 = vmul.f32 %v1419, %v1436
        %v1438 = vadd.f32 %v1437, 0.4994258
        %v1439 = vmul.f32 %v1419, %v1438
        %v1440 = vadd.f32 %v1439, 1.0
        %v1441 = vrcp.pop %v1440
        %v1442 = vmul.f32 %v1440, %v1441
        %v1443 = vsub.f32 1.0, %v1442
        %v1444 = vmul.f32 %v1441, %v1443
        %v1445 = vadd.f32 %v1441, %v1444
        %vm1446 = vweird.f32 %v1440
        %vm1447 = vweird.f32 %v1441
        %vm1448 = vmor %vm1446, %vm1447
        %v1449 = vsel %vm1448, %v1441, %v1445
        %v1450 = vand.u32 2147483647, %v1440
        %vm1451 = vcmp.eq.f32.partialorder %v1450, 8.507059e+37
        %v1452 = vand.u32 %v1440, 2147483648
        %v1453 = vor.u32 1.1754944e-38, %v1452
        %v1454 = vsel %vm1451, %v1453, %v1449
        %v1455 = vmul.f32 %v1430, %v1454
        %v1456 = vmin.f32 %v1455, 1.0
        %v1457 = vmax.f32 %v1456, -1.0
        %v1458 = vmul.f32 %v568, %v568
        %v1459 = vmin.f32 16.0, %v1458
        %v1460 = vmul.f32 %v1459, 2.1237322e-06
        %v1461 = vadd.f32 %v1460, 0.00028619796
        %v1462 = vmul.f32 %v1459, %v1461
        %v1463 = vadd.f32 %v1462, 0.0036580483
        %v1464 = vmul.f32 %v1459, %v1463
        %v1465 = vadd.f32 %v1464, 0.05243302
        %v1466 = vmul.f32 %v1459, %v1465
        %v1467 = vadd.f32 %v1466, 0.18741608
        %v1468 = vmul.f32 %v1459, %v1467
        %v1469 = vadd.f32 %v1468, 1.1283791
        %v1470 = vmul.f32 %v568, %v1469
        %v1471 = vmul.f32 %v1459, 3.8918573e-05
        %v1472 = vadd.f32 %v1471, 0.001143296
        %v1473 = vmul.f32 %v1459, %v1472
        %v1474 = vadd.f32 %v1473, 0.014752088
        %v1475 = vmul.f32 %v1459, %v1474
        %v1476 = vadd.f32 %v1475, 0.112945676
        %v1477 = vmul.f32 %v1459, %v1476
        %v1478 = vadd.f32 %v1477, 0.4994258
        %v1479 = vmul.f32 %v1459, %v1478
        %v1480 = vadd.f32 %v1479, 1.0
        %v1481 = vrcp.pop %v1480
        %v1482 = vmul.f32 %v1480, %v1481
        %v1483 = vsub.f32 1.0, %v1482
        %v1484 = vmul.f32 %v1481, %v1483
        %v1485 = vadd.f32 %v1481, %v1484
        %vm1486 = vweird.f32 %v1480
        %vm1487 = vweird.f32 %v1481
        %vm1488 = vmor %vm1486, %vm1487
        %v1489 = vsel %vm1488, %v1481, %v1485
        %v1490 = vand.u32 2147483647, %v1480
        %vm1491 = vcmp.eq.f32.partialorder %v1490, 8.507059e+37
        %v1492 = vand.u32 %v1480, 2147483648
        %v1493 = vor.u32 1.1754944e-38, %v1492
        %v1494 = vsel %vm1491, %v1493, %v1489
        %v1495 = vmul.f32 %v1470, %v1494
        %v1496 = vmin.f32 %v1495, 1.0
        %v1497 = vmax.f32 %v1496, -1.0
        %v1498 = vmul.f32 %v569, %v569
        %v1499 = vmin.f32 16.0, %v1498
        %v1500 = vmul.f32 %v1499, 2.1237322e-06
        %v1501 = vadd.f32 %v1500, 0.00028619796
        %v1502 = vmul.f32 %v1499, %v1501
        %v1503 = vadd.f32 %v1502, 0.0036580483
        %v1504 = vmul.f32 %v1499, %v1503
        %v1505 = vadd.f32 %v1504, 0.05243302
        %v1506 = vmul.f32 %v1499, %v1505
        %v1507 = vadd.f32 %v1506, 0.18741608
        %v1508 = vmul.f32 %v1499, %v1507
        %v1509 = vadd.f32 %v1508, 1.1283791
        %v1510 = vmul.f32 %v569, %v1509
        %v1511 = vmul.f32 %v1499, 3.8918573e-05
        %v1512 = vadd.f32 %v1511, 0.001143296
        %v1513 = vmul.f32 %v1499, %v1512
        %v1514 = vadd.f32 %v1513, 0.014752088
        %v1515 = vmul.f32 %v1499, %v1514
        %v1516 = vadd.f32 %v1515, 0.112945676
        %v1517 = vmul.f32 %v1499, %v1516
        %v1518 = vadd.f32 %v1517, 0.4994258
        %v1519 = vmul.f32 %v1499, %v1518
        %v1520 = vadd.f32 %v1519, 1.0
        %v1521 = vrcp.pop %v1520
        %v1522 = vmul.f32 %v1520, %v1521
        %v1523 = vsub.f32 1.0, %v1522
        %v1524 = vmul.f32 %v1521, %v1523
        %v1525 = vadd.f32 %v1521, %v1524
        %vm1526 = vweird.f32 %v1520
        %vm1527 = vweird.f32 %v1521
        %vm1528 = vmor %vm1526, %vm1527
        %v1529 = vsel %vm1528, %v1521, %v1525
        %v1530 = vand.u32 2147483647, %v1520
        %vm1531 = vcmp.eq.f32.partialorder %v1530, 8.507059e+37
        %v1532 = vand.u32 %v1520, 2147483648
        %v1533 = vor.u32 1.1754944e-38, %v1532
        %v1534 = vsel %vm1531, %v1533, %v1529
        %v1535 = vmul.f32 %v1510, %v1534
        %v1536 = vmin.f32 %v1535, 1.0
        %v1537 = vmax.f32 %v1536, -1.0
        %v1538 = vmul.f32 %v570, %v570
        %v1539 = vmin.f32 16.0, %v1538
        %v1540 = vmul.f32 %v1539, 2.1237322e-06
        %v1541 = vadd.f32 %v1540, 0.00028619796
        %v1542 = vmul.f32 %v1539, %v1541
        %v1543 = vadd.f32 %v1542, 0.0036580483
        %v1544 = vmul.f32 %v1539, %v1543
        %v1545 = vadd.f32 %v1544, 0.05243302
        %v1546 = vmul.f32 %v1539, %v1545
        %v1547 = vadd.f32 %v1546, 0.18741608
        %v1548 = vmul.f32 %v1539, %v1547
        %v1549 = vadd.f32 %v1548, 1.1283791
        %v1550 = vmul.f32 %v570, %v1549
        %v1551 = vmul.f32 %v1539, 3.8918573e-05
        %v1552 = vadd.f32 %v1551, 0.001143296
        %v1553 = vmul.f32 %v1539, %v1552
        %v1554 = vadd.f32 %v1553, 0.014752088
        %v1555 = vmul.f32 %v1539, %v1554
        %v1556 = vadd.f32 %v1555, 0.112945676
        %v1557 = vmul.f32 %v1539, %v1556
        %v1558 = vadd.f32 %v1557, 0.4994258
        %v1559 = vmul.f32 %v1539, %v1558
        %v1560 = vadd.f32 %v1559, 1.0
        %v1561 = vrcp.pop %v1560
        %v1562 = vmul.f32 %v1560, %v1561
        %v1563 = vsub.f32 1.0, %v1562
        %v1564 = vmul.f32 %v1561, %v1563
        %v1565 = vadd.f32 %v1561, %v1564
        %vm1566 = vweird.f32 %v1560
        %vm1567 = vweird.f32 %v1561
        %vm1568 = vmor %vm1566, %vm1567
        %v1569 = vsel %vm1568, %v1561, %v1565
        %v1570 = vand.u32 2147483647, %v1560
        %vm1571 = vcmp.eq.f32.partialorder %v1570, 8.507059e+37
        %v1572 = vand.u32 %v1560, 2147483648
        %v1573 = vor.u32 1.1754944e-38, %v1572
        %v1574 = vsel %vm1571, %v1573, %v1569
        %v1575 = vmul.f32 %v1550, %v1574
        %v1576 = vmin.f32 %v1575, 1.0
        %v1577 = vmax.f32 %v1576, -1.0
        %v1578 = vmul.f32 %v571, %v571
        %v1579 = vmin.f32 16.0, %v1578
        %v1580 = vmul.f32 %v1579, 2.1237322e-06
        %v1581 = vadd.f32 %v1580, 0.00028619796
        %v1582 = vmul.f32 %v1579, %v1581
        %v1583 = vadd.f32 %v1582, 0.0036580483
        %v1584 = vmul.f32 %v1579, %v1583
        %v1585 = vadd.f32 %v1584, 0.05243302
        %v1586 = vmul.f32 %v1579, %v1585
        %v1587 = vadd.f32 %v1586, 0.18741608
        %v1588 = vmul.f32 %v1579, %v1587
        %v1589 = vadd.f32 %v1588, 1.1283791
        %v1590 = vmul.f32 %v571, %v1589
        %v1591 = vmul.f32 %v1579, 3.8918573e-05
        %v1592 = vadd.f32 %v1591, 0.001143296
        %v1593 = vmul.f32 %v1579, %v1592
        %v1594 = vadd.f32 %v1593, 0.014752088
        %v1595 = vmul.f32 %v1579, %v1594
        %v1596 = vadd.f32 %v1595, 0.112945676
        %v1597 = vmul.f32 %v1579, %v1596
        %v1598 = vadd.f32 %v1597, 0.4994258
        %v1599 = vmul.f32 %v1579, %v1598
        %v1600 = vadd.f32 %v1599, 1.0
        %v1601 = vrcp.pop %v1600
        %v1602 = vmul.f32 %v1600, %v1601
        %v1603 = vsub.f32 1.0, %v1602
        %v1604 = vmul.f32 %v1601, %v1603
        %v1605 = vadd.f32 %v1601, %v1604
        %vm1606 = vweird.f32 %v1600
        %vm1607 = vweird.f32 %v1601
        %vm1608 = vmor %vm1606, %vm1607
        %v1609 = vsel %vm1608, %v1601, %v1605
        %v1610 = vand.u32 2147483647, %v1600
        %vm1611 = vcmp.eq.f32.partialorder %v1610, 8.507059e+37
        %v1612 = vand.u32 %v1600, 2147483648
        %v1613 = vor.u32 1.1754944e-38, %v1612
        %v1614 = vsel %vm1611, %v1613, %v1609
        %v1615 = vmul.f32 %v1590, %v1614
        %v1616 = vmin.f32 %v1615, 1.0
        %v1617 = vmax.f32 %v1616, -1.0
        %v1618 = vmul.f32 %v572, %v572
        %v1619 = vmin.f32 16.0, %v1618
        %v1620 = vmul.f32 %v1619, 2.1237322e-06
        %v1621 = vadd.f32 %v1620, 0.00028619796
        %v1622 = vmul.f32 %v1619, %v1621
        %v1623 = vadd.f32 %v1622, 0.0036580483
        %v1624 = vmul.f32 %v1619, %v1623
        %v1625 = vadd.f32 %v1624, 0.05243302
        %v1626 = vmul.f32 %v1619, %v1625
        %v1627 = vadd.f32 %v1626, 0.18741608
        %v1628 = vmul.f32 %v1619, %v1627
        %v1629 = vadd.f32 %v1628, 1.1283791
        %v1630 = vmul.f32 %v572, %v1629
        %v1631 = vmul.f32 %v1619, 3.8918573e-05
        %v1632 = vadd.f32 %v1631, 0.001143296
        %v1633 = vmul.f32 %v1619, %v1632
        %v1634 = vadd.f32 %v1633, 0.014752088
        %v1635 = vmul.f32 %v1619, %v1634
        %v1636 = vadd.f32 %v1635, 0.112945676
        %v1637 = vmul.f32 %v1619, %v1636
        %v1638 = vadd.f32 %v1637, 0.4994258
        %v1639 = vmul.f32 %v1619, %v1638
        %v1640 = vadd.f32 %v1639, 1.0
        %v1641 = vrcp.pop %v1640
        %v1642 = vmul.f32 %v1640, %v1641
        %v1643 = vsub.f32 1.0, %v1642
        %v1644 = vmul.f32 %v1641, %v1643
        %v1645 = vadd.f32 %v1641, %v1644
        %vm1646 = vweird.f32 %v1640
        %vm1647 = vweird.f32 %v1641
        %vm1648 = vmor %vm1646, %vm1647
        %v1649 = vsel %vm1648, %v1641, %v1645
        %v1650 = vand.u32 2147483647, %v1640
        %vm1651 = vcmp.eq.f32.partialorder %v1650, 8.507059e+37
        %v1652 = vand.u32 %v1640, 2147483648
        %v1653 = vor.u32 1.1754944e-38, %v1652
        %v1654 = vsel %vm1651, %v1653, %v1649
        %v1655 = vmul.f32 %v1630, %v1654
        %v1656 = vmin.f32 %v1655, 1.0
        %v1657 = vmax.f32 %v1656, -1.0
        %v1658 = vmul.f32 %v573, %v573
        %v1659 = vmin.f32 16.0, %v1658
        %v1660 = vmul.f32 %v1659, 2.1237322e-06
        %v1661 = vadd.f32 %v1660, 0.00028619796
        %v1662 = vmul.f32 %v1659, %v1661
        %v1663 = vadd.f32 %v1662, 0.0036580483
        %v1664 = vmul.f32 %v1659, %v1663
        %v1665 = vadd.f32 %v1664, 0.05243302
        %v1666 = vmul.f32 %v1659, %v1665
        %v1667 = vadd.f32 %v1666, 0.18741608
        %v1668 = vmul.f32 %v1659, %v1667
        %v1669 = vadd.f32 %v1668, 1.1283791
        %v1670 = vmul.f32 %v573, %v1669
        %v1671 = vmul.f32 %v1659, 3.8918573e-05
        %v1672 = vadd.f32 %v1671, 0.001143296
        %v1673 = vmul.f32 %v1659, %v1672
        %v1674 = vadd.f32 %v1673, 0.014752088
        %v1675 = vmul.f32 %v1659, %v1674
        %v1676 = vadd.f32 %v1675, 0.112945676
        %v1677 = vmul.f32 %v1659, %v1676
        %v1678 = vadd.f32 %v1677, 0.4994258
        %v1679 = vmul.f32 %v1659, %v1678
        %v1680 = vadd.f32 %v1679, 1.0
        %v1681 = vrcp.pop %v1680
        %v1682 = vmul.f32 %v1680, %v1681
        %v1683 = vsub.f32 1.0, %v1682
        %v1684 = vmul.f32 %v1681, %v1683
        %v1685 = vadd.f32 %v1681, %v1684
        %vm1686 = vweird.f32 %v1680
        %vm1687 = vweird.f32 %v1681
        %vm1688 = vmor %vm1686, %vm1687
        %v1689 = vsel %vm1688, %v1681, %v1685
        %v1690 = vand.u32 2147483647, %v1680
        %vm1691 = vcmp.eq.f32.partialorder %v1690, 8.507059e+37
        %v1692 = vand.u32 %v1680, 2147483648
        %v1693 = vor.u32 1.1754944e-38, %v1692
        %v1694 = vsel %vm1691, %v1693, %v1689
        %v1695 = vmul.f32 %v1670, %v1694
        %v1696 = vmin.f32 %v1695, 1.0
        %v1697 = vmax.f32 %v1696, -1.0
        %v1698 = vmul.f32 %v574, %v574
        %v1699 = vmin.f32 16.0, %v1698
        %v1700 = vmul.f32 %v1699, 2.1237322e-06
        %v1701 = vadd.f32 %v1700, 0.00028619796
        %v1702 = vmul.f32 %v1699, %v1701
        %v1703 = vadd.f32 %v1702, 0.0036580483
        %v1704 = vmul.f32 %v1699, %v1703
        %v1705 = vadd.f32 %v1704, 0.05243302
        %v1706 = vmul.f32 %v1699, %v1705
        %v1707 = vadd.f32 %v1706, 0.18741608
        %v1708 = vmul.f32 %v1699, %v1707
        %v1709 = vadd.f32 %v1708, 1.1283791
        %v1710 = vmul.f32 %v574, %v1709
        %v1711 = vmul.f32 %v1699, 3.8918573e-05
        %v1712 = vadd.f32 %v1711, 0.001143296
        %v1713 = vmul.f32 %v1699, %v1712
        %v1714 = vadd.f32 %v1713, 0.014752088
        %v1715 = vmul.f32 %v1699, %v1714
        %v1716 = vadd.f32 %v1715, 0.112945676
        %v1717 = vmul.f32 %v1699, %v1716
        %v1718 = vadd.f32 %v1717, 0.4994258
        %v1719 = vmul.f32 %v1699, %v1718
        %v1720 = vadd.f32 %v1719, 1.0
        %v1721 = vrcp.pop %v1720
        %v1722 = vmul.f32 %v1720, %v1721
        %v1723 = vsub.f32 1.0, %v1722
        %v1724 = vmul.f32 %v1721, %v1723
        %v1725 = vadd.f32 %v1721, %v1724
        %vm1726 = vweird.f32 %v1720
        %vm1727 = vweird.f32 %v1721
        %vm1728 = vmor %vm1726, %vm1727
        %v1729 = vsel %vm1728, %v1721, %v1725
        %v1730 = vand.u32 2147483647, %v1720
        %vm1731 = vcmp.eq.f32.partialorder %v1730, 8.507059e+37
        %v1732 = vand.u32 %v1720, 2147483648
        %v1733 = vor.u32 1.1754944e-38, %v1732
        %v1734 = vsel %vm1731, %v1733, %v1729
        %v1735 = vmul.f32 %v1710, %v1734
        %v1736 = vmin.f32 %v1735, 1.0
        %v1737 = vmax.f32 %v1736, -1.0
        %v1738 = vmul.f32 %v575, %v575
        %v1739 = vmin.f32 16.0, %v1738
        %v1740 = vmul.f32 %v1739, 2.1237322e-06
        %v1741 = vadd.f32 %v1740, 0.00028619796
        %v1742 = vmul.f32 %v1739, %v1741
        %v1743 = vadd.f32 %v1742, 0.0036580483
        %v1744 = vmul.f32 %v1739, %v1743
        %v1745 = vadd.f32 %v1744, 0.05243302
        %v1746 = vmul.f32 %v1739, %v1745
        %v1747 = vadd.f32 %v1746, 0.18741608
        %v1748 = vmul.f32 %v1739, %v1747
        %v1749 = vadd.f32 %v1748, 1.1283791
        %v1750 = vmul.f32 %v575, %v1749
        %v1751 = vmul.f32 %v1739, 3.8918573e-05
        %v1752 = vadd.f32 %v1751, 0.001143296
        %v1753 = vmul.f32 %v1739, %v1752
        %v1754 = vadd.f32 %v1753, 0.014752088
        %v1755 = vmul.f32 %v1739, %v1754
        %v1756 = vadd.f32 %v1755, 0.112945676
        %v1757 = vmul.f32 %v1739, %v1756
        %v1758 = vadd.f32 %v1757, 0.4994258
        %v1759 = vmul.f32 %v1739, %v1758
        %v1760 = vadd.f32 %v1759, 1.0
        %v1761 = vrcp.pop %v1760
        %v1762 = vmul.f32 %v1760, %v1761
        %v1763 = vsub.f32 1.0, %v1762
        %v1764 = vmul.f32 %v1761, %v1763
        %v1765 = vadd.f32 %v1761, %v1764
        %vm1766 = vweird.f32 %v1760
        %vm1767 = vweird.f32 %v1761
        %vm1768 = vmor %vm1766, %vm1767
        %v1769 = vsel %vm1768, %v1761, %v1765
        %v1770 = vand.u32 2147483647, %v1760
        %vm1771 = vcmp.eq.f32.partialorder %v1770, 8.507059e+37
        %v1772 = vand.u32 %v1760, 2147483648
        %v1773 = vor.u32 1.1754944e-38, %v1772
        %v1774 = vsel %vm1771, %v1773, %v1769
        %v1775 = vmul.f32 %v1750, %v1774
        %v1776 = vmin.f32 %v1775, 1.0
        %v1777 = vmax.f32 %v1776, -1.0
        %v1778 = vmul.f32 %v576, %v576
        %v1779 = vmin.f32 16.0, %v1778
        %v1780 = vmul.f32 %v1779, 2.1237322e-06
        %v1781 = vadd.f32 %v1780, 0.00028619796
        %v1782 = vmul.f32 %v1779, %v1781
        %v1783 = vadd.f32 %v1782, 0.0036580483
        %v1784 = vmul.f32 %v1779, %v1783
        %v1785 = vadd.f32 %v1784, 0.05243302
        %v1786 = vmul.f32 %v1779, %v1785
        %v1787 = vadd.f32 %v1786, 0.18741608
        %v1788 = vmul.f32 %v1779, %v1787
        %v1789 = vadd.f32 %v1788, 1.1283791
        %v1790 = vmul.f32 %v576, %v1789
        %v1791 = vmul.f32 %v1779, 3.8918573e-05
        %v1792 = vadd.f32 %v1791, 0.001143296
        %v1793 = vmul.f32 %v1779, %v1792
        %v1794 = vadd.f32 %v1793, 0.014752088
        %v1795 = vmul.f32 %v1779, %v1794
        %v1796 = vadd.f32 %v1795, 0.112945676
        %v1797 = vmul.f32 %v1779, %v1796
        %v1798 = vadd.f32 %v1797, 0.4994258
        %v1799 = vmul.f32 %v1779, %v1798
        %v1800 = vadd.f32 %v1799, 1.0
        %v1801 = vrcp.pop %v1800
        %v1802 = vmul.f32 %v1800, %v1801
        %v1803 = vsub.f32 1.0, %v1802
        %v1804 = vmul.f32 %v1801, %v1803
        %v1805 = vadd.f32 %v1801, %v1804
        %vm1806 = vweird.f32 %v1800
        %vm1807 = vweird.f32 %v1801
        %vm1808 = vmor %vm1806, %vm1807
        %v1809 = vsel %vm1808, %v1801, %v1805
        %v1810 = vand.u32 2147483647, %v1800
        %vm1811 = vcmp.eq.f32.partialorder %v1810, 8.507059e+37
        %v1812 = vand.u32 %v1800, 2147483648
        %v1813 = vor.u32 1.1754944e-38, %v1812
        %v1814 = vsel %vm1811, %v1813, %v1809
        %v1815 = vmul.f32 %v1790, %v1814
        %v1816 = vmin.f32 %v1815, 1.0
        %v1817 = vmax.f32 %v1816, -1.0
        %v1818 = vmul.f32 %v577, %v577
        %v1819 = vmin.f32 16.0, %v1818
        %v1820 = vmul.f32 %v1819, 2.1237322e-06
        %v1821 = vadd.f32 %v1820, 0.00028619796
        %v1822 = vmul.f32 %v1819, %v1821
        %v1823 = vadd.f32 %v1822, 0.0036580483
        %v1824 = vmul.f32 %v1819, %v1823
        %v1825 = vadd.f32 %v1824, 0.05243302
        %v1826 = vmul.f32 %v1819, %v1825
        %v1827 = vadd.f32 %v1826, 0.18741608
        %v1828 = vmul.f32 %v1819, %v1827
        %v1829 = vadd.f32 %v1828, 1.1283791
        %v1830 = vmul.f32 %v577, %v1829
        %v1831 = vmul.f32 %v1819, 3.8918573e-05
        %v1832 = vadd.f32 %v1831, 0.001143296
        %v1833 = vmul.f32 %v1819, %v1832
        %v1834 = vadd.f32 %v1833, 0.014752088
        %v1835 = vmul.f32 %v1819, %v1834
        %v1836 = vadd.f32 %v1835, 0.112945676
        %v1837 = vmul.f32 %v1819, %v1836
        %v1838 = vadd.f32 %v1837, 0.4994258
        %v1839 = vmul.f32 %v1819, %v1838
        %v1840 = vadd.f32 %v1839, 1.0
        %v1841 = vrcp.pop %v1840
        %v1842 = vmul.f32 %v1840, %v1841
        %v1843 = vsub.f32 1.0, %v1842
        %v1844 = vmul.f32 %v1841, %v1843
        %v1845 = vadd.f32 %v1841, %v1844
        %vm1846 = vweird.f32 %v1840
        %vm1847 = vweird.f32 %v1841
        %vm1848 = vmor %vm1846, %vm1847
        %v1849 = vsel %vm1848, %v1841, %v1845
        %v1850 = vand.u32 2147483647, %v1840
        %vm1851 = vcmp.eq.f32.partialorder %v1850, 8.507059e+37
        %v1852 = vand.u32 %v1840, 2147483648
        %v1853 = vor.u32 1.1754944e-38, %v1852
        %v1854 = vsel %vm1851, %v1853, %v1849
        %v1855 = vmul.f32 %v1830, %v1854
        %v1856 = vmin.f32 %v1855, 1.0
        %v1857 = vmax.f32 %v1856, -1.0
        %v1858 = vadd.f32 %v617, 1.0
        %v1859 = vadd.f32 %v657, 1.0
        %v1860 = vadd.f32 %v697, 1.0
        %v1861 = vadd.f32 %v737, 1.0
        %v1862 = vadd.f32 %v777, 1.0
        %v1863 = vadd.f32 %v817, 1.0
        %v1864 = vadd.f32 %v857, 1.0
        %v1865 = vadd.f32 %v897, 1.0
        %v1866 = vadd.f32 %v937, 1.0
        %v1867 = vadd.f32 %v977, 1.0
        %v1868 = vadd.f32 %v1017, 1.0
        %v1869 = vadd.f32 %v1057, 1.0
        %v1870 = vadd.f32 %v1097, 1.0
        %v1871 = vadd.f32 %v1137, 1.0
        %v1872 = vadd.f32 %v1177, 1.0
        %v1873 = vadd.f32 %v1217, 1.0
        %v1874 = vadd.f32 %v1257, 1.0
        %v1875 = vadd.f32 %v1297, 1.0
        %v1876 = vadd.f32 %v1337, 1.0
        %v1877 = vadd.f32 %v1377, 1.0
        %v1878 = vadd.f32 %v1417, 1.0
        %v1879 = vadd.f32 %v1457, 1.0
        %v1880 = vadd.f32 %v1497, 1.0
        %v1881 = vadd.f32 %v1537, 1.0
        %v1882 = vadd.f32 %v1577, 1.0
        %v1883 = vadd.f32 %v1617, 1.0
        %v1884 = vadd.f32 %v1657, 1.0
        %v1885 = vadd.f32 %v1697, 1.0
        %v1886 = vadd.f32 %v1737, 1.0
        %v1887 = vadd.f32 %v1777, 1.0
        %v1888 = vadd.f32 %v1817, 1.0
        %v1889 = vadd.f32 %v1857, 1.0
        %v1890 = vmul.f32 %v514, %v1858
        %v1891 = vmul.f32 %v515, %v1859
        %v1892 = vmul.f32 %v516, %v1860
        %v1893 = vmul.f32 %v517, %v1861
        %v1894 = vmul.f32 %v518, %v1862
        %v1895 = vmul.f32 %v519, %v1863
        %v1896 = vmul.f32 %v520, %v1864
        %v1897 = vmul.f32 %v521, %v1865
        %v1898 = vmul.f32 %v522, %v1866
        %v1899 = vmul.f32 %v523, %v1867
        %v1900 = vmul.f32 %v524, %v1868
        %v1901 = vmul.f32 %v525, %v1869
        %v1902 = vmul.f32 %v526, %v1870
        %v1903 = vmul.f32 %v527, %v1871
        %v1904 = vmul.f32 %v528, %v1872
        %v1905 = vmul.f32 %v529, %v1873
        %v1906 = vmul.f32 %v530, %v1874
        %v1907 = vmul.f32 %v531, %v1875
        %v1908 = vmul.f32 %v532, %v1876
        %v1909 = vmul.f32 %v533, %v1877
        %v1910 = vmul.f32 %v534, %v1878
        %v1911 = vmul.f32 %v535, %v1879
        %v1912 = vmul.f32 %v536, %v1880
        %v1913 = vmul.f32 %v537, %v1881
        %v1914 = vmul.f32 %v538, %v1882
        %v1915 = vmul.f32 %v539, %v1883
        %v1916 = vmul.f32 %v540, %v1884
        %v1917 = vmul.f32 %v541, %v1885
        %v1918 = vmul.f32 %v542, %v1886
        %v1919 = vmul.f32 %v543, %v1887
        %v1920 = vmul.f32 %v544, %v1888
        %v1921 = vmul.f32 %v545, %v1889
        %v1922 = vpack.c.bf16 %v1892, %v1890
        %v1923 = vpack.c.bf16 %v1893, %v1891
        %v1924 = vpack.c.bf16 %v1896, %v1894
        %v1925 = vpack.c.bf16 %v1897, %v1895
        %v1926 = vpack.c.bf16 %v1900, %v1898
        %v1927 = vpack.c.bf16 %v1901, %v1899
        %v1928 = vpack.c.bf16 %v1904, %v1902
        %v1929 = vpack.c.bf16 %v1905, %v1903
        %v1930 = vpack.c.bf16 %v1908, %v1906
        %v1931 = vpack.c.bf16 %v1909, %v1907
        %v1932 = vpack.c.bf16 %v1912, %v1910
        %v1933 = vpack.c.bf16 %v1913, %v1911
        %v1934 = vpack.c.bf16 %v1916, %v1914
        %v1935 = vpack.c.bf16 %v1917, %v1915
        %v1936 = vpack.c.bf16 %v1920, %v1918
        %v1937 = vpack.c.bf16 %v1921, %v1919
        %v1938 = vld [vmem:[%s3] sm:$0xff]
        %v1939 = vld [vmem:[%s3 + $0x8] sm:$0xff]
        %v1940 = vld [vmem:[%s3 + $0x10] sm:$0xff]
        %v1941 = vld [vmem:[%s3 + $0x18] sm:$0xff]
        %v1942 = vld [vmem:[%s3 + $0x20] sm:$0xff]
        %v1943 = vld [vmem:[%s3 + $0x28] sm:$0xff]
        %v1944 = vld [vmem:[%s3 + $0x30] sm:$0xff]
        %v1945 = vld [vmem:[%s3 + $0x38] sm:$0xff]
        %v1946 = vld [vmem:[%s3 + $0x40] sm:$0xff]
        %v1947 = vld [vmem:[%s3 + $0x48] sm:$0xff]
        %v1948 = vld [vmem:[%s3 + $0x50] sm:$0xff]
        %v1949 = vld [vmem:[%s3 + $0x58] sm:$0xff]
        %v1950 = vld [vmem:[%s3 + $0x60] sm:$0xff]
        %v1951 = vld [vmem:[%s3 + $0x68] sm:$0xff]
        %v1952 = vld [vmem:[%s3 + $0x70] sm:$0xff]
        %v1953 = vld [vmem:[%s3 + $0x78] sm:$0xff]
        %v1954 = vld [vmem:[%s3 + $0x80] sm:$0xff]
        %v1955 = vld [vmem:[%s3 + $0x88] sm:$0xff]
        %v1956 = vld [vmem:[%s3 + $0x90] sm:$0xff]
        %v1957 = vld [vmem:[%s3 + $0x98] sm:$0xff]
        %v1958 = vld [vmem:[%s3 + $0xa0] sm:$0xff]
        %v1959 = vld [vmem:[%s3 + $0xa8] sm:$0xff]
        %v1960 = vld [vmem:[%s3 + $0xb0] sm:$0xff]
        %v1961 = vld [vmem:[%s3 + $0xb8] sm:$0xff]
        %v1962 = vld [vmem:[%s3 + $0xc0] sm:$0xff]
        %v1963 = vld [vmem:[%s3 + $0xc8] sm:$0xff]
        %v1964 = vld [vmem:[%s3 + $0xd0] sm:$0xff]
        %v1965 = vld [vmem:[%s3 + $0xd8] sm:$0xff]
        %v1966 = vld [vmem:[%s3 + $0xe0] sm:$0xff]
        %v1967 = vld [vmem:[%s3 + $0xe8] sm:$0xff]
        %v1968 = vld [vmem:[%s3 + $0xf0] sm:$0xff]
        %v1969 = vld [vmem:[%s3 + $0xf8] sm:$0xff]
        %v1970 = vld [vmem:[#allocation5] sm:$0x3]
        %v1972 = vperm.slane %v1970, 0
        %v1973 = vperm.slane %v1970, 1
        %v2008 = vunpack.c.l.b16 %v1938
        %v2009 = vunpack.c.h.b16 %v1938
        %v2010 = vunpack.c.l.b16 %v1939
        %v2011 = vunpack.c.h.b16 %v1939
        %v2012 = vunpack.c.l.b16 %v1940
        %v2013 = vunpack.c.h.b16 %v1940
        %v2014 = vunpack.c.l.b16 %v1941
        %v2015 = vunpack.c.h.b16 %v1941
        %v2016 = vunpack.c.l.b16 %v1942
        %v2017 = vunpack.c.h.b16 %v1942
        %v2018 = vunpack.c.l.b16 %v1943
        %v2019 = vunpack.c.h.b16 %v1943
        %v2020 = vunpack.c.l.b16 %v1944
        %v2021 = vunpack.c.h.b16 %v1944
        %v2022 = vunpack.c.l.b16 %v1945
        %v2023 = vunpack.c.h.b16 %v1945
        %v2024 = vunpack.c.l.b16 %v1946
        %v2025 = vunpack.c.h.b16 %v1946
        %v2026 = vunpack.c.l.b16 %v1947
        %v2027 = vunpack.c.h.b16 %v1947
        %v2028 = vunpack.c.l.b16 %v1948
        %v2029 = vunpack.c.h.b16 %v1948
        %v2030 = vunpack.c.l.b16 %v1949
        %v2031 = vunpack.c.h.b16 %v1949
        %v2032 = vunpack.c.l.b16 %v1950
        %v2033 = vunpack.c.h.b16 %v1950
        %v2034 = vunpack.c.l.b16 %v1951
        %v2035 = vunpack.c.h.b16 %v1951
        %v2036 = vunpack.c.l.b16 %v1952
        %v2037 = vunpack.c.h.b16 %v1952
        %v2038 = vunpack.c.l.b16 %v1953
        %v2039 = vunpack.c.h.b16 %v1953
        %v2040 = vunpack.c.l.b16 %v1954
        %v2041 = vunpack.c.h.b16 %v1954
        %v2042 = vunpack.c.l.b16 %v1955
        %v2043 = vunpack.c.h.b16 %v1955
        %v2044 = vunpack.c.l.b16 %v1956
        %v2045 = vunpack.c.h.b16 %v1956
        %v2046 = vunpack.c.l.b16 %v1957
        %v2047 = vunpack.c.h.b16 %v1957
        %v2048 = vunpack.c.l.b16 %v1958
        %v2049 = vunpack.c.h.b16 %v1958
        %v2050 = vunpack.c.l.b16 %v1959
        %v2051 = vunpack.c.h.b16 %v1959
        %v2052 = vunpack.c.l.b16 %v1960
        %v2053 = vunpack.c.h.b16 %v1960
        %v2054 = vunpack.c.l.b16 %v1961
        %v2055 = vunpack.c.h.b16 %v1961
        %v2056 = vunpack.c.l.b16 %v1962
        %v2057 = vunpack.c.h.b16 %v1962
        %v2058 = vunpack.c.l.b16 %v1963
        %v2059 = vunpack.c.h.b16 %v1963
        %v2060 = vunpack.c.l.b16 %v1964
        %v2061 = vunpack.c.h.b16 %v1964
        %v2062 = vunpack.c.l.b16 %v1965
        %v2063 = vunpack.c.h.b16 %v1965
        %v2064 = vunpack.c.l.b16 %v1966
        %v2065 = vunpack.c.h.b16 %v1966
        %v2066 = vunpack.c.l.b16 %v1967
        %v2067 = vunpack.c.h.b16 %v1967
        %v2068 = vunpack.c.l.b16 %v1968
        %v2069 = vunpack.c.h.b16 %v1968
        %v2070 = vunpack.c.l.b16 %v1969
        %v2071 = vunpack.c.h.b16 %v1969
        %v2072 = vpack.c.b16 %v2010, %v2008
        %v2073 = vpack.c.b16 %v2011, %v2009
        %v2074 = vpack.c.b16 %v2014, %v2012
        %v2075 = vpack.c.b16 %v2015, %v2013
        %v2076 = vpack.c.b16 %v2018, %v2016
        %v2077 = vpack.c.b16 %v2019, %v2017
        %v2078 = vpack.c.b16 %v2022, %v2020
        %v2079 = vpack.c.b16 %v2023, %v2021
        %v2080 = vpack.c.b16 %v2026, %v2024
        %v2081 = vpack.c.b16 %v2027, %v2025
        %v2082 = vpack.c.b16 %v2030, %v2028
        %v2083 = vpack.c.b16 %v2031, %v2029
        %v2084 = vpack.c.b16 %v2034, %v2032
        %v2085 = vpack.c.b16 %v2035, %v2033
        %v2086 = vpack.c.b16 %v2038, %v2036
        %v2087 = vpack.c.b16 %v2039, %v2037
        %v2088 = vpack.c.b16 %v2042, %v2040
        %v2089 = vpack.c.b16 %v2043, %v2041
        %v2090 = vpack.c.b16 %v2046, %v2044
        %v2091 = vpack.c.b16 %v2047, %v2045
        %v2092 = vpack.c.b16 %v2050, %v2048
        %v2093 = vpack.c.b16 %v2051, %v2049
        %v2094 = vpack.c.b16 %v2054, %v2052
        %v2095 = vpack.c.b16 %v2055, %v2053
        %v2096 = vpack.c.b16 %v2058, %v2056
        %v2097 = vpack.c.b16 %v2059, %v2057
        %v2098 = vpack.c.b16 %v2062, %v2060
        %v2099 = vpack.c.b16 %v2063, %v2061
        %v2100 = vpack.c.b16 %v2066, %v2064
        %v2101 = vpack.c.b16 %v2067, %v2065
        %v2102 = vpack.c.b16 %v2070, %v2068
        %v2103 = vpack.c.b16 %v2071, %v2069
        %2136 = vmatpush.bf16.msra.mxu0 %v2086
        %2137 = vmatpush.bf16.msra.mxu0 %v2084
        %2138 = vmatpush.bf16.msra.mxu0 %v2082
        %2139 = vmatpush.bf16.msra.mxu0 %v2080
        %2140 = vmatpush.bf16.msra.mxu0 %v2078
        %2141 = vmatpush.bf16.msra.mxu0 %v2076
        %2142 = vmatpush.bf16.msra.mxu0 %v2074
        %2143 = vmatpush.bf16.msra.mxu0 %v2072
        %2144 = vmatmul.bf16.gmra.mxu0 %v1922
        %v2145 = vpop.f32.mrf.mxu0
        %v2146 = vadd.f32 %v1972, %v2145
        %v2147 = vpop.f32.mrf.mxu0
        %v2148 = vadd.f32 %v1972, %v2147
        %2149 = vmatmul.bf16.gmra.mxu0 %v1924
        %v2150 = vpop.f32.mrf.mxu0
        %v2151 = vadd.f32 %v1972, %v2150
        %v2152 = vpop.f32.mrf.mxu0
        %v2153 = vadd.f32 %v1972, %v2152
        %2154 = vmatmul.bf16.gmra.mxu0 %v1926
        %v2155 = vpop.f32.mrf.mxu0
        %v2156 = vadd.f32 %v1972, %v2155
        %v2157 = vpop.f32.mrf.mxu0
        %v2158 = vadd.f32 %v1972, %v2157
        %2159 = vmatmul.bf16.gmra.mxu0 %v1928
        %v2160 = vpop.f32.mrf.mxu0
        %v2161 = vadd.f32 %v1972, %v2160
        %v2162 = vpop.f32.mrf.mxu0
        %v2163 = vadd.f32 %v1972, %v2162
        %2164 = vmatmul.bf16.gmra.mxu0 %v1930
        %v2165 = vpop.f32.mrf.mxu0
        %v2166 = vadd.f32 %v1972, %v2165
        %v2167 = vpop.f32.mrf.mxu0
        %v2168 = vadd.f32 %v1972, %v2167
        %2169 = vmatmul.bf16.gmra.mxu0 %v1932
        %v2170 = vpop.f32.mrf.mxu0
        %v2171 = vadd.f32 %v1972, %v2170
        %v2172 = vpop.f32.mrf.mxu0
        %v2173 = vadd.f32 %v1972, %v2172
        %2174 = vmatmul.bf16.gmra.mxu0 %v1934
        %v2175 = vpop.f32.mrf.mxu0
        %v2176 = vadd.f32 %v1972, %v2175
        %v2177 = vpop.f32.mrf.mxu0
        %v2178 = vadd.f32 %v1972, %v2177
        %2179 = vmatmul.bf16.gmra.mxu0 %v1936
        %v2180 = vpop.f32.mrf.mxu0
        %v2181 = vadd.f32 %v1972, %v2180
        %v2182 = vpop.f32.mrf.mxu0
        %v2183 = vadd.f32 %v1972, %v2182
        %2184 = vdwg.mxu0
        %2185 = vmatpush.bf16.msra.mxu0 %v2102
        %2186 = vmatpush.bf16.msra.mxu0 %v2100
        %2187 = vmatpush.bf16.msra.mxu0 %v2098
        %2188 = vmatpush.bf16.msra.mxu0 %v2096
        %2189 = vmatpush.bf16.msra.mxu0 %v2094
        %2190 = vmatpush.bf16.msra.mxu0 %v2092
        %2191 = vmatpush.bf16.msra.mxu0 %v2090
        %2192 = vmatpush.bf16.msra.mxu0 %v2088
        %2193 = vmatmul.bf16.gmra.mxu0 %v1923
        %v2194 = vpop.f32.mrf.mxu0
        %v2195 = vadd.f32 %v2146, %v2194
        %v2196 = vpop.f32.mrf.mxu0
        %v2197 = vadd.f32 %v2148, %v2196
        %2198 = vmatmul.bf16.gmra.mxu0 %v1925
        %v2199 = vpop.f32.mrf.mxu0
        %v2200 = vadd.f32 %v2151, %v2199
        %v2201 = vpop.f32.mrf.mxu0
        %v2202 = vadd.f32 %v2153, %v2201
        %2203 = vmatmul.bf16.gmra.mxu0 %v1927
        %v2204 = vpop.f32.mrf.mxu0
        %v2205 = vadd.f32 %v2156, %v2204
        %v2206 = vpop.f32.mrf.mxu0
        %v2207 = vadd.f32 %v2158, %v2206
        %2208 = vmatmul.bf16.gmra.mxu0 %v1929
        %v2209 = vpop.f32.mrf.mxu0
        %v2210 = vadd.f32 %v2161, %v2209
        %v2211 = vpop.f32.mrf.mxu0
        %v2212 = vadd.f32 %v2163, %v2211
        %2213 = vmatmul.bf16.gmra.mxu0 %v1931
        %v2214 = vpop.f32.mrf.mxu0
        %v2215 = vadd.f32 %v2166, %v2214
        %v2216 = vpop.f32.mrf.mxu0
        %v2217 = vadd.f32 %v2168, %v2216
        %2218 = vmatmul.bf16.gmra.mxu0 %v1933
        %v2219 = vpop.f32.mrf.mxu0
        %v2220 = vadd.f32 %v2171, %v2219
        %v2221 = vpop.f32.mrf.mxu0
        %v2222 = vadd.f32 %v2173, %v2221
        %2223 = vmatmul.bf16.gmra.mxu0 %v1935
        %v2224 = vpop.f32.mrf.mxu0
        %v2225 = vadd.f32 %v2176, %v2224
        %v2226 = vpop.f32.mrf.mxu0
        %v2227 = vadd.f32 %v2178, %v2226
        %2228 = vmatmul.bf16.gmra.mxu0 %v1937
        %v2229 = vpop.f32.mrf.mxu0
        %v2230 = vadd.f32 %v2181, %v2229
        %v2231 = vpop.f32.mrf.mxu0
        %v2232 = vadd.f32 %v2183, %v2231
        %2233 = vdwg.mxu0
        %2234 = vmatpush.bf16.msra.mxu0 %v2087
        %2235 = vmatpush.bf16.msra.mxu0 %v2085
        %2236 = vmatpush.bf16.msra.mxu0 %v2083
        %2237 = vmatpush.bf16.msra.mxu0 %v2081
        %2238 = vmatpush.bf16.msra.mxu0 %v2079
        %2239 = vmatpush.bf16.msra.mxu0 %v2077
        %2240 = vmatpush.bf16.msra.mxu0 %v2075
        %2241 = vmatpush.bf16.msra.mxu0 %v2073
        %2242 = vmatmul.bf16.gmra.mxu0 %v1922
        %v2243 = vpop.f32.mrf.mxu0
        %v2244 = vadd.f32 %v1973, %v2243
        %v2245 = vpop.f32.mrf.mxu0
        %v2246 = vadd.f32 %v1973, %v2245
        %2247 = vmatmul.bf16.gmra.mxu0 %v1924
        %v2248 = vpop.f32.mrf.mxu0
        %v2249 = vadd.f32 %v1973, %v2248
        %v2250 = vpop.f32.mrf.mxu0
        %v2251 = vadd.f32 %v1973, %v2250
        %2252 = vmatmul.bf16.gmra.mxu0 %v1926
        %v2253 = vpop.f32.mrf.mxu0
        %v2254 = vadd.f32 %v1973, %v2253
        %v2255 = vpop.f32.mrf.mxu0
        %v2256 = vadd.f32 %v1973, %v2255
        %2257 = vmatmul.bf16.gmra.mxu0 %v1928
        %v2258 = vpop.f32.mrf.mxu0
        %v2259 = vadd.f32 %v1973, %v2258
        %v2260 = vpop.f32.mrf.mxu0
        %v2261 = vadd.f32 %v1973, %v2260
        %2262 = vmatmul.bf16.gmra.mxu0 %v1930
        %v2263 = vpop.f32.mrf.mxu0
        %v2264 = vadd.f32 %v1973, %v2263
        %v2265 = vpop.f32.mrf.mxu0
        %v2266 = vadd.f32 %v1973, %v2265
        %2267 = vmatmul.bf16.gmra.mxu0 %v1932
        %v2268 = vpop.f32.mrf.mxu0
        %v2269 = vadd.f32 %v1973, %v2268
        %v2270 = vpop.f32.mrf.mxu0
        %v2271 = vadd.f32 %v1973, %v2270
        %2272 = vmatmul.bf16.gmra.mxu0 %v1934
        %v2273 = vpop.f32.mrf.mxu0
        %v2274 = vadd.f32 %v1973, %v2273
        %v2275 = vpop.f32.mrf.mxu0
        %v2276 = vadd.f32 %v1973, %v2275
        %2277 = vmatmul.bf16.gmra.mxu0 %v1936
        %v2278 = vpop.f32.mrf.mxu0
        %v2279 = vadd.f32 %v1973, %v2278
        %v2280 = vpop.f32.mrf.mxu0
        %v2281 = vadd.f32 %v1973, %v2280
        %2282 = vdwg.mxu0
        %2283 = vmatpush.bf16.msra.mxu0 %v2103
        %2284 = vmatpush.bf16.msra.mxu0 %v2101
        %2285 = vmatpush.bf16.msra.mxu0 %v2099
        %2286 = vmatpush.bf16.msra.mxu0 %v2097
        %2287 = vmatpush.bf16.msra.mxu0 %v2095
        %2288 = vmatpush.bf16.msra.mxu0 %v2093
        %2289 = vmatpush.bf16.msra.mxu0 %v2091
        %2290 = vmatpush.bf16.msra.mxu0 %v2089
        %2291 = vmatmul.bf16.gmra.mxu0 %v1923
        %v2292 = vpop.f32.mrf.mxu0
        %v2293 = vadd.f32 %v2244, %v2292
        %v2294 = vpop.f32.mrf.mxu0
        %v2295 = vadd.f32 %v2246, %v2294
        %2296 = vmatmul.bf16.gmra.mxu0 %v1925
        %v2297 = vpop.f32.mrf.mxu0
        %v2298 = vadd.f32 %v2249, %v2297
        %v2299 = vpop.f32.mrf.mxu0
        %v2300 = vadd.f32 %v2251, %v2299
        %2301 = vmatmul.bf16.gmra.mxu0 %v1927
        %v2302 = vpop.f32.mrf.mxu0
        %v2303 = vadd.f32 %v2254, %v2302
        %v2304 = vpop.f32.mrf.mxu0
        %v2305 = vadd.f32 %v2256, %v2304
        %2306 = vmatmul.bf16.gmra.mxu0 %v1929
        %v2307 = vpop.f32.mrf.mxu0
        %v2308 = vadd.f32 %v2259, %v2307
        %v2309 = vpop.f32.mrf.mxu0
        %v2310 = vadd.f32 %v2261, %v2309
        %2311 = vmatmul.bf16.gmra.mxu0 %v1931
        %v2312 = vpop.f32.mrf.mxu0
        %v2313 = vadd.f32 %v2264, %v2312
        %v2314 = vpop.f32.mrf.mxu0
        %v2315 = vadd.f32 %v2266, %v2314
        %2316 = vmatmul.bf16.gmra.mxu0 %v1933
        %v2317 = vpop.f32.mrf.mxu0
        %v2318 = vadd.f32 %v2269, %v2317
        %v2319 = vpop.f32.mrf.mxu0
        %v2320 = vadd.f32 %v2271, %v2319
        %2321 = vmatmul.bf16.gmra.mxu0 %v1935
        %v2322 = vpop.f32.mrf.mxu0
        %v2323 = vadd.f32 %v2274, %v2322
        %v2324 = vpop.f32.mrf.mxu0
        %v2325 = vadd.f32 %v2276, %v2324
        %2326 = vmatmul.bf16.gmra.mxu0 %v1937
        %v2327 = vpop.f32.mrf.mxu0
        %v2328 = vadd.f32 %v2279, %v2327
        %v2329 = vpop.f32.mrf.mxu0
        %v2330 = vadd.f32 %v2281, %v2329
        %2331 = vdwg.mxu0
        %v2332 = vmul.f32 %v2195, 0.5
        %v2333 = vmul.f32 %v2293, 0.5
        %v2334 = vmul.f32 %v2197, 0.5
        %v2335 = vmul.f32 %v2295, 0.5
        %v2336 = vmul.f32 %v2200, 0.5
        %v2337 = vmul.f32 %v2298, 0.5
        %v2338 = vmul.f32 %v2202, 0.5
        %v2339 = vmul.f32 %v2300, 0.5
        %v2340 = vmul.f32 %v2205, 0.5
        %v2341 = vmul.f32 %v2303, 0.5
        %v2342 = vmul.f32 %v2207, 0.5
        %v2343 = vmul.f32 %v2305, 0.5
        %v2344 = vmul.f32 %v2210, 0.5
        %v2345 = vmul.f32 %v2308, 0.5
        %v2346 = vmul.f32 %v2212, 0.5
        %v2347 = vmul.f32 %v2310, 0.5
        %v2348 = vmul.f32 %v2215, 0.5
        %v2349 = vmul.f32 %v2313, 0.5
        %v2350 = vmul.f32 %v2217, 0.5
        %v2351 = vmul.f32 %v2315, 0.5
        %v2352 = vmul.f32 %v2220, 0.5
        %v2353 = vmul.f32 %v2318, 0.5
        %v2354 = vmul.f32 %v2222, 0.5
        %v2355 = vmul.f32 %v2320, 0.5
        %v2356 = vmul.f32 %v2225, 0.5
        %v2357 = vmul.f32 %v2323, 0.5
        %v2358 = vmul.f32 %v2227, 0.5
        %v2359 = vmul.f32 %v2325, 0.5
        %v2360 = vmul.f32 %v2230, 0.5
        %v2361 = vmul.f32 %v2328, 0.5
        %v2362 = vmul.f32 %v2232, 0.5
        %v2363 = vmul.f32 %v2330, 0.5
        %v2364 = vmul.f32 %v2195, 0.70710677
        %v2365 = vmul.f32 %v2293, 0.70710677
        %v2366 = vmul.f32 %v2197, 0.70710677
        %v2367 = vmul.f32 %v2295, 0.70710677
        %v2368 = vmul.f32 %v2200, 0.70710677
        %v2369 = vmul.f32 %v2298, 0.70710677
        %v2370 = vmul.f32 %v2202, 0.70710677
        %v2371 = vmul.f32 %v2300, 0.70710677
        %v2372 = vmul.f32 %v2205, 0.70710677
        %v2373 = vmul.f32 %v2303, 0.70710677
        %v2374 = vmul.f32 %v2207, 0.70710677
        %v2375 = vmul.f32 %v2305, 0.70710677
        %v2376 = vmul.f32 %v2210, 0.70710677
        %v2377 = vmul.f32 %v2308, 0.70710677
        %v2378 = vmul.f32 %v2212, 0.70710677
        %v2379 = vmul.f32 %v2310, 0.70710677
        %v2380 = vmul.f32 %v2215, 0.70710677
        %v2381 = vmul.f32 %v2313, 0.70710677
        %v2382 = vmul.f32 %v2217, 0.70710677
        %v2383 = vmul.f32 %v2315, 0.70710677
        %v2384 = vmul.f32 %v2220, 0.70710677
        %v2385 = vmul.f32 %v2318, 0.70710677
        %v2386 = vmul.f32 %v2222, 0.70710677
        %v2387 = vmul.f32 %v2320, 0.70710677
        %v2388 = vmul.f32 %v2225, 0.70710677
        %v2389 = vmul.f32 %v2323, 0.70710677
        %v2390 = vmul.f32 %v2227, 0.70710677
        %v2391 = vmul.f32 %v2325, 0.70710677
        %v2392 = vmul.f32 %v2230, 0.70710677
        %v2393 = vmul.f32 %v2328, 0.70710677
        %v2394 = vmul.f32 %v2232, 0.70710677
        %v2395 = vmul.f32 %v2330, 0.70710677
        %v2396 = vmul.f32 %v2364, %v2364
        %v2397 = vmin.f32 16.0, %v2396
        %v2398 = vmul.f32 %v2397, 2.1237322e-06
        %v2399 = vadd.f32 %v2398, 0.00028619796
        %v2400 = vmul.f32 %v2397, %v2399
        %v2401 = vadd.f32 %v2400, 0.0036580483
        %v2402 = vmul.f32 %v2397, %v2401
        %v2403 = vadd.f32 %v2402, 0.05243302
        %v2404 = vmul.f32 %v2397, %v2403
        %v2405 = vadd.f32 %v2404, 0.18741608
        %v2406 = vmul.f32 %v2397, %v2405
        %v2407 = vadd.f32 %v2406, 1.1283791
        %v2408 = vmul.f32 %v2364, %v2407
        %v2409 = vmul.f32 %v2397, 3.8918573e-05
        %v2410 = vadd.f32 %v2409, 0.001143296
        %v2411 = vmul.f32 %v2397, %v2410
        %v2412 = vadd.f32 %v2411, 0.014752088
        %v2413 = vmul.f32 %v2397, %v2412
        %v2414 = vadd.f32 %v2413, 0.112945676
        %v2415 = vmul.f32 %v2397, %v2414
        %v2416 = vadd.f32 %v2415, 0.4994258
        %v2417 = vmul.f32 %v2397, %v2416
        %v2418 = vadd.f32 %v2417, 1.0
        %v2419 = vrcp.pop %v2418
        %v2420 = vmul.f32 %v2418, %v2419
        %v2421 = vsub.f32 1.0, %v2420
        %v2422 = vmul.f32 %v2419, %v2421
        %v2423 = vadd.f32 %v2419, %v2422
        %vm2424 = vweird.f32 %v2418
        %vm2425 = vweird.f32 %v2419
        %vm2426 = vmor %vm2424, %vm2425
        %v2427 = vsel %vm2426, %v2419, %v2423
        %v2428 = vand.u32 2147483647, %v2418
        %vm2429 = vcmp.eq.f32.partialorder %v2428, 8.507059e+37
        %v2430 = vand.u32 %v2418, 2147483648
        %v2431 = vor.u32 1.1754944e-38, %v2430
        %v2432 = vsel %vm2429, %v2431, %v2427
        %v2433 = vmul.f32 %v2408, %v2432
        %v2434 = vmin.f32 %v2433, 1.0
        %v2435 = vmax.f32 %v2434, -1.0
        %v2436 = vmul.f32 %v2365, %v2365
        %v2437 = vmin.f32 16.0, %v2436
        %v2438 = vmul.f32 %v2437, 2.1237322e-06
        %v2439 = vadd.f32 %v2438, 0.00028619796
        %v2440 = vmul.f32 %v2437, %v2439
        %v2441 = vadd.f32 %v2440, 0.0036580483
        %v2442 = vmul.f32 %v2437, %v2441
        %v2443 = vadd.f32 %v2442, 0.05243302
        %v2444 = vmul.f32 %v2437, %v2443
        %v2445 = vadd.f32 %v2444, 0.18741608
        %v2446 = vmul.f32 %v2437, %v2445
        %v2447 = vadd.f32 %v2446, 1.1283791
        %v2448 = vmul.f32 %v2365, %v2447
        %v2449 = vmul.f32 %v2437, 3.8918573e-05
        %v2450 = vadd.f32 %v2449, 0.001143296
        %v2451 = vmul.f32 %v2437, %v2450
        %v2452 = vadd.f32 %v2451, 0.014752088
        %v2453 = vmul.f32 %v2437, %v2452
        %v2454 = vadd.f32 %v2453, 0.112945676
        %v2455 = vmul.f32 %v2437, %v2454
        %v2456 = vadd.f32 %v2455, 0.4994258
        %v2457 = vmul.f32 %v2437, %v2456
        %v2458 = vadd.f32 %v2457, 1.0
        %v2459 = vrcp.pop %v2458
        %v2460 = vmul.f32 %v2458, %v2459
        %v2461 = vsub.f32 1.0, %v2460
        %v2462 = vmul.f32 %v2459, %v2461
        %v2463 = vadd.f32 %v2459, %v2462
        %vm2464 = vweird.f32 %v2458
        %vm2465 = vweird.f32 %v2459
        %vm2466 = vmor %vm2464, %vm2465
        %v2467 = vsel %vm2466, %v2459, %v2463
        %v2468 = vand.u32 2147483647, %v2458
        %vm2469 = vcmp.eq.f32.partialorder %v2468, 8.507059e+37
        %v2470 = vand.u32 %v2458, 2147483648
        %v2471 = vor.u32 1.1754944e-38, %v2470
        %v2472 = vsel %vm2469, %v2471, %v2467
        %v2473 = vmul.f32 %v2448, %v2472
        %v2474 = vmin.f32 %v2473, 1.0
        %v2475 = vmax.f32 %v2474, -1.0
        %v2476 = vmul.f32 %v2366, %v2366
        %v2477 = vmin.f32 16.0, %v2476
        %v2478 = vmul.f32 %v2477, 2.1237322e-06
        %v2479 = vadd.f32 %v2478, 0.00028619796
        %v2480 = vmul.f32 %v2477, %v2479
        %v2481 = vadd.f32 %v2480, 0.0036580483
        %v2482 = vmul.f32 %v2477, %v2481
        %v2483 = vadd.f32 %v2482, 0.05243302
        %v2484 = vmul.f32 %v2477, %v2483
        %v2485 = vadd.f32 %v2484, 0.18741608
        %v2486 = vmul.f32 %v2477, %v2485
        %v2487 = vadd.f32 %v2486, 1.1283791
        %v2488 = vmul.f32 %v2366, %v2487
        %v2489 = vmul.f32 %v2477, 3.8918573e-05
        %v2490 = vadd.f32 %v2489, 0.001143296
        %v2491 = vmul.f32 %v2477, %v2490
        %v2492 = vadd.f32 %v2491, 0.014752088
        %v2493 = vmul.f32 %v2477, %v2492
        %v2494 = vadd.f32 %v2493, 0.112945676
        %v2495 = vmul.f32 %v2477, %v2494
        %v2496 = vadd.f32 %v2495, 0.4994258
        %v2497 = vmul.f32 %v2477, %v2496
        %v2498 = vadd.f32 %v2497, 1.0
        %v2499 = vrcp.pop %v2498
        %v2500 = vmul.f32 %v2498, %v2499
        %v2501 = vsub.f32 1.0, %v2500
        %v2502 = vmul.f32 %v2499, %v2501
        %v2503 = vadd.f32 %v2499, %v2502
        %vm2504 = vweird.f32 %v2498
        %vm2505 = vweird.f32 %v2499
        %vm2506 = vmor %vm2504, %vm2505
        %v2507 = vsel %vm2506, %v2499, %v2503
        %v2508 = vand.u32 2147483647, %v2498
        %vm2509 = vcmp.eq.f32.partialorder %v2508, 8.507059e+37
        %v2510 = vand.u32 %v2498, 2147483648
        %v2511 = vor.u32 1.1754944e-38, %v2510
        %v2512 = vsel %vm2509, %v2511, %v2507
        %v2513 = vmul.f32 %v2488, %v2512
        %v2514 = vmin.f32 %v2513, 1.0
        %v2515 = vmax.f32 %v2514, -1.0
        %v2516 = vmul.f32 %v2367, %v2367
        %v2517 = vmin.f32 16.0, %v2516
        %v2518 = vmul.f32 %v2517, 2.1237322e-06
        %v2519 = vadd.f32 %v2518, 0.00028619796
        %v2520 = vmul.f32 %v2517, %v2519
        %v2521 = vadd.f32 %v2520, 0.0036580483
        %v2522 = vmul.f32 %v2517, %v2521
        %v2523 = vadd.f32 %v2522, 0.05243302
        %v2524 = vmul.f32 %v2517, %v2523
        %v2525 = vadd.f32 %v2524, 0.18741608
        %v2526 = vmul.f32 %v2517, %v2525
        %v2527 = vadd.f32 %v2526, 1.1283791
        %v2528 = vmul.f32 %v2367, %v2527
        %v2529 = vmul.f32 %v2517, 3.8918573e-05
        %v2530 = vadd.f32 %v2529, 0.001143296
        %v2531 = vmul.f32 %v2517, %v2530
        %v2532 = vadd.f32 %v2531, 0.014752088
        %v2533 = vmul.f32 %v2517, %v2532
        %v2534 = vadd.f32 %v2533, 0.112945676
        %v2535 = vmul.f32 %v2517, %v2534
        %v2536 = vadd.f32 %v2535, 0.4994258
        %v2537 = vmul.f32 %v2517, %v2536
        %v2538 = vadd.f32 %v2537, 1.0
        %v2539 = vrcp.pop %v2538
        %v2540 = vmul.f32 %v2538, %v2539
        %v2541 = vsub.f32 1.0, %v2540
        %v2542 = vmul.f32 %v2539, %v2541
        %v2543 = vadd.f32 %v2539, %v2542
        %vm2544 = vweird.f32 %v2538
        %vm2545 = vweird.f32 %v2539
        %vm2546 = vmor %vm2544, %vm2545
        %v2547 = vsel %vm2546, %v2539, %v2543
        %v2548 = vand.u32 2147483647, %v2538
        %vm2549 = vcmp.eq.f32.partialorder %v2548, 8.507059e+37
        %v2550 = vand.u32 %v2538, 2147483648
        %v2551 = vor.u32 1.1754944e-38, %v2550
        %v2552 = vsel %vm2549, %v2551, %v2547
        %v2553 = vmul.f32 %v2528, %v2552
        %v2554 = vmin.f32 %v2553, 1.0
        %v2555 = vmax.f32 %v2554, -1.0
        %v2556 = vmul.f32 %v2368, %v2368
        %v2557 = vmin.f32 16.0, %v2556
        %v2558 = vmul.f32 %v2557, 2.1237322e-06
        %v2559 = vadd.f32 %v2558, 0.00028619796
        %v2560 = vmul.f32 %v2557, %v2559
        %v2561 = vadd.f32 %v2560, 0.0036580483
        %v2562 = vmul.f32 %v2557, %v2561
        %v2563 = vadd.f32 %v2562, 0.05243302
        %v2564 = vmul.f32 %v2557, %v2563
        %v2565 = vadd.f32 %v2564, 0.18741608
        %v2566 = vmul.f32 %v2557, %v2565
        %v2567 = vadd.f32 %v2566, 1.1283791
        %v2568 = vmul.f32 %v2368, %v2567
        %v2569 = vmul.f32 %v2557, 3.8918573e-05
        %v2570 = vadd.f32 %v2569, 0.001143296
        %v2571 = vmul.f32 %v2557, %v2570
        %v2572 = vadd.f32 %v2571, 0.014752088
        %v2573 = vmul.f32 %v2557, %v2572
        %v2574 = vadd.f32 %v2573, 0.112945676
        %v2575 = vmul.f32 %v2557, %v2574
        %v2576 = vadd.f32 %v2575, 0.4994258
        %v2577 = vmul.f32 %v2557, %v2576
        %v2578 = vadd.f32 %v2577, 1.0
        %v2579 = vrcp.pop %v2578
        %v2580 = vmul.f32 %v2578, %v2579
        %v2581 = vsub.f32 1.0, %v2580
        %v2582 = vmul.f32 %v2579, %v2581
        %v2583 = vadd.f32 %v2579, %v2582
        %vm2584 = vweird.f32 %v2578
        %vm2585 = vweird.f32 %v2579
        %vm2586 = vmor %vm2584, %vm2585
        %v2587 = vsel %vm2586, %v2579, %v2583
        %v2588 = vand.u32 2147483647, %v2578
        %vm2589 = vcmp.eq.f32.partialorder %v2588, 8.507059e+37
        %v2590 = vand.u32 %v2578, 2147483648
        %v2591 = vor.u32 1.1754944e-38, %v2590
        %v2592 = vsel %vm2589, %v2591, %v2587
        %v2593 = vmul.f32 %v2568, %v2592
        %v2594 = vmin.f32 %v2593, 1.0
        %v2595 = vmax.f32 %v2594, -1.0
        %v2596 = vmul.f32 %v2369, %v2369
        %v2597 = vmin.f32 16.0, %v2596
        %v2598 = vmul.f32 %v2597, 2.1237322e-06
        %v2599 = vadd.f32 %v2598, 0.00028619796
        %v2600 = vmul.f32 %v2597, %v2599
        %v2601 = vadd.f32 %v2600, 0.0036580483
        %v2602 = vmul.f32 %v2597, %v2601
        %v2603 = vadd.f32 %v2602, 0.05243302
        %v2604 = vmul.f32 %v2597, %v2603
        %v2605 = vadd.f32 %v2604, 0.18741608
        %v2606 = vmul.f32 %v2597, %v2605
        %v2607 = vadd.f32 %v2606, 1.1283791
        %v2608 = vmul.f32 %v2369, %v2607
        %v2609 = vmul.f32 %v2597, 3.8918573e-05
        %v2610 = vadd.f32 %v2609, 0.001143296
        %v2611 = vmul.f32 %v2597, %v2610
        %v2612 = vadd.f32 %v2611, 0.014752088
        %v2613 = vmul.f32 %v2597, %v2612
        %v2614 = vadd.f32 %v2613, 0.112945676
        %v2615 = vmul.f32 %v2597, %v2614
        %v2616 = vadd.f32 %v2615, 0.4994258
        %v2617 = vmul.f32 %v2597, %v2616
        %v2618 = vadd.f32 %v2617, 1.0
        %v2619 = vrcp.pop %v2618
        %v2620 = vmul.f32 %v2618, %v2619
        %v2621 = vsub.f32 1.0, %v2620
        %v2622 = vmul.f32 %v2619, %v2621
        %v2623 = vadd.f32 %v2619, %v2622
        %vm2624 = vweird.f32 %v2618
        %vm2625 = vweird.f32 %v2619
        %vm2626 = vmor %vm2624, %vm2625
        %v2627 = vsel %vm2626, %v2619, %v2623
        %v2628 = vand.u32 2147483647, %v2618
        %vm2629 = vcmp.eq.f32.partialorder %v2628, 8.507059e+37
        %v2630 = vand.u32 %v2618, 2147483648
        %v2631 = vor.u32 1.1754944e-38, %v2630
        %v2632 = vsel %vm2629, %v2631, %v2627
        %v2633 = vmul.f32 %v2608, %v2632
        %v2634 = vmin.f32 %v2633, 1.0
        %v2635 = vmax.f32 %v2634, -1.0
        %v2636 = vmul.f32 %v2370, %v2370
        %v2637 = vmin.f32 16.0, %v2636
        %v2638 = vmul.f32 %v2637, 2.1237322e-06
        %v2639 = vadd.f32 %v2638, 0.00028619796
        %v2640 = vmul.f32 %v2637, %v2639
        %v2641 = vadd.f32 %v2640, 0.0036580483
        %v2642 = vmul.f32 %v2637, %v2641
        %v2643 = vadd.f32 %v2642, 0.05243302
        %v2644 = vmul.f32 %v2637, %v2643
        %v2645 = vadd.f32 %v2644, 0.18741608
        %v2646 = vmul.f32 %v2637, %v2645
        %v2647 = vadd.f32 %v2646, 1.1283791
        %v2648 = vmul.f32 %v2370, %v2647
        %v2649 = vmul.f32 %v2637, 3.8918573e-05
        %v2650 = vadd.f32 %v2649, 0.001143296
        %v2651 = vmul.f32 %v2637, %v2650
        %v2652 = vadd.f32 %v2651, 0.014752088
        %v2653 = vmul.f32 %v2637, %v2652
        %v2654 = vadd.f32 %v2653, 0.112945676
        %v2655 = vmul.f32 %v2637, %v2654
        %v2656 = vadd.f32 %v2655, 0.4994258
        %v2657 = vmul.f32 %v2637, %v2656
        %v2658 = vadd.f32 %v2657, 1.0
        %v2659 = vrcp.pop %v2658
        %v2660 = vmul.f32 %v2658, %v2659
        %v2661 = vsub.f32 1.0, %v2660
        %v2662 = vmul.f32 %v2659, %v2661
        %v2663 = vadd.f32 %v2659, %v2662
        %vm2664 = vweird.f32 %v2658
        %vm2665 = vweird.f32 %v2659
        %vm2666 = vmor %vm2664, %vm2665
        %v2667 = vsel %vm2666, %v2659, %v2663
        %v2668 = vand.u32 2147483647, %v2658
        %vm2669 = vcmp.eq.f32.partialorder %v2668, 8.507059e+37
        %v2670 = vand.u32 %v2658, 2147483648
        %v2671 = vor.u32 1.1754944e-38, %v2670
        %v2672 = vsel %vm2669, %v2671, %v2667
        %v2673 = vmul.f32 %v2648, %v2672
        %v2674 = vmin.f32 %v2673, 1.0
        %v2675 = vmax.f32 %v2674, -1.0
        %v2676 = vmul.f32 %v2371, %v2371
        %v2677 = vmin.f32 16.0, %v2676
        %v2678 = vmul.f32 %v2677, 2.1237322e-06
        %v2679 = vadd.f32 %v2678, 0.00028619796
        %v2680 = vmul.f32 %v2677, %v2679
        %v2681 = vadd.f32 %v2680, 0.0036580483
        %v2682 = vmul.f32 %v2677, %v2681
        %v2683 = vadd.f32 %v2682, 0.05243302
        %v2684 = vmul.f32 %v2677, %v2683
        %v2685 = vadd.f32 %v2684, 0.18741608
        %v2686 = vmul.f32 %v2677, %v2685
        %v2687 = vadd.f32 %v2686, 1.1283791
        %v2688 = vmul.f32 %v2371, %v2687
        %v2689 = vmul.f32 %v2677, 3.8918573e-05
        %v2690 = vadd.f32 %v2689, 0.001143296
        %v2691 = vmul.f32 %v2677, %v2690
        %v2692 = vadd.f32 %v2691, 0.014752088
        %v2693 = vmul.f32 %v2677, %v2692
        %v2694 = vadd.f32 %v2693, 0.112945676
        %v2695 = vmul.f32 %v2677, %v2694
        %v2696 = vadd.f32 %v2695, 0.4994258
        %v2697 = vmul.f32 %v2677, %v2696
        %v2698 = vadd.f32 %v2697, 1.0
        %v2699 = vrcp.pop %v2698
        %v2700 = vmul.f32 %v2698, %v2699
        %v2701 = vsub.f32 1.0, %v2700
        %v2702 = vmul.f32 %v2699, %v2701
        %v2703 = vadd.f32 %v2699, %v2702
        %vm2704 = vweird.f32 %v2698
        %vm2705 = vweird.f32 %v2699
        %vm2706 = vmor %vm2704, %vm2705
        %v2707 = vsel %vm2706, %v2699, %v2703
        %v2708 = vand.u32 2147483647, %v2698
        %vm2709 = vcmp.eq.f32.partialorder %v2708, 8.507059e+37
        %v2710 = vand.u32 %v2698, 2147483648
        %v2711 = vor.u32 1.1754944e-38, %v2710
        %v2712 = vsel %vm2709, %v2711, %v2707
        %v2713 = vmul.f32 %v2688, %v2712
        %v2714 = vmin.f32 %v2713, 1.0
        %v2715 = vmax.f32 %v2714, -1.0
        %v2716 = vmul.f32 %v2372, %v2372
        %v2717 = vmin.f32 16.0, %v2716
        %v2718 = vmul.f32 %v2717, 2.1237322e-06
        %v2719 = vadd.f32 %v2718, 0.00028619796
        %v2720 = vmul.f32 %v2717, %v2719
        %v2721 = vadd.f32 %v2720, 0.0036580483
        %v2722 = vmul.f32 %v2717, %v2721
        %v2723 = vadd.f32 %v2722, 0.05243302
        %v2724 = vmul.f32 %v2717, %v2723
        %v2725 = vadd.f32 %v2724, 0.18741608
        %v2726 = vmul.f32 %v2717, %v2725
        %v2727 = vadd.f32 %v2726, 1.1283791
        %v2728 = vmul.f32 %v2372, %v2727
        %v2729 = vmul.f32 %v2717, 3.8918573e-05
        %v2730 = vadd.f32 %v2729, 0.001143296
        %v2731 = vmul.f32 %v2717, %v2730
        %v2732 = vadd.f32 %v2731, 0.014752088
        %v2733 = vmul.f32 %v2717, %v2732
        %v2734 = vadd.f32 %v2733, 0.112945676
        %v2735 = vmul.f32 %v2717, %v2734
        %v2736 = vadd.f32 %v2735, 0.4994258
        %v2737 = vmul.f32 %v2717, %v2736
        %v2738 = vadd.f32 %v2737, 1.0
        %v2739 = vrcp.pop %v2738
        %v2740 = vmul.f32 %v2738, %v2739
        %v2741 = vsub.f32 1.0, %v2740
        %v2742 = vmul.f32 %v2739, %v2741
        %v2743 = vadd.f32 %v2739, %v2742
        %vm2744 = vweird.f32 %v2738
        %vm2745 = vweird.f32 %v2739
        %vm2746 = vmor %vm2744, %vm2745
        %v2747 = vsel %vm2746, %v2739, %v2743
        %v2748 = vand.u32 2147483647, %v2738
        %vm2749 = vcmp.eq.f32.partialorder %v2748, 8.507059e+37
        %v2750 = vand.u32 %v2738, 2147483648
        %v2751 = vor.u32 1.1754944e-38, %v2750
        %v2752 = vsel %vm2749, %v2751, %v2747
        %v2753 = vmul.f32 %v2728, %v2752
        %v2754 = vmin.f32 %v2753, 1.0
        %v2755 = vmax.f32 %v2754, -1.0
        %v2756 = vmul.f32 %v2373, %v2373
        %v2757 = vmin.f32 16.0, %v2756
        %v2758 = vmul.f32 %v2757, 2.1237322e-06
        %v2759 = vadd.f32 %v2758, 0.00028619796
        %v2760 = vmul.f32 %v2757, %v2759
        %v2761 = vadd.f32 %v2760, 0.0036580483
        %v2762 = vmul.f32 %v2757, %v2761
        %v2763 = vadd.f32 %v2762, 0.05243302
        %v2764 = vmul.f32 %v2757, %v2763
        %v2765 = vadd.f32 %v2764, 0.18741608
        %v2766 = vmul.f32 %v2757, %v2765
        %v2767 = vadd.f32 %v2766, 1.1283791
        %v2768 = vmul.f32 %v2373, %v2767
        %v2769 = vmul.f32 %v2757, 3.8918573e-05
        %v2770 = vadd.f32 %v2769, 0.001143296
        %v2771 = vmul.f32 %v2757, %v2770
        %v2772 = vadd.f32 %v2771, 0.014752088
        %v2773 = vmul.f32 %v2757, %v2772
        %v2774 = vadd.f32 %v2773, 0.112945676
        %v2775 = vmul.f32 %v2757, %v2774
        %v2776 = vadd.f32 %v2775, 0.4994258
        %v2777 = vmul.f32 %v2757, %v2776
        %v2778 = vadd.f32 %v2777, 1.0
        %v2779 = vrcp.pop %v2778
        %v2780 = vmul.f32 %v2778, %v2779
        %v2781 = vsub.f32 1.0, %v2780
        %v2782 = vmul.f32 %v2779, %v2781
        %v2783 = vadd.f32 %v2779, %v2782
        %vm2784 = vweird.f32 %v2778
        %vm2785 = vweird.f32 %v2779
        %vm2786 = vmor %vm2784, %vm2785
        %v2787 = vsel %vm2786, %v2779, %v2783
        %v2788 = vand.u32 2147483647, %v2778
        %vm2789 = vcmp.eq.f32.partialorder %v2788, 8.507059e+37
        %v2790 = vand.u32 %v2778, 2147483648
        %v2791 = vor.u32 1.1754944e-38, %v2790
        %v2792 = vsel %vm2789, %v2791, %v2787
        %v2793 = vmul.f32 %v2768, %v2792
        %v2794 = vmin.f32 %v2793, 1.0
        %v2795 = vmax.f32 %v2794, -1.0
        %v2796 = vmul.f32 %v2374, %v2374
        %v2797 = vmin.f32 16.0, %v2796
        %v2798 = vmul.f32 %v2797, 2.1237322e-06
        %v2799 = vadd.f32 %v2798, 0.00028619796
        %v2800 = vmul.f32 %v2797, %v2799
        %v2801 = vadd.f32 %v2800, 0.0036580483
        %v2802 = vmul.f32 %v2797, %v2801
        %v2803 = vadd.f32 %v2802, 0.05243302
        %v2804 = vmul.f32 %v2797, %v2803
        %v2805 = vadd.f32 %v2804, 0.18741608
        %v2806 = vmul.f32 %v2797, %v2805
        %v2807 = vadd.f32 %v2806, 1.1283791
        %v2808 = vmul.f32 %v2374, %v2807
        %v2809 = vmul.f32 %v2797, 3.8918573e-05
        %v2810 = vadd.f32 %v2809, 0.001143296
        %v2811 = vmul.f32 %v2797, %v2810
        %v2812 = vadd.f32 %v2811, 0.014752088
        %v2813 = vmul.f32 %v2797, %v2812
        %v2814 = vadd.f32 %v2813, 0.112945676
        %v2815 = vmul.f32 %v2797, %v2814
        %v2816 = vadd.f32 %v2815, 0.4994258
        %v2817 = vmul.f32 %v2797, %v2816
        %v2818 = vadd.f32 %v2817, 1.0
        %v2819 = vrcp.pop %v2818
        %v2820 = vmul.f32 %v2818, %v2819
        %v2821 = vsub.f32 1.0, %v2820
        %v2822 = vmul.f32 %v2819, %v2821
        %v2823 = vadd.f32 %v2819, %v2822
        %vm2824 = vweird.f32 %v2818
        %vm2825 = vweird.f32 %v2819
        %vm2826 = vmor %vm2824, %vm2825
        %v2827 = vsel %vm2826, %v2819, %v2823
        %v2828 = vand.u32 2147483647, %v2818
        %vm2829 = vcmp.eq.f32.partialorder %v2828, 8.507059e+37
        %v2830 = vand.u32 %v2818, 2147483648
        %v2831 = vor.u32 1.1754944e-38, %v2830
        %v2832 = vsel %vm2829, %v2831, %v2827
        %v2833 = vmul.f32 %v2808, %v2832
        %v2834 = vmin.f32 %v2833, 1.0
        %v2835 = vmax.f32 %v2834, -1.0
        %v2836 = vmul.f32 %v2375, %v2375
        %v2837 = vmin.f32 16.0, %v2836
        %v2838 = vmul.f32 %v2837, 2.1237322e-06
        %v2839 = vadd.f32 %v2838, 0.00028619796
        %v2840 = vmul.f32 %v2837, %v2839
        %v2841 = vadd.f32 %v2840, 0.0036580483
        %v2842 = vmul.f32 %v2837, %v2841
        %v2843 = vadd.f32 %v2842, 0.05243302
        %v2844 = vmul.f32 %v2837, %v2843
        %v2845 = vadd.f32 %v2844, 0.18741608
        %v2846 = vmul.f32 %v2837, %v2845
        %v2847 = vadd.f32 %v2846, 1.1283791
        %v2848 = vmul.f32 %v2375, %v2847
        %v2849 = vmul.f32 %v2837, 3.8918573e-05
        %v2850 = vadd.f32 %v2849, 0.001143296
        %v2851 = vmul.f32 %v2837, %v2850
        %v2852 = vadd.f32 %v2851, 0.014752088
        %v2853 = vmul.f32 %v2837, %v2852
        %v2854 = vadd.f32 %v2853, 0.112945676
        %v2855 = vmul.f32 %v2837, %v2854
        %v2856 = vadd.f32 %v2855, 0.4994258
        %v2857 = vmul.f32 %v2837, %v2856
        %v2858 = vadd.f32 %v2857, 1.0
        %v2859 = vrcp.pop %v2858
        %v2860 = vmul.f32 %v2858, %v2859
        %v2861 = vsub.f32 1.0, %v2860
        %v2862 = vmul.f32 %v2859, %v2861
        %v2863 = vadd.f32 %v2859, %v2862
        %vm2864 = vweird.f32 %v2858
        %vm2865 = vweird.f32 %v2859
        %vm2866 = vmor %vm2864, %vm2865
        %v2867 = vsel %vm2866, %v2859, %v2863
        %v2868 = vand.u32 2147483647, %v2858
        %vm2869 = vcmp.eq.f32.partialorder %v2868, 8.507059e+37
        %v2870 = vand.u32 %v2858, 2147483648
        %v2871 = vor.u32 1.1754944e-38, %v2870
        %v2872 = vsel %vm2869, %v2871, %v2867
        %v2873 = vmul.f32 %v2848, %v2872
        %v2874 = vmin.f32 %v2873, 1.0
        %v2875 = vmax.f32 %v2874, -1.0
        %v2876 = vmul.f32 %v2376, %v2376
        %v2877 = vmin.f32 16.0, %v2876
        %v2878 = vmul.f32 %v2877, 2.1237322e-06
        %v2879 = vadd.f32 %v2878, 0.00028619796
        %v2880 = vmul.f32 %v2877, %v2879
        %v2881 = vadd.f32 %v2880, 0.0036580483
        %v2882 = vmul.f32 %v2877, %v2881
        %v2883 = vadd.f32 %v2882, 0.05243302
        %v2884 = vmul.f32 %v2877, %v2883
        %v2885 = vadd.f32 %v2884, 0.18741608
        %v2886 = vmul.f32 %v2877, %v2885
        %v2887 = vadd.f32 %v2886, 1.1283791
        %v2888 = vmul.f32 %v2376, %v2887
        %v2889 = vmul.f32 %v2877, 3.8918573e-05
        %v2890 = vadd.f32 %v2889, 0.001143296
        %v2891 = vmul.f32 %v2877, %v2890
        %v2892 = vadd.f32 %v2891, 0.014752088
        %v2893 = vmul.f32 %v2877, %v2892
        %v2894 = vadd.f32 %v2893, 0.112945676
        %v2895 = vmul.f32 %v2877, %v2894
        %v2896 = vadd.f32 %v2895, 0.4994258
        %v2897 = vmul.f32 %v2877, %v2896
        %v2898 = vadd.f32 %v2897, 1.0
        %v2899 = vrcp.pop %v2898
        %v2900 = vmul.f32 %v2898, %v2899
        %v2901 = vsub.f32 1.0, %v2900
        %v2902 = vmul.f32 %v2899, %v2901
        %v2903 = vadd.f32 %v2899, %v2902
        %vm2904 = vweird.f32 %v2898
        %vm2905 = vweird.f32 %v2899
        %vm2906 = vmor %vm2904, %vm2905
        %v2907 = vsel %vm2906, %v2899, %v2903
        %v2908 = vand.u32 2147483647, %v2898
        %vm2909 = vcmp.eq.f32.partialorder %v2908, 8.507059e+37
        %v2910 = vand.u32 %v2898, 2147483648
        %v2911 = vor.u32 1.1754944e-38, %v2910
        %v2912 = vsel %vm2909, %v2911, %v2907
        %v2913 = vmul.f32 %v2888, %v2912
        %v2914 = vmin.f32 %v2913, 1.0
        %v2915 = vmax.f32 %v2914, -1.0
        %v2916 = vmul.f32 %v2377, %v2377
        %v2917 = vmin.f32 16.0, %v2916
        %v2918 = vmul.f32 %v2917, 2.1237322e-06
        %v2919 = vadd.f32 %v2918, 0.00028619796
        %v2920 = vmul.f32 %v2917, %v2919
        %v2921 = vadd.f32 %v2920, 0.0036580483
        %v2922 = vmul.f32 %v2917, %v2921
        %v2923 = vadd.f32 %v2922, 0.05243302
        %v2924 = vmul.f32 %v2917, %v2923
        %v2925 = vadd.f32 %v2924, 0.18741608
        %v2926 = vmul.f32 %v2917, %v2925
        %v2927 = vadd.f32 %v2926, 1.1283791
        %v2928 = vmul.f32 %v2377, %v2927
        %v2929 = vmul.f32 %v2917, 3.8918573e-05
        %v2930 = vadd.f32 %v2929, 0.001143296
        %v2931 = vmul.f32 %v2917, %v2930
        %v2932 = vadd.f32 %v2931, 0.014752088
        %v2933 = vmul.f32 %v2917, %v2932
        %v2934 = vadd.f32 %v2933, 0.112945676
        %v2935 = vmul.f32 %v2917, %v2934
        %v2936 = vadd.f32 %v2935, 0.4994258
        %v2937 = vmul.f32 %v2917, %v2936
        %v2938 = vadd.f32 %v2937, 1.0
        %v2939 = vrcp.pop %v2938
        %v2940 = vmul.f32 %v2938, %v2939
        %v2941 = vsub.f32 1.0, %v2940
        %v2942 = vmul.f32 %v2939, %v2941
        %v2943 = vadd.f32 %v2939, %v2942
        %vm2944 = vweird.f32 %v2938
        %vm2945 = vweird.f32 %v2939
        %vm2946 = vmor %vm2944, %vm2945
        %v2947 = vsel %vm2946, %v2939, %v2943
        %v2948 = vand.u32 2147483647, %v2938
        %vm2949 = vcmp.eq.f32.partialorder %v2948, 8.507059e+37
        %v2950 = vand.u32 %v2938, 2147483648
        %v2951 = vor.u32 1.1754944e-38, %v2950
        %v2952 = vsel %vm2949, %v2951, %v2947
        %v2953 = vmul.f32 %v2928, %v2952
        %v2954 = vmin.f32 %v2953, 1.0
        %v2955 = vmax.f32 %v2954, -1.0
        %v2956 = vmul.f32 %v2378, %v2378
        %v2957 = vmin.f32 16.0, %v2956
        %v2958 = vmul.f32 %v2957, 2.1237322e-06
        %v2959 = vadd.f32 %v2958, 0.00028619796
        %v2960 = vmul.f32 %v2957, %v2959
        %v2961 = vadd.f32 %v2960, 0.0036580483
        %v2962 = vmul.f32 %v2957, %v2961
        %v2963 = vadd.f32 %v2962, 0.05243302
        %v2964 = vmul.f32 %v2957, %v2963
        %v2965 = vadd.f32 %v2964, 0.18741608
        %v2966 = vmul.f32 %v2957, %v2965
        %v2967 = vadd.f32 %v2966, 1.1283791
        %v2968 = vmul.f32 %v2378, %v2967
        %v2969 = vmul.f32 %v2957, 3.8918573e-05
        %v2970 = vadd.f32 %v2969, 0.001143296
        %v2971 = vmul.f32 %v2957, %v2970
        %v2972 = vadd.f32 %v2971, 0.014752088
        %v2973 = vmul.f32 %v2957, %v2972
        %v2974 = vadd.f32 %v2973, 0.112945676
        %v2975 = vmul.f32 %v2957, %v2974
        %v2976 = vadd.f32 %v2975, 0.4994258
        %v2977 = vmul.f32 %v2957, %v2976
        %v2978 = vadd.f32 %v2977, 1.0
        %v2979 = vrcp.pop %v2978
        %v2980 = vmul.f32 %v2978, %v2979
        %v2981 = vsub.f32 1.0, %v2980
        %v2982 = vmul.f32 %v2979, %v2981
        %v2983 = vadd.f32 %v2979, %v2982
        %vm2984 = vweird.f32 %v2978
        %vm2985 = vweird.f32 %v2979
        %vm2986 = vmor %vm2984, %vm2985
        %v2987 = vsel %vm2986, %v2979, %v2983
        %v2988 = vand.u32 2147483647, %v2978
        %vm2989 = vcmp.eq.f32.partialorder %v2988, 8.507059e+37
        %v2990 = vand.u32 %v2978, 2147483648
        %v2991 = vor.u32 1.1754944e-38, %v2990
        %v2992 = vsel %vm2989, %v2991, %v2987
        %v2993 = vmul.f32 %v2968, %v2992
        %v2994 = vmin.f32 %v2993, 1.0
        %v2995 = vmax.f32 %v2994, -1.0
        %v2996 = vmul.f32 %v2379, %v2379
        %v2997 = vmin.f32 16.0, %v2996
        %v2998 = vmul.f32 %v2997, 2.1237322e-06
        %v2999 = vadd.f32 %v2998, 0.00028619796
        %v3000 = vmul.f32 %v2997, %v2999
        %v3001 = vadd.f32 %v3000, 0.0036580483
        %v3002 = vmul.f32 %v2997, %v3001
        %v3003 = vadd.f32 %v3002, 0.05243302
        %v3004 = vmul.f32 %v2997, %v3003
        %v3005 = vadd.f32 %v3004, 0.18741608
        %v3006 = vmul.f32 %v2997, %v3005
        %v3007 = vadd.f32 %v3006, 1.1283791
        %v3008 = vmul.f32 %v2379, %v3007
        %v3009 = vmul.f32 %v2997, 3.8918573e-05
        %v3010 = vadd.f32 %v3009, 0.001143296
        %v3011 = vmul.f32 %v2997, %v3010
        %v3012 = vadd.f32 %v3011, 0.014752088
        %v3013 = vmul.f32 %v2997, %v3012
        %v3014 = vadd.f32 %v3013, 0.112945676
        %v3015 = vmul.f32 %v2997, %v3014
        %v3016 = vadd.f32 %v3015, 0.4994258
        %v3017 = vmul.f32 %v2997, %v3016
        %v3018 = vadd.f32 %v3017, 1.0
        %v3019 = vrcp.pop %v3018
        %v3020 = vmul.f32 %v3018, %v3019
        %v3021 = vsub.f32 1.0, %v3020
        %v3022 = vmul.f32 %v3019, %v3021
        %v3023 = vadd.f32 %v3019, %v3022
        %vm3024 = vweird.f32 %v3018
        %vm3025 = vweird.f32 %v3019
        %vm3026 = vmor %vm3024, %vm3025
        %v3027 = vsel %vm3026, %v3019, %v3023
        %v3028 = vand.u32 2147483647, %v3018
        %vm3029 = vcmp.eq.f32.partialorder %v3028, 8.507059e+37
        %v3030 = vand.u32 %v3018, 2147483648
        %v3031 = vor.u32 1.1754944e-38, %v3030
        %v3032 = vsel %vm3029, %v3031, %v3027
        %v3033 = vmul.f32 %v3008, %v3032
        %v3034 = vmin.f32 %v3033, 1.0
        %v3035 = vmax.f32 %v3034, -1.0
        %v3036 = vmul.f32 %v2380, %v2380
        %v3037 = vmin.f32 16.0, %v3036
        %v3038 = vmul.f32 %v3037, 2.1237322e-06
        %v3039 = vadd.f32 %v3038, 0.00028619796
        %v3040 = vmul.f32 %v3037, %v3039
        %v3041 = vadd.f32 %v3040, 0.0036580483
        %v3042 = vmul.f32 %v3037, %v3041
        %v3043 = vadd.f32 %v3042, 0.05243302
        %v3044 = vmul.f32 %v3037, %v3043
        %v3045 = vadd.f32 %v3044, 0.18741608
        %v3046 = vmul.f32 %v3037, %v3045
        %v3047 = vadd.f32 %v3046, 1.1283791
        %v3048 = vmul.f32 %v2380, %v3047
        %v3049 = vmul.f32 %v3037, 3.8918573e-05
        %v3050 = vadd.f32 %v3049, 0.001143296
        %v3051 = vmul.f32 %v3037, %v3050
        %v3052 = vadd.f32 %v3051, 0.014752088
        %v3053 = vmul.f32 %v3037, %v3052
        %v3054 = vadd.f32 %v3053, 0.112945676
        %v3055 = vmul.f32 %v3037, %v3054
        %v3056 = vadd.f32 %v3055, 0.4994258
        %v3057 = vmul.f32 %v3037, %v3056
        %v3058 = vadd.f32 %v3057, 1.0
        %v3059 = vrcp.pop %v3058
        %v3060 = vmul.f32 %v3058, %v3059
        %v3061 = vsub.f32 1.0, %v3060
        %v3062 = vmul.f32 %v3059, %v3061
        %v3063 = vadd.f32 %v3059, %v3062
        %vm3064 = vweird.f32 %v3058
        %vm3065 = vweird.f32 %v3059
        %vm3066 = vmor %vm3064, %vm3065
        %v3067 = vsel %vm3066, %v3059, %v3063
        %v3068 = vand.u32 2147483647, %v3058
        %vm3069 = vcmp.eq.f32.partialorder %v3068, 8.507059e+37
        %v3070 = vand.u32 %v3058, 2147483648
        %v3071 = vor.u32 1.1754944e-38, %v3070
        %v3072 = vsel %vm3069, %v3071, %v3067
        %v3073 = vmul.f32 %v3048, %v3072
        %v3074 = vmin.f32 %v3073, 1.0
        %v3075 = vmax.f32 %v3074, -1.0
        %v3076 = vmul.f32 %v2381, %v2381
        %v3077 = vmin.f32 16.0, %v3076
        %v3078 = vmul.f32 %v3077, 2.1237322e-06
        %v3079 = vadd.f32 %v3078, 0.00028619796
        %v3080 = vmul.f32 %v3077, %v3079
        %v3081 = vadd.f32 %v3080, 0.0036580483
        %v3082 = vmul.f32 %v3077, %v3081
        %v3083 = vadd.f32 %v3082, 0.05243302
        %v3084 = vmul.f32 %v3077, %v3083
        %v3085 = vadd.f32 %v3084, 0.18741608
        %v3086 = vmul.f32 %v3077, %v3085
        %v3087 = vadd.f32 %v3086, 1.1283791
        %v3088 = vmul.f32 %v2381, %v3087
        %v3089 = vmul.f32 %v3077, 3.8918573e-05
        %v3090 = vadd.f32 %v3089, 0.001143296
        %v3091 = vmul.f32 %v3077, %v3090
        %v3092 = vadd.f32 %v3091, 0.014752088
        %v3093 = vmul.f32 %v3077, %v3092
        %v3094 = vadd.f32 %v3093, 0.112945676
        %v3095 = vmul.f32 %v3077, %v3094
        %v3096 = vadd.f32 %v3095, 0.4994258
        %v3097 = vmul.f32 %v3077, %v3096
        %v3098 = vadd.f32 %v3097, 1.0
        %v3099 = vrcp.pop %v3098
        %v3100 = vmul.f32 %v3098, %v3099
        %v3101 = vsub.f32 1.0, %v3100
        %v3102 = vmul.f32 %v3099, %v3101
        %v3103 = vadd.f32 %v3099, %v3102
        %vm3104 = vweird.f32 %v3098
        %vm3105 = vweird.f32 %v3099
        %vm3106 = vmor %vm3104, %vm3105
        %v3107 = vsel %vm3106, %v3099, %v3103
        %v3108 = vand.u32 2147483647, %v3098
        %vm3109 = vcmp.eq.f32.partialorder %v3108, 8.507059e+37
        %v3110 = vand.u32 %v3098, 2147483648
        %v3111 = vor.u32 1.1754944e-38, %v3110
        %v3112 = vsel %vm3109, %v3111, %v3107
        %v3113 = vmul.f32 %v3088, %v3112
        %v3114 = vmin.f32 %v3113, 1.0
        %v3115 = vmax.f32 %v3114, -1.0
        %v3116 = vmul.f32 %v2382, %v2382
        %v3117 = vmin.f32 16.0, %v3116
        %v3118 = vmul.f32 %v3117, 2.1237322e-06
        %v3119 = vadd.f32 %v3118, 0.00028619796
        %v3120 = vmul.f32 %v3117, %v3119
        %v3121 = vadd.f32 %v3120, 0.0036580483
        %v3122 = vmul.f32 %v3117, %v3121
        %v3123 = vadd.f32 %v3122, 0.05243302
        %v3124 = vmul.f32 %v3117, %v3123
        %v3125 = vadd.f32 %v3124, 0.18741608
        %v3126 = vmul.f32 %v3117, %v3125
        %v3127 = vadd.f32 %v3126, 1.1283791
        %v3128 = vmul.f32 %v2382, %v3127
        %v3129 = vmul.f32 %v3117, 3.8918573e-05
        %v3130 = vadd.f32 %v3129, 0.001143296
        %v3131 = vmul.f32 %v3117, %v3130
        %v3132 = vadd.f32 %v3131, 0.014752088
        %v3133 = vmul.f32 %v3117, %v3132
        %v3134 = vadd.f32 %v3133, 0.112945676
        %v3135 = vmul.f32 %v3117, %v3134
        %v3136 = vadd.f32 %v3135, 0.4994258
        %v3137 = vmul.f32 %v3117, %v3136
        %v3138 = vadd.f32 %v3137, 1.0
        %v3139 = vrcp.pop %v3138
        %v3140 = vmul.f32 %v3138, %v3139
        %v3141 = vsub.f32 1.0, %v3140
        %v3142 = vmul.f32 %v3139, %v3141
        %v3143 = vadd.f32 %v3139, %v3142
        %vm3144 = vweird.f32 %v3138
        %vm3145 = vweird.f32 %v3139
        %vm3146 = vmor %vm3144, %vm3145
        %v3147 = vsel %vm3146, %v3139, %v3143
        %v3148 = vand.u32 2147483647, %v3138
        %vm3149 = vcmp.eq.f32.partialorder %v3148, 8.507059e+37
        %v3150 = vand.u32 %v3138, 2147483648
        %v3151 = vor.u32 1.1754944e-38, %v3150
        %v3152 = vsel %vm3149, %v3151, %v3147
        %v3153 = vmul.f32 %v3128, %v3152
        %v3154 = vmin.f32 %v3153, 1.0
        %v3155 = vmax.f32 %v3154, -1.0
        %v3156 = vmul.f32 %v2383, %v2383
        %v3157 = vmin.f32 16.0, %v3156
        %v3158 = vmul.f32 %v3157, 2.1237322e-06
        %v3159 = vadd.f32 %v3158, 0.00028619796
        %v3160 = vmul.f32 %v3157, %v3159
        %v3161 = vadd.f32 %v3160, 0.0036580483
        %v3162 = vmul.f32 %v3157, %v3161
        %v3163 = vadd.f32 %v3162, 0.05243302
        %v3164 = vmul.f32 %v3157, %v3163
        %v3165 = vadd.f32 %v3164, 0.18741608
        %v3166 = vmul.f32 %v3157, %v3165
        %v3167 = vadd.f32 %v3166, 1.1283791
        %v3168 = vmul.f32 %v2383, %v3167
        %v3169 = vmul.f32 %v3157, 3.8918573e-05
        %v3170 = vadd.f32 %v3169, 0.001143296
        %v3171 = vmul.f32 %v3157, %v3170
        %v3172 = vadd.f32 %v3171, 0.014752088
        %v3173 = vmul.f32 %v3157, %v3172
        %v3174 = vadd.f32 %v3173, 0.112945676
        %v3175 = vmul.f32 %v3157, %v3174
        %v3176 = vadd.f32 %v3175, 0.4994258
        %v3177 = vmul.f32 %v3157, %v3176
        %v3178 = vadd.f32 %v3177, 1.0
        %v3179 = vrcp.pop %v3178
        %v3180 = vmul.f32 %v3178, %v3179
        %v3181 = vsub.f32 1.0, %v3180
        %v3182 = vmul.f32 %v3179, %v3181
        %v3183 = vadd.f32 %v3179, %v3182
        %vm3184 = vweird.f32 %v3178
        %vm3185 = vweird.f32 %v3179
        %vm3186 = vmor %vm3184, %vm3185
        %v3187 = vsel %vm3186, %v3179, %v3183
        %v3188 = vand.u32 2147483647, %v3178
        %vm3189 = vcmp.eq.f32.partialorder %v3188, 8.507059e+37
        %v3190 = vand.u32 %v3178, 2147483648
        %v3191 = vor.u32 1.1754944e-38, %v3190
        %v3192 = vsel %vm3189, %v3191, %v3187
        %v3193 = vmul.f32 %v3168, %v3192
        %v3194 = vmin.f32 %v3193, 1.0
        %v3195 = vmax.f32 %v3194, -1.0
        %v3196 = vmul.f32 %v2384, %v2384
        %v3197 = vmin.f32 16.0, %v3196
        %v3198 = vmul.f32 %v3197, 2.1237322e-06
        %v3199 = vadd.f32 %v3198, 0.00028619796
        %v3200 = vmul.f32 %v3197, %v3199
        %v3201 = vadd.f32 %v3200, 0.0036580483
        %v3202 = vmul.f32 %v3197, %v3201
        %v3203 = vadd.f32 %v3202, 0.05243302
        %v3204 = vmul.f32 %v3197, %v3203
        %v3205 = vadd.f32 %v3204, 0.18741608
        %v3206 = vmul.f32 %v3197, %v3205
        %v3207 = vadd.f32 %v3206, 1.1283791
        %v3208 = vmul.f32 %v2384, %v3207
        %v3209 = vmul.f32 %v3197, 3.8918573e-05
        %v3210 = vadd.f32 %v3209, 0.001143296
        %v3211 = vmul.f32 %v3197, %v3210
        %v3212 = vadd.f32 %v3211, 0.014752088
        %v3213 = vmul.f32 %v3197, %v3212
        %v3214 = vadd.f32 %v3213, 0.112945676
        %v3215 = vmul.f32 %v3197, %v3214
        %v3216 = vadd.f32 %v3215, 0.4994258
        %v3217 = vmul.f32 %v3197, %v3216
        %v3218 = vadd.f32 %v3217, 1.0
        %v3219 = vrcp.pop %v3218
        %v3220 = vmul.f32 %v3218, %v3219
        %v3221 = vsub.f32 1.0, %v3220
        %v3222 = vmul.f32 %v3219, %v3221
        %v3223 = vadd.f32 %v3219, %v3222
        %vm3224 = vweird.f32 %v3218
        %vm3225 = vweird.f32 %v3219
        %vm3226 = vmor %vm3224, %vm3225
        %v3227 = vsel %vm3226, %v3219, %v3223
        %v3228 = vand.u32 2147483647, %v3218
        %vm3229 = vcmp.eq.f32.partialorder %v3228, 8.507059e+37
        %v3230 = vand.u32 %v3218, 2147483648
        %v3231 = vor.u32 1.1754944e-38, %v3230
        %v3232 = vsel %vm3229, %v3231, %v3227
        %v3233 = vmul.f32 %v3208, %v3232
        %v3234 = vmin.f32 %v3233, 1.0
        %v3235 = vmax.f32 %v3234, -1.0
        %v3236 = vmul.f32 %v2385, %v2385
        %v3237 = vmin.f32 16.0, %v3236
        %v3238 = vmul.f32 %v3237, 2.1237322e-06
        %v3239 = vadd.f32 %v3238, 0.00028619796
        %v3240 = vmul.f32 %v3237, %v3239
        %v3241 = vadd.f32 %v3240, 0.0036580483
        %v3242 = vmul.f32 %v3237, %v3241
        %v3243 = vadd.f32 %v3242, 0.05243302
        %v3244 = vmul.f32 %v3237, %v3243
        %v3245 = vadd.f32 %v3244, 0.18741608
        %v3246 = vmul.f32 %v3237, %v3245
        %v3247 = vadd.f32 %v3246, 1.1283791
        %v3248 = vmul.f32 %v2385, %v3247
        %v3249 = vmul.f32 %v3237, 3.8918573e-05
        %v3250 = vadd.f32 %v3249, 0.001143296
        %v3251 = vmul.f32 %v3237, %v3250
        %v3252 = vadd.f32 %v3251, 0.014752088
        %v3253 = vmul.f32 %v3237, %v3252
        %v3254 = vadd.f32 %v3253, 0.112945676
        %v3255 = vmul.f32 %v3237, %v3254
        %v3256 = vadd.f32 %v3255, 0.4994258
        %v3257 = vmul.f32 %v3237, %v3256
        %v3258 = vadd.f32 %v3257, 1.0
        %v3259 = vrcp.pop %v3258
        %v3260 = vmul.f32 %v3258, %v3259
        %v3261 = vsub.f32 1.0, %v3260
        %v3262 = vmul.f32 %v3259, %v3261
        %v3263 = vadd.f32 %v3259, %v3262
        %vm3264 = vweird.f32 %v3258
        %vm3265 = vweird.f32 %v3259
        %vm3266 = vmor %vm3264, %vm3265
        %v3267 = vsel %vm3266, %v3259, %v3263
        %v3268 = vand.u32 2147483647, %v3258
        %vm3269 = vcmp.eq.f32.partialorder %v3268, 8.507059e+37
        %v3270 = vand.u32 %v3258, 2147483648
        %v3271 = vor.u32 1.1754944e-38, %v3270
        %v3272 = vsel %vm3269, %v3271, %v3267
        %v3273 = vmul.f32 %v3248, %v3272
        %v3274 = vmin.f32 %v3273, 1.0
        %v3275 = vmax.f32 %v3274, -1.0
        %v3276 = vmul.f32 %v2386, %v2386
        %v3277 = vmin.f32 16.0, %v3276
        %v3278 = vmul.f32 %v3277, 2.1237322e-06
        %v3279 = vadd.f32 %v3278, 0.00028619796
        %v3280 = vmul.f32 %v3277, %v3279
        %v3281 = vadd.f32 %v3280, 0.0036580483
        %v3282 = vmul.f32 %v3277, %v3281
        %v3283 = vadd.f32 %v3282, 0.05243302
        %v3284 = vmul.f32 %v3277, %v3283
        %v3285 = vadd.f32 %v3284, 0.18741608
        %v3286 = vmul.f32 %v3277, %v3285
        %v3287 = vadd.f32 %v3286, 1.1283791
        %v3288 = vmul.f32 %v2386, %v3287
        %v3289 = vmul.f32 %v3277, 3.8918573e-05
        %v3290 = vadd.f32 %v3289, 0.001143296
        %v3291 = vmul.f32 %v3277, %v3290
        %v3292 = vadd.f32 %v3291, 0.014752088
        %v3293 = vmul.f32 %v3277, %v3292
        %v3294 = vadd.f32 %v3293, 0.112945676
        %v3295 = vmul.f32 %v3277, %v3294
        %v3296 = vadd.f32 %v3295, 0.4994258
        %v3297 = vmul.f32 %v3277, %v3296
        %v3298 = vadd.f32 %v3297, 1.0
        %v3299 = vrcp.pop %v3298
        %v3300 = vmul.f32 %v3298, %v3299
        %v3301 = vsub.f32 1.0, %v3300
        %v3302 = vmul.f32 %v3299, %v3301
        %v3303 = vadd.f32 %v3299, %v3302
        %vm3304 = vweird.f32 %v3298
        %vm3305 = vweird.f32 %v3299
        %vm3306 = vmor %vm3304, %vm3305
        %v3307 = vsel %vm3306, %v3299, %v3303
        %v3308 = vand.u32 2147483647, %v3298
        %vm3309 = vcmp.eq.f32.partialorder %v3308, 8.507059e+37
        %v3310 = vand.u32 %v3298, 2147483648
        %v3311 = vor.u32 1.1754944e-38, %v3310
        %v3312 = vsel %vm3309, %v3311, %v3307
        %v3313 = vmul.f32 %v3288, %v3312
        %v3314 = vmin.f32 %v3313, 1.0
        %v3315 = vmax.f32 %v3314, -1.0
        %v3316 = vmul.f32 %v2387, %v2387
        %v3317 = vmin.f32 16.0, %v3316
        %v3318 = vmul.f32 %v3317, 2.1237322e-06
        %v3319 = vadd.f32 %v3318, 0.00028619796
        %v3320 = vmul.f32 %v3317, %v3319
        %v3321 = vadd.f32 %v3320, 0.0036580483
        %v3322 = vmul.f32 %v3317, %v3321
        %v3323 = vadd.f32 %v3322, 0.05243302
        %v3324 = vmul.f32 %v3317, %v3323
        %v3325 = vadd.f32 %v3324, 0.18741608
        %v3326 = vmul.f32 %v3317, %v3325
        %v3327 = vadd.f32 %v3326, 1.1283791
        %v3328 = vmul.f32 %v2387, %v3327
        %v3329 = vmul.f32 %v3317, 3.8918573e-05
        %v3330 = vadd.f32 %v3329, 0.001143296
        %v3331 = vmul.f32 %v3317, %v3330
        %v3332 = vadd.f32 %v3331, 0.014752088
        %v3333 = vmul.f32 %v3317, %v3332
        %v3334 = vadd.f32 %v3333, 0.112945676
        %v3335 = vmul.f32 %v3317, %v3334
        %v3336 = vadd.f32 %v3335, 0.4994258
        %v3337 = vmul.f32 %v3317, %v3336
        %v3338 = vadd.f32 %v3337, 1.0
        %v3339 = vrcp.pop %v3338
        %v3340 = vmul.f32 %v3338, %v3339
        %v3341 = vsub.f32 1.0, %v3340
        %v3342 = vmul.f32 %v3339, %v3341
        %v3343 = vadd.f32 %v3339, %v3342
        %vm3344 = vweird.f32 %v3338
        %vm3345 = vweird.f32 %v3339
        %vm3346 = vmor %vm3344, %vm3345
        %v3347 = vsel %vm3346, %v3339, %v3343
        %v3348 = vand.u32 2147483647, %v3338
        %vm3349 = vcmp.eq.f32.partialorder %v3348, 8.507059e+37
        %v3350 = vand.u32 %v3338, 2147483648
        %v3351 = vor.u32 1.1754944e-38, %v3350
        %v3352 = vsel %vm3349, %v3351, %v3347
        %v3353 = vmul.f32 %v3328, %v3352
        %v3354 = vmin.f32 %v3353, 1.0
        %v3355 = vmax.f32 %v3354, -1.0
        %v3356 = vmul.f32 %v2388, %v2388
        %v3357 = vmin.f32 16.0, %v3356
        %v3358 = vmul.f32 %v3357, 2.1237322e-06
        %v3359 = vadd.f32 %v3358, 0.00028619796
        %v3360 = vmul.f32 %v3357, %v3359
        %v3361 = vadd.f32 %v3360, 0.0036580483
        %v3362 = vmul.f32 %v3357, %v3361
        %v3363 = vadd.f32 %v3362, 0.05243302
        %v3364 = vmul.f32 %v3357, %v3363
        %v3365 = vadd.f32 %v3364, 0.18741608
        %v3366 = vmul.f32 %v3357, %v3365
        %v3367 = vadd.f32 %v3366, 1.1283791
        %v3368 = vmul.f32 %v2388, %v3367
        %v3369 = vmul.f32 %v3357, 3.8918573e-05
        %v3370 = vadd.f32 %v3369, 0.001143296
        %v3371 = vmul.f32 %v3357, %v3370
        %v3372 = vadd.f32 %v3371, 0.014752088
        %v3373 = vmul.f32 %v3357, %v3372
        %v3374 = vadd.f32 %v3373, 0.112945676
        %v3375 = vmul.f32 %v3357, %v3374
        %v3376 = vadd.f32 %v3375, 0.4994258
        %v3377 = vmul.f32 %v3357, %v3376
        %v3378 = vadd.f32 %v3377, 1.0
        %v3379 = vrcp.pop %v3378
        %v3380 = vmul.f32 %v3378, %v3379
        %v3381 = vsub.f32 1.0, %v3380
        %v3382 = vmul.f32 %v3379, %v3381
        %v3383 = vadd.f32 %v3379, %v3382
        %vm3384 = vweird.f32 %v3378
        %vm3385 = vweird.f32 %v3379
        %vm3386 = vmor %vm3384, %vm3385
        %v3387 = vsel %vm3386, %v3379, %v3383
        %v3388 = vand.u32 2147483647, %v3378
        %vm3389 = vcmp.eq.f32.partialorder %v3388, 8.507059e+37
        %v3390 = vand.u32 %v3378, 2147483648
        %v3391 = vor.u32 1.1754944e-38, %v3390
        %v3392 = vsel %vm3389, %v3391, %v3387
        %v3393 = vmul.f32 %v3368, %v3392
        %v3394 = vmin.f32 %v3393, 1.0
        %v3395 = vmax.f32 %v3394, -1.0
        %v3396 = vmul.f32 %v2389, %v2389
        %v3397 = vmin.f32 16.0, %v3396
        %v3398 = vmul.f32 %v3397, 2.1237322e-06
        %v3399 = vadd.f32 %v3398, 0.00028619796
        %v3400 = vmul.f32 %v3397, %v3399
        %v3401 = vadd.f32 %v3400, 0.0036580483
        %v3402 = vmul.f32 %v3397, %v3401
        %v3403 = vadd.f32 %v3402, 0.05243302
        %v3404 = vmul.f32 %v3397, %v3403
        %v3405 = vadd.f32 %v3404, 0.18741608
        %v3406 = vmul.f32 %v3397, %v3405
        %v3407 = vadd.f32 %v3406, 1.1283791
        %v3408 = vmul.f32 %v2389, %v3407
        %v3409 = vmul.f32 %v3397, 3.8918573e-05
        %v3410 = vadd.f32 %v3409, 0.001143296
        %v3411 = vmul.f32 %v3397, %v3410
        %v3412 = vadd.f32 %v3411, 0.014752088
        %v3413 = vmul.f32 %v3397, %v3412
        %v3414 = vadd.f32 %v3413, 0.112945676
        %v3415 = vmul.f32 %v3397, %v3414
        %v3416 = vadd.f32 %v3415, 0.4994258
        %v3417 = vmul.f32 %v3397, %v3416
        %v3418 = vadd.f32 %v3417, 1.0
        %v3419 = vrcp.pop %v3418
        %v3420 = vmul.f32 %v3418, %v3419
        %v3421 = vsub.f32 1.0, %v3420
        %v3422 = vmul.f32 %v3419, %v3421
        %v3423 = vadd.f32 %v3419, %v3422
        %vm3424 = vweird.f32 %v3418
        %vm3425 = vweird.f32 %v3419
        %vm3426 = vmor %vm3424, %vm3425
        %v3427 = vsel %vm3426, %v3419, %v3423
        %v3428 = vand.u32 2147483647, %v3418
        %vm3429 = vcmp.eq.f32.partialorder %v3428, 8.507059e+37
        %v3430 = vand.u32 %v3418, 2147483648
        %v3431 = vor.u32 1.1754944e-38, %v3430
        %v3432 = vsel %vm3429, %v3431, %v3427
        %v3433 = vmul.f32 %v3408, %v3432
        %v3434 = vmin.f32 %v3433, 1.0
        %v3435 = vmax.f32 %v3434, -1.0
        %v3436 = vmul.f32 %v2390, %v2390
        %v3437 = vmin.f32 16.0, %v3436
        %v3438 = vmul.f32 %v3437, 2.1237322e-06
        %v3439 = vadd.f32 %v3438, 0.00028619796
        %v3440 = vmul.f32 %v3437, %v3439
        %v3441 = vadd.f32 %v3440, 0.0036580483
        %v3442 = vmul.f32 %v3437, %v3441
        %v3443 = vadd.f32 %v3442, 0.05243302
        %v3444 = vmul.f32 %v3437, %v3443
        %v3445 = vadd.f32 %v3444, 0.18741608
        %v3446 = vmul.f32 %v3437, %v3445
        %v3447 = vadd.f32 %v3446, 1.1283791
        %v3448 = vmul.f32 %v2390, %v3447
        %v3449 = vmul.f32 %v3437, 3.8918573e-05
        %v3450 = vadd.f32 %v3449, 0.001143296
        %v3451 = vmul.f32 %v3437, %v3450
        %v3452 = vadd.f32 %v3451, 0.014752088
        %v3453 = vmul.f32 %v3437, %v3452
        %v3454 = vadd.f32 %v3453, 0.112945676
        %v3455 = vmul.f32 %v3437, %v3454
        %v3456 = vadd.f32 %v3455, 0.4994258
        %v3457 = vmul.f32 %v3437, %v3456
        %v3458 = vadd.f32 %v3457, 1.0
        %v3459 = vrcp.pop %v3458
        %v3460 = vmul.f32 %v3458, %v3459
        %v3461 = vsub.f32 1.0, %v3460
        %v3462 = vmul.f32 %v3459, %v3461
        %v3463 = vadd.f32 %v3459, %v3462
        %vm3464 = vweird.f32 %v3458
        %vm3465 = vweird.f32 %v3459
        %vm3466 = vmor %vm3464, %vm3465
        %v3467 = vsel %vm3466, %v3459, %v3463
        %v3468 = vand.u32 2147483647, %v3458
        %vm3469 = vcmp.eq.f32.partialorder %v3468, 8.507059e+37
        %v3470 = vand.u32 %v3458, 2147483648
        %v3471 = vor.u32 1.1754944e-38, %v3470
        %v3472 = vsel %vm3469, %v3471, %v3467
        %v3473 = vmul.f32 %v3448, %v3472
        %v3474 = vmin.f32 %v3473, 1.0
        %v3475 = vmax.f32 %v3474, -1.0
        %v3476 = vmul.f32 %v2391, %v2391
        %v3477 = vmin.f32 16.0, %v3476
        %v3478 = vmul.f32 %v3477, 2.1237322e-06
        %v3479 = vadd.f32 %v3478, 0.00028619796
        %v3480 = vmul.f32 %v3477, %v3479
        %v3481 = vadd.f32 %v3480, 0.0036580483
        %v3482 = vmul.f32 %v3477, %v3481
        %v3483 = vadd.f32 %v3482, 0.05243302
        %v3484 = vmul.f32 %v3477, %v3483
        %v3485 = vadd.f32 %v3484, 0.18741608
        %v3486 = vmul.f32 %v3477, %v3485
        %v3487 = vadd.f32 %v3486, 1.1283791
        %v3488 = vmul.f32 %v2391, %v3487
        %v3489 = vmul.f32 %v3477, 3.8918573e-05
        %v3490 = vadd.f32 %v3489, 0.001143296
        %v3491 = vmul.f32 %v3477, %v3490
        %v3492 = vadd.f32 %v3491, 0.014752088
        %v3493 = vmul.f32 %v3477, %v3492
        %v3494 = vadd.f32 %v3493, 0.112945676
        %v3495 = vmul.f32 %v3477, %v3494
        %v3496 = vadd.f32 %v3495, 0.4994258
        %v3497 = vmul.f32 %v3477, %v3496
        %v3498 = vadd.f32 %v3497, 1.0
        %v3499 = vrcp.pop %v3498
        %v3500 = vmul.f32 %v3498, %v3499
        %v3501 = vsub.f32 1.0, %v3500
        %v3502 = vmul.f32 %v3499, %v3501
        %v3503 = vadd.f32 %v3499, %v3502
        %vm3504 = vweird.f32 %v3498
        %vm3505 = vweird.f32 %v3499
        %vm3506 = vmor %vm3504, %vm3505
        %v3507 = vsel %vm3506, %v3499, %v3503
        %v3508 = vand.u32 2147483647, %v3498
        %vm3509 = vcmp.eq.f32.partialorder %v3508, 8.507059e+37
        %v3510 = vand.u32 %v3498, 2147483648
        %v3511 = vor.u32 1.1754944e-38, %v3510
        %v3512 = vsel %vm3509, %v3511, %v3507
        %v3513 = vmul.f32 %v3488, %v3512
        %v3514 = vmin.f32 %v3513, 1.0
        %v3515 = vmax.f32 %v3514, -1.0
        %v3516 = vmul.f32 %v2392, %v2392
        %v3517 = vmin.f32 16.0, %v3516
        %v3518 = vmul.f32 %v3517, 2.1237322e-06
        %v3519 = vadd.f32 %v3518, 0.00028619796
        %v3520 = vmul.f32 %v3517, %v3519
        %v3521 = vadd.f32 %v3520, 0.0036580483
        %v3522 = vmul.f32 %v3517, %v3521
        %v3523 = vadd.f32 %v3522, 0.05243302
        %v3524 = vmul.f32 %v3517, %v3523
        %v3525 = vadd.f32 %v3524, 0.18741608
        %v3526 = vmul.f32 %v3517, %v3525
        %v3527 = vadd.f32 %v3526, 1.1283791
        %v3528 = vmul.f32 %v2392, %v3527
        %v3529 = vmul.f32 %v3517, 3.8918573e-05
        %v3530 = vadd.f32 %v3529, 0.001143296
        %v3531 = vmul.f32 %v3517, %v3530
        %v3532 = vadd.f32 %v3531, 0.014752088
        %v3533 = vmul.f32 %v3517, %v3532
        %v3534 = vadd.f32 %v3533, 0.112945676
        %v3535 = vmul.f32 %v3517, %v3534
        %v3536 = vadd.f32 %v3535, 0.4994258
        %v3537 = vmul.f32 %v3517, %v3536
        %v3538 = vadd.f32 %v3537, 1.0
        %v3539 = vrcp.pop %v3538
        %v3540 = vmul.f32 %v3538, %v3539
        %v3541 = vsub.f32 1.0, %v3540
        %v3542 = vmul.f32 %v3539, %v3541
        %v3543 = vadd.f32 %v3539, %v3542
        %vm3544 = vweird.f32 %v3538
        %vm3545 = vweird.f32 %v3539
        %vm3546 = vmor %vm3544, %vm3545
        %v3547 = vsel %vm3546, %v3539, %v3543
        %v3548 = vand.u32 2147483647, %v3538
        %vm3549 = vcmp.eq.f32.partialorder %v3548, 8.507059e+37
        %v3550 = vand.u32 %v3538, 2147483648
        %v3551 = vor.u32 1.1754944e-38, %v3550
        %v3552 = vsel %vm3549, %v3551, %v3547
        %v3553 = vmul.f32 %v3528, %v3552
        %v3554 = vmin.f32 %v3553, 1.0
        %v3555 = vmax.f32 %v3554, -1.0
        %v3556 = vmul.f32 %v2393, %v2393
        %v3557 = vmin.f32 16.0, %v3556
        %v3558 = vmul.f32 %v3557, 2.1237322e-06
        %v3559 = vadd.f32 %v3558, 0.00028619796
        %v3560 = vmul.f32 %v3557, %v3559
        %v3561 = vadd.f32 %v3560, 0.0036580483
        %v3562 = vmul.f32 %v3557, %v3561
        %v3563 = vadd.f32 %v3562, 0.05243302
        %v3564 = vmul.f32 %v3557, %v3563
        %v3565 = vadd.f32 %v3564, 0.18741608
        %v3566 = vmul.f32 %v3557, %v3565
        %v3567 = vadd.f32 %v3566, 1.1283791
        %v3568 = vmul.f32 %v2393, %v3567
        %v3569 = vmul.f32 %v3557, 3.8918573e-05
        %v3570 = vadd.f32 %v3569, 0.001143296
        %v3571 = vmul.f32 %v3557, %v3570
        %v3572 = vadd.f32 %v3571, 0.014752088
        %v3573 = vmul.f32 %v3557, %v3572
        %v3574 = vadd.f32 %v3573, 0.112945676
        %v3575 = vmul.f32 %v3557, %v3574
        %v3576 = vadd.f32 %v3575, 0.4994258
        %v3577 = vmul.f32 %v3557, %v3576
        %v3578 = vadd.f32 %v3577, 1.0
        %v3579 = vrcp.pop %v3578
        %v3580 = vmul.f32 %v3578, %v3579
        %v3581 = vsub.f32 1.0, %v3580
        %v3582 = vmul.f32 %v3579, %v3581
        %v3583 = vadd.f32 %v3579, %v3582
        %vm3584 = vweird.f32 %v3578
        %vm3585 = vweird.f32 %v3579
        %vm3586 = vmor %vm3584, %vm3585
        %v3587 = vsel %vm3586, %v3579, %v3583
        %v3588 = vand.u32 2147483647, %v3578
        %vm3589 = vcmp.eq.f32.partialorder %v3588, 8.507059e+37
        %v3590 = vand.u32 %v3578, 2147483648
        %v3591 = vor.u32 1.1754944e-38, %v3590
        %v3592 = vsel %vm3589, %v3591, %v3587
        %v3593 = vmul.f32 %v3568, %v3592
        %v3594 = vmin.f32 %v3593, 1.0
        %v3595 = vmax.f32 %v3594, -1.0
        %v3596 = vmul.f32 %v2394, %v2394
        %v3597 = vmin.f32 16.0, %v3596
        %v3598 = vmul.f32 %v3597, 2.1237322e-06
        %v3599 = vadd.f32 %v3598, 0.00028619796
        %v3600 = vmul.f32 %v3597, %v3599
        %v3601 = vadd.f32 %v3600, 0.0036580483
        %v3602 = vmul.f32 %v3597, %v3601
        %v3603 = vadd.f32 %v3602, 0.05243302
        %v3604 = vmul.f32 %v3597, %v3603
        %v3605 = vadd.f32 %v3604, 0.18741608
        %v3606 = vmul.f32 %v3597, %v3605
        %v3607 = vadd.f32 %v3606, 1.1283791
        %v3608 = vmul.f32 %v2394, %v3607
        %v3609 = vmul.f32 %v3597, 3.8918573e-05
        %v3610 = vadd.f32 %v3609, 0.001143296
        %v3611 = vmul.f32 %v3597, %v3610
        %v3612 = vadd.f32 %v3611, 0.014752088
        %v3613 = vmul.f32 %v3597, %v3612
        %v3614 = vadd.f32 %v3613, 0.112945676
        %v3615 = vmul.f32 %v3597, %v3614
        %v3616 = vadd.f32 %v3615, 0.4994258
        %v3617 = vmul.f32 %v3597, %v3616
        %v3618 = vadd.f32 %v3617, 1.0
        %v3619 = vrcp.pop %v3618
        %v3620 = vmul.f32 %v3618, %v3619
        %v3621 = vsub.f32 1.0, %v3620
        %v3622 = vmul.f32 %v3619, %v3621
        %v3623 = vadd.f32 %v3619, %v3622
        %vm3624 = vweird.f32 %v3618
        %vm3625 = vweird.f32 %v3619
        %vm3626 = vmor %vm3624, %vm3625
        %v3627 = vsel %vm3626, %v3619, %v3623
        %v3628 = vand.u32 2147483647, %v3618
        %vm3629 = vcmp.eq.f32.partialorder %v3628, 8.507059e+37
        %v3630 = vand.u32 %v3618, 2147483648
        %v3631 = vor.u32 1.1754944e-38, %v3630
        %v3632 = vsel %vm3629, %v3631, %v3627
        %v3633 = vmul.f32 %v3608, %v3632
        %v3634 = vmin.f32 %v3633, 1.0
        %v3635 = vmax.f32 %v3634, -1.0
        %v3636 = vmul.f32 %v2395, %v2395
        %v3637 = vmin.f32 16.0, %v3636
        %v3638 = vmul.f32 %v3637, 2.1237322e-06
        %v3639 = vadd.f32 %v3638, 0.00028619796
        %v3640 = vmul.f32 %v3637, %v3639
        %v3641 = vadd.f32 %v3640, 0.0036580483
        %v3642 = vmul.f32 %v3637, %v3641
        %v3643 = vadd.f32 %v3642, 0.05243302
        %v3644 = vmul.f32 %v3637, %v3643
        %v3645 = vadd.f32 %v3644, 0.18741608
        %v3646 = vmul.f32 %v3637, %v3645
        %v3647 = vadd.f32 %v3646, 1.1283791
        %v3648 = vmul.f32 %v2395, %v3647
        %v3649 = vmul.f32 %v3637, 3.8918573e-05
        %v3650 = vadd.f32 %v3649, 0.001143296
        %v3651 = vmul.f32 %v3637, %v3650
        %v3652 = vadd.f32 %v3651, 0.014752088
        %v3653 = vmul.f32 %v3637, %v3652
        %v3654 = vadd.f32 %v3653, 0.112945676
        %v3655 = vmul.f32 %v3637, %v3654
        %v3656 = vadd.f32 %v3655, 0.4994258
        %v3657 = vmul.f32 %v3637, %v3656
        %v3658 = vadd.f32 %v3657, 1.0
        %v3659 = vrcp.pop %v3658
        %v3660 = vmul.f32 %v3658, %v3659
        %v3661 = vsub.f32 1.0, %v3660
        %v3662 = vmul.f32 %v3659, %v3661
        %v3663 = vadd.f32 %v3659, %v3662
        %vm3664 = vweird.f32 %v3658
        %vm3665 = vweird.f32 %v3659
        %vm3666 = vmor %vm3664, %vm3665
        %v3667 = vsel %vm3666, %v3659, %v3663
        %v3668 = vand.u32 2147483647, %v3658
        %vm3669 = vcmp.eq.f32.partialorder %v3668, 8.507059e+37
        %v3670 = vand.u32 %v3658, 2147483648
        %v3671 = vor.u32 1.1754944e-38, %v3670
        %v3672 = vsel %vm3669, %v3671, %v3667
        %v3673 = vmul.f32 %v3648, %v3672
        %v3674 = vmin.f32 %v3673, 1.0
        %v3675 = vmax.f32 %v3674, -1.0
        %v3676 = vadd.f32 %v2435, 1.0
        %v3677 = vadd.f32 %v2475, 1.0
        %v3678 = vadd.f32 %v2515, 1.0
        %v3679 = vadd.f32 %v2555, 1.0
        %v3680 = vadd.f32 %v2595, 1.0
        %v3681 = vadd.f32 %v2635, 1.0
        %v3682 = vadd.f32 %v2675, 1.0
        %v3683 = vadd.f32 %v2715, 1.0
        %v3684 = vadd.f32 %v2755, 1.0
        %v3685 = vadd.f32 %v2795, 1.0
        %v3686 = vadd.f32 %v2835, 1.0
        %v3687 = vadd.f32 %v2875, 1.0
        %v3688 = vadd.f32 %v2915, 1.0
        %v3689 = vadd.f32 %v2955, 1.0
        %v3690 = vadd.f32 %v2995, 1.0
        %v3691 = vadd.f32 %v3035, 1.0
        %v3692 = vadd.f32 %v3075, 1.0
        %v3693 = vadd.f32 %v3115, 1.0
        %v3694 = vadd.f32 %v3155, 1.0
        %v3695 = vadd.f32 %v3195, 1.0
        %v3696 = vadd.f32 %v3235, 1.0
        %v3697 = vadd.f32 %v3275, 1.0
        %v3698 = vadd.f32 %v3315, 1.0
        %v3699 = vadd.f32 %v3355, 1.0
        %v3700 = vadd.f32 %v3395, 1.0
        %v3701 = vadd.f32 %v3435, 1.0
        %v3702 = vadd.f32 %v3475, 1.0
        %v3703 = vadd.f32 %v3515, 1.0
        %v3704 = vadd.f32 %v3555, 1.0
        %v3705 = vadd.f32 %v3595, 1.0
        %v3706 = vadd.f32 %v3635, 1.0
        %v3707 = vadd.f32 %v3675, 1.0
        %v3708 = vmul.f32 %v2332, %v3676
        %v3709 = vmul.f32 %v2333, %v3677
        %v3710 = vmul.f32 %v2334, %v3678
        %v3711 = vmul.f32 %v2335, %v3679
        %v3712 = vmul.f32 %v2336, %v3680
        %v3713 = vmul.f32 %v2337, %v3681
        %v3714 = vmul.f32 %v2338, %v3682
        %v3715 = vmul.f32 %v2339, %v3683
        %v3716 = vmul.f32 %v2340, %v3684
        %v3717 = vmul.f32 %v2341, %v3685
        %v3718 = vmul.f32 %v2342, %v3686
        %v3719 = vmul.f32 %v2343, %v3687
        %v3720 = vmul.f32 %v2344, %v3688
        %v3721 = vmul.f32 %v2345, %v3689
        %v3722 = vmul.f32 %v2346, %v3690
        %v3723 = vmul.f32 %v2347, %v3691
        %v3724 = vmul.f32 %v2348, %v3692
        %v3725 = vmul.f32 %v2349, %v3693
        %v3726 = vmul.f32 %v2350, %v3694
        %v3727 = vmul.f32 %v2351, %v3695
        %v3728 = vmul.f32 %v2352, %v3696
        %v3729 = vmul.f32 %v2353, %v3697
        %v3730 = vmul.f32 %v2354, %v3698
        %v3731 = vmul.f32 %v2355, %v3699
        %v3732 = vmul.f32 %v2356, %v3700
        %v3733 = vmul.f32 %v2357, %v3701
        %v3734 = vmul.f32 %v2358, %v3702
        %v3735 = vmul.f32 %v2359, %v3703
        %v3736 = vmul.f32 %v2360, %v3704
        %v3737 = vmul.f32 %v2361, %v3705
        %v3738 = vmul.f32 %v2362, %v3706
        %v3739 = vmul.f32 %v2363, %v3707
        %v3740 = vpack.c.bf16 %v3710, %v3708
        %v3741 = vpack.c.bf16 %v3711, %v3709
        %v3742 = vpack.c.bf16 %v3714, %v3712
        %v3743 = vpack.c.bf16 %v3715, %v3713
        %v3744 = vpack.c.bf16 %v3718, %v3716
        %v3745 = vpack.c.bf16 %v3719, %v3717
        %v3746 = vpack.c.bf16 %v3722, %v3720
        %v3747 = vpack.c.bf16 %v3723, %v3721
        %v3748 = vpack.c.bf16 %v3726, %v3724
        %v3749 = vpack.c.bf16 %v3727, %v3725
        %v3750 = vpack.c.bf16 %v3730, %v3728
        %v3751 = vpack.c.bf16 %v3731, %v3729
        %v3752 = vpack.c.bf16 %v3734, %v3732
        %v3753 = vpack.c.bf16 %v3735, %v3733
        %v3754 = vpack.c.bf16 %v3738, %v3736
        %v3755 = vpack.c.bf16 %v3739, %v3737
        %v3756 = vld [vmem:[%s5] sm:$0xf]
        %v3757 = vld [vmem:[%s5 + $0x4] sm:$0xf]
        %v3758 = vld [vmem:[%s5 + $0x8] sm:$0xf]
        %v3759 = vld [vmem:[%s5 + $0xc] sm:$0xf]
        %v3760 = vld [vmem:[%s5 + $0x10] sm:$0xf]
        %v3761 = vld [vmem:[%s5 + $0x14] sm:$0xf]
        %v3762 = vld [vmem:[%s5 + $0x18] sm:$0xf]
        %v3763 = vld [vmem:[%s5 + $0x1c] sm:$0xf]
        %v3764 = vld [vmem:[%s5 + $0x20] sm:$0xf]
        %v3765 = vld [vmem:[%s5 + $0x24] sm:$0xf]
        %v3766 = vld [vmem:[%s5 + $0x28] sm:$0xf]
        %v3767 = vld [vmem:[%s5 + $0x2c] sm:$0xf]
        %v3768 = vld [vmem:[%s5 + $0x30] sm:$0xf]
        %v3769 = vld [vmem:[%s5 + $0x34] sm:$0xf]
        %v3770 = vld [vmem:[%s5 + $0x38] sm:$0xf]
        %v3771 = vld [vmem:[%s5 + $0x3c] sm:$0xf]
        %v3772 = vld [vmem:[%s5 + $0x40] sm:$0xf]
        %v3773 = vld [vmem:[%s5 + $0x44] sm:$0xf]
        %v3774 = vld [vmem:[%s5 + $0x48] sm:$0xf]
        %v3775 = vld [vmem:[%s5 + $0x4c] sm:$0xf]
        %v3776 = vld [vmem:[%s5 + $0x50] sm:$0xf]
        %v3777 = vld [vmem:[%s5 + $0x54] sm:$0xf]
        %v3778 = vld [vmem:[%s5 + $0x58] sm:$0xf]
        %v3779 = vld [vmem:[%s5 + $0x5c] sm:$0xf]
        %v3780 = vld [vmem:[%s5 + $0x60] sm:$0xf]
        %v3781 = vld [vmem:[%s5 + $0x64] sm:$0xf]
        %v3782 = vld [vmem:[%s5 + $0x68] sm:$0xf]
        %v3783 = vld [vmem:[%s5 + $0x6c] sm:$0xf]
        %v3784 = vld [vmem:[%s5 + $0x70] sm:$0xf]
        %v3785 = vld [vmem:[%s5 + $0x74] sm:$0xf]
        %v3786 = vld [vmem:[%s5 + $0x78] sm:$0xf]
        %v3787 = vld [vmem:[%s5 + $0x7c] sm:$0xf]
        %v3788 = vld [vmem:[%s6] sm:$0x1]
        %v3790 = vperm.slane %v3788, 0
        %v3824 = vunpack.c.l.b16 %v3756
        %v3825 = vunpack.c.l.b16 %v3757
        %v3826 = vunpack.c.l.b16 %v3758
        %v3827 = vunpack.c.l.b16 %v3759
        %v3828 = vunpack.c.l.b16 %v3760
        %v3829 = vunpack.c.l.b16 %v3761
        %v3830 = vunpack.c.l.b16 %v3762
        %v3831 = vunpack.c.l.b16 %v3763
        %v3832 = vunpack.c.l.b16 %v3764
        %v3833 = vunpack.c.l.b16 %v3765
        %v3834 = vunpack.c.l.b16 %v3766
        %v3835 = vunpack.c.l.b16 %v3767
        %v3836 = vunpack.c.l.b16 %v3768
        %v3837 = vunpack.c.l.b16 %v3769
        %v3838 = vunpack.c.l.b16 %v3770
        %v3839 = vunpack.c.l.b16 %v3771
        %v3840 = vunpack.c.l.b16 %v3772
        %v3841 = vunpack.c.l.b16 %v3773
        %v3842 = vunpack.c.l.b16 %v3774
        %v3843 = vunpack.c.l.b16 %v3775
        %v3844 = vunpack.c.l.b16 %v3776
        %v3845 = vunpack.c.l.b16 %v3777
        %v3846 = vunpack.c.l.b16 %v3778
        %v3847 = vunpack.c.l.b16 %v3779
        %v3848 = vunpack.c.l.b16 %v3780
        %v3849 = vunpack.c.l.b16 %v3781
        %v3850 = vunpack.c.l.b16 %v3782
        %v3851 = vunpack.c.l.b16 %v3783
        %v3852 = vunpack.c.l.b16 %v3784
        %v3853 = vunpack.c.l.b16 %v3785
        %v3854 = vunpack.c.l.b16 %v3786
        %v3855 = vunpack.c.l.b16 %v3787
        %v3856 = vpack.c.b16 %v3825, %v3824
        %v3857 = vpack.c.b16 %v3827, %v3826
        %v3858 = vpack.c.b16 %v3829, %v3828
        %v3859 = vpack.c.b16 %v3831, %v3830
        %v3860 = vpack.c.b16 %v3833, %v3832
        %v3861 = vpack.c.b16 %v3835, %v3834
        %v3862 = vpack.c.b16 %v3837, %v3836
        %v3863 = vpack.c.b16 %v3839, %v3838
        %v3864 = vpack.c.b16 %v3841, %v3840
        %v3865 = vpack.c.b16 %v3843, %v3842
        %v3866 = vpack.c.b16 %v3845, %v3844
        %v3867 = vpack.c.b16 %v3847, %v3846
        %v3868 = vpack.c.b16 %v3849, %v3848
        %v3869 = vpack.c.b16 %v3851, %v3850
        %v3870 = vpack.c.b16 %v3853, %v3852
        %v3871 = vpack.c.b16 %v3855, %v3854
        %3888 = vmatpush.bf16.msra.mxu0 %v3863
        %3889 = vmatpush.bf16.msra.mxu0 %v3862
        %3890 = vmatpush.bf16.msra.mxu0 %v3861
        %3891 = vmatpush.bf16.msra.mxu0 %v3860
        %3892 = vmatpush.bf16.msra.mxu0 %v3859
        %3893 = vmatpush.bf16.msra.mxu0 %v3858
        %3894 = vmatpush.bf16.msra.mxu0 %v3857
        %3895 = vmatpush.bf16.msra.mxu0 %v3856
        %3896 = vmatmul.bf16.gmra.mxu0 %v3740
        %v3897 = vpop.f32.mrf.mxu0
        %v3898 = vadd.f32 %v3790, %v3897
        %v3899 = vpop.f32.mrf.mxu0
        %v3900 = vadd.f32 %v3790, %v3899
        %3901 = vmatmul.bf16.gmra.mxu0 %v3742
        %v3902 = vpop.f32.mrf.mxu0
        %v3903 = vadd.f32 %v3790, %v3902
        %v3904 = vpop.f32.mrf.mxu0
        %v3905 = vadd.f32 %v3790, %v3904
        %3906 = vmatmul.bf16.gmra.mxu0 %v3744
        %v3907 = vpop.f32.mrf.mxu0
        %v3908 = vadd.f32 %v3790, %v3907
        %v3909 = vpop.f32.mrf.mxu0
        %v3910 = vadd.f32 %v3790, %v3909
        %3911 = vmatmul.bf16.gmra.mxu0 %v3746
        %v3912 = vpop.f32.mrf.mxu0
        %v3913 = vadd.f32 %v3790, %v3912
        %v3914 = vpop.f32.mrf.mxu0
        %v3915 = vadd.f32 %v3790, %v3914
        %3916 = vmatmul.bf16.gmra.mxu0 %v3748
        %v3917 = vpop.f32.mrf.mxu0
        %v3918 = vadd.f32 %v3790, %v3917
        %v3919 = vpop.f32.mrf.mxu0
        %v3920 = vadd.f32 %v3790, %v3919
        %3921 = vmatmul.bf16.gmra.mxu0 %v3750
        %v3922 = vpop.f32.mrf.mxu0
        %v3923 = vadd.f32 %v3790, %v3922
        %v3924 = vpop.f32.mrf.mxu0
        %v3925 = vadd.f32 %v3790, %v3924
        %3926 = vmatmul.bf16.gmra.mxu0 %v3752
        %v3927 = vpop.f32.mrf.mxu0
        %v3928 = vadd.f32 %v3790, %v3927
        %v3929 = vpop.f32.mrf.mxu0
        %v3930 = vadd.f32 %v3790, %v3929
        %3931 = vmatmul.bf16.gmra.mxu0 %v3754
        %v3932 = vpop.f32.mrf.mxu0
        %v3933 = vadd.f32 %v3790, %v3932
        %v3934 = vpop.f32.mrf.mxu0
        %v3935 = vadd.f32 %v3790, %v3934
        %3936 = vdwg.mxu0
        %3937 = vmatpush.bf16.msra.mxu0 %v3871
        %3938 = vmatpush.bf16.msra.mxu0 %v3870
        %3939 = vmatpush.bf16.msra.mxu0 %v3869
        %3940 = vmatpush.bf16.msra.mxu0 %v3868
        %3941 = vmatpush.bf16.msra.mxu0 %v3867
        %3942 = vmatpush.bf16.msra.mxu0 %v3866
        %3943 = vmatpush.bf16.msra.mxu0 %v3865
        %3944 = vmatpush.bf16.msra.mxu0 %v3864
        %3945 = vmatmul.bf16.gmra.mxu0 %v3741
        %v3946 = vpop.f32.mrf.mxu0
        %v3947 = vadd.f32 %v3898, %v3946
        %v3948 = vpop.f32.mrf.mxu0
        %v3949 = vadd.f32 %v3900, %v3948
        %3950 = vmatmul.bf16.gmra.mxu0 %v3743
        %v3951 = vpop.f32.mrf.mxu0
        %v3952 = vadd.f32 %v3903, %v3951
        %v3953 = vpop.f32.mrf.mxu0
        %v3954 = vadd.f32 %v3905, %v3953
        %3955 = vmatmul.bf16.gmra.mxu0 %v3745
        %v3956 = vpop.f32.mrf.mxu0
        %v3957 = vadd.f32 %v3908, %v3956
        %v3958 = vpop.f32.mrf.mxu0
        %v3959 = vadd.f32 %v3910, %v3958
        %3960 = vmatmul.bf16.gmra.mxu0 %v3747
        %v3961 = vpop.f32.mrf.mxu0
        %v3962 = vadd.f32 %v3913, %v3961
        %v3963 = vpop.f32.mrf.mxu0
        %v3964 = vadd.f32 %v3915, %v3963
        %3965 = vmatmul.bf16.gmra.mxu0 %v3749
        %v3966 = vpop.f32.mrf.mxu0
        %v3967 = vadd.f32 %v3918, %v3966
        %v3968 = vpop.f32.mrf.mxu0
        %v3969 = vadd.f32 %v3920, %v3968
        %3970 = vmatmul.bf16.gmra.mxu0 %v3751
        %v3971 = vpop.f32.mrf.mxu0
        %v3972 = vadd.f32 %v3923, %v3971
        %v3973 = vpop.f32.mrf.mxu0
        %v3974 = vadd.f32 %v3925, %v3973
        %3975 = vmatmul.bf16.gmra.mxu0 %v3753
        %v3976 = vpop.f32.mrf.mxu0
        %v3977 = vadd.f32 %v3928, %v3976
        %v3978 = vpop.f32.mrf.mxu0
        %v3979 = vadd.f32 %v3930, %v3978
        %3980 = vmatmul.bf16.gmra.mxu0 %v3755
        %v3981 = vpop.f32.mrf.mxu0
        %v3982 = vadd.f32 %v3933, %v3981
        %v3983 = vpop.f32.mrf.mxu0
        %v3984 = vadd.f32 %v3935, %v3983
        %3985 = vdwg.mxu0
        %v3986 = vmul.f32 %v3947, %v3947
        %v3987 = vmul.f32 %v3949, %v3949
        %v3988 = vmul.f32 %v3952, %v3952
        %v3989 = vmul.f32 %v3954, %v3954
        %v3990 = vmul.f32 %v3957, %v3957
        %v3991 = vmul.f32 %v3959, %v3959
        %v3992 = vmul.f32 %v3962, %v3962
        %v3993 = vmul.f32 %v3964, %v3964
        %v3994 = vmul.f32 %v3967, %v3967
        %v3995 = vmul.f32 %v3969, %v3969
        %v3996 = vmul.f32 %v3972, %v3972
        %v3997 = vmul.f32 %v3974, %v3974
        %v3998 = vmul.f32 %v3977, %v3977
        %v3999 = vmul.f32 %v3979, %v3979
        %v4000 = vmul.f32 %v3982, %v3982
        %v4001 = vmul.f32 %v3984, %v3984
        %4002 = vadd.xlane.f32.xlu0 %v3986
        %v4003 = vpop.xlane.xlu0 %4002
        %4004 = vadd.xlane.f32.xlu0 %v3987
        %v4005 = vpop.xlane.xlu0 %4004
        %4006 = vadd.xlane.f32.xlu0 %v3988
        %v4007 = vpop.xlane.xlu0 %4006
        %4008 = vadd.xlane.f32.xlu0 %v3989
        %v4009 = vpop.xlane.xlu0 %4008
        %4010 = vadd.xlane.f32.xlu0 %v3990
        %v4011 = vpop.xlane.xlu0 %4010
        %4012 = vadd.xlane.f32.xlu0 %v3991
        %v4013 = vpop.xlane.xlu0 %4012
        %4014 = vadd.xlane.f32.xlu0 %v3992
        %v4015 = vpop.xlane.xlu0 %4014
        %4016 = vadd.xlane.f32.xlu0 %v3993
        %v4017 = vpop.xlane.xlu0 %4016
        %4018 = vadd.xlane.f32.xlu0 %v3994
        %v4019 = vpop.xlane.xlu0 %4018
        %4020 = vadd.xlane.f32.xlu0 %v3995
        %v4021 = vpop.xlane.xlu0 %4020
        %4022 = vadd.xlane.f32.xlu0 %v3996
        %v4023 = vpop.xlane.xlu0 %4022
        %4024 = vadd.xlane.f32.xlu0 %v3997
        %v4025 = vpop.xlane.xlu0 %4024
        %4026 = vadd.xlane.f32.xlu0 %v3998
        %v4027 = vpop.xlane.xlu0 %4026
        %4028 = vadd.xlane.f32.xlu0 %v3999
        %v4029 = vpop.xlane.xlu0 %4028
        %4030 = vadd.xlane.f32.xlu0 %v4000
        %v4031 = vpop.xlane.xlu0 %4030
        %4032 = vadd.xlane.f32.xlu0 %v4001
        %v4033 = vpop.xlane.xlu0 %4032
        %v4034 = vmax.f32 %v4003, 1e-24
        %v4035 = vmax.f32 %v4005, 1e-24
        %v4036 = vmax.f32 %v4007, 1e-24
        %v4037 = vmax.f32 %v4009, 1e-24
        %v4038 = vmax.f32 %v4011, 1e-24
        %v4039 = vmax.f32 %v4013, 1e-24
        %v4040 = vmax.f32 %v4015, 1e-24
        %v4041 = vmax.f32 %v4017, 1e-24
        %v4042 = vmax.f32 %v4019, 1e-24
        %v4043 = vmax.f32 %v4021, 1e-24
        %v4044 = vmax.f32 %v4023, 1e-24
        %v4045 = vmax.f32 %v4025, 1e-24
        %v4046 = vmax.f32 %v4027, 1e-24
        %v4047 = vmax.f32 %v4029, 1e-24
        %v4048 = vmax.f32 %v4031, 1e-24
        %v4049 = vmax.f32 %v4033, 1e-24
        %v4050 = vrsqrt.pop %v4034
        %v4051 = vmul.f32 %v4050, %v4034
        %v4052 = vmul.f32 %v4051, %v4050
        %v4053 = vmul.f32 0.5, %v4052
        %v4054 = vsub.f32 1.5, %v4053
        %v4055 = vmul.f32 %v4050, %v4054
        %vm4056 = vweird.f32 %v4034
        %vm4057 = vweird.f32 %v4050
        %vm4058 = vmor %vm4056, %vm4057
        %v4059 = vsel %vm4058, %v4050, %v4055
        %v4060 = vrsqrt.pop %v4035
        %v4061 = vmul.f32 %v4060, %v4035
        %v4062 = vmul.f32 %v4061, %v4060
        %v4063 = vmul.f32 0.5, %v4062
        %v4064 = vsub.f32 1.5, %v4063
        %v4065 = vmul.f32 %v4060, %v4064
        %vm4066 = vweird.f32 %v4035
        %vm4067 = vweird.f32 %v4060
        %vm4068 = vmor %vm4066, %vm4067
        %v4069 = vsel %vm4068, %v4060, %v4065
        %v4070 = vrsqrt.pop %v4036
        %v4071 = vmul.f32 %v4070, %v4036
        %v4072 = vmul.f32 %v4071, %v4070
        %v4073 = vmul.f32 0.5, %v4072
        %v4074 = vsub.f32 1.5, %v4073
        %v4075 = vmul.f32 %v4070, %v4074
        %vm4076 = vweird.f32 %v4036
        %vm4077 = vweird.f32 %v4070
        %vm4078 = vmor %vm4076, %vm4077
        %v4079 = vsel %vm4078, %v4070, %v4075
        %v4080 = vrsqrt.pop %v4037
        %v4081 = vmul.f32 %v4080, %v4037
        %v4082 = vmul.f32 %v4081, %v4080
        %v4083 = vmul.f32 0.5, %v4082
        %v4084 = vsub.f32 1.5, %v4083
        %v4085 = vmul.f32 %v4080, %v4084
        %vm4086 = vweird.f32 %v4037
        %vm4087 = vweird.f32 %v4080
        %vm4088 = vmor %vm4086, %vm4087
        %v4089 = vsel %vm4088, %v4080, %v4085
        %v4090 = vrsqrt.pop %v4038
        %v4091 = vmul.f32 %v4090, %v4038
        %v4092 = vmul.f32 %v4091, %v4090
        %v4093 = vmul.f32 0.5, %v4092
        %v4094 = vsub.f32 1.5, %v4093
        %v4095 = vmul.f32 %v4090, %v4094
        %vm4096 = vweird.f32 %v4038
        %vm4097 = vweird.f32 %v4090
        %vm4098 = vmor %vm4096, %vm4097
        %v4099 = vsel %vm4098, %v4090, %v4095
        %v4100 = vrsqrt.pop %v4039
        %v4101 = vmul.f32 %v4100, %v4039
        %v4102 = vmul.f32 %v4101, %v4100
        %v4103 = vmul.f32 0.5, %v4102
        %v4104 = vsub.f32 1.5, %v4103
        %v4105 = vmul.f32 %v4100, %v4104
        %vm4106 = vweird.f32 %v4039
        %vm4107 = vweird.f32 %v4100
        %vm4108 = vmor %vm4106, %vm4107
        %v4109 = vsel %vm4108, %v4100, %v4105
        %v4110 = vrsqrt.pop %v4040
        %v4111 = vmul.f32 %v4110, %v4040
        %v4112 = vmul.f32 %v4111, %v4110
        %v4113 = vmul.f32 0.5, %v4112
        %v4114 = vsub.f32 1.5, %v4113
        %v4115 = vmul.f32 %v4110, %v4114
        %vm4116 = vweird.f32 %v4040
        %vm4117 = vweird.f32 %v4110
        %vm4118 = vmor %vm4116, %vm4117
        %v4119 = vsel %vm4118, %v4110, %v4115
        %v4120 = vrsqrt.pop %v4041
        %v4121 = vmul.f32 %v4120, %v4041
        %v4122 = vmul.f32 %v4121, %v4120
        %v4123 = vmul.f32 0.5, %v4122
        %v4124 = vsub.f32 1.5, %v4123
        %v4125 = vmul.f32 %v4120, %v4124
        %vm4126 = vweird.f32 %v4041
        %vm4127 = vweird.f32 %v4120
        %vm4128 = vmor %vm4126, %vm4127
        %v4129 = vsel %vm4128, %v4120, %v4125
        %v4130 = vrsqrt.pop %v4042
        %v4131 = vmul.f32 %v4130, %v4042
        %v4132 = vmul.f32 %v4131, %v4130
        %v4133 = vmul.f32 0.5, %v4132
        %v4134 = vsub.f32 1.5, %v4133
        %v4135 = vmul.f32 %v4130, %v4134
        %vm4136 = vweird.f32 %v4042
        %vm4137 = vweird.f32 %v4130
        %vm4138 = vmor %vm4136, %vm4137
        %v4139 = vsel %vm4138, %v4130, %v4135
        %v4140 = vrsqrt.pop %v4043
        %v4141 = vmul.f32 %v4140, %v4043
        %v4142 = vmul.f32 %v4141, %v4140
        %v4143 = vmul.f32 0.5, %v4142
        %v4144 = vsub.f32 1.5, %v4143
        %v4145 = vmul.f32 %v4140, %v4144
        %vm4146 = vweird.f32 %v4043
        %vm4147 = vweird.f32 %v4140
        %vm4148 = vmor %vm4146, %vm4147
        %v4149 = vsel %vm4148, %v4140, %v4145
        %v4150 = vrsqrt.pop %v4044
        %v4151 = vmul.f32 %v4150, %v4044
        %v4152 = vmul.f32 %v4151, %v4150
        %v4153 = vmul.f32 0.5, %v4152
        %v4154 = vsub.f32 1.5, %v4153
        %v4155 = vmul.f32 %v4150, %v4154
        %vm4156 = vweird.f32 %v4044
        %vm4157 = vweird.f32 %v4150
        %vm4158 = vmor %vm4156, %vm4157
        %v4159 = vsel %vm4158, %v4150, %v4155
        %v4160 = vrsqrt.pop %v4045
        %v4161 = vmul.f32 %v4160, %v4045
        %v4162 = vmul.f32 %v4161, %v4160
        %v4163 = vmul.f32 0.5, %v4162
        %v4164 = vsub.f32 1.5, %v4163
        %v4165 = vmul.f32 %v4160, %v4164
        %vm4166 = vweird.f32 %v4045
        %vm4167 = vweird.f32 %v4160
        %vm4168 = vmor %vm4166, %vm4167
        %v4169 = vsel %vm4168, %v4160, %v4165
        %v4170 = vrsqrt.pop %v4046
        %v4171 = vmul.f32 %v4170, %v4046
        %v4172 = vmul.f32 %v4171, %v4170
        %v4173 = vmul.f32 0.5, %v4172
        %v4174 = vsub.f32 1.5, %v4173
        %v4175 = vmul.f32 %v4170, %v4174
        %vm4176 = vweird.f32 %v4046
        %vm4177 = vweird.f32 %v4170
        %vm4178 = vmor %vm4176, %vm4177
        %v4179 = vsel %vm4178, %v4170, %v4175
        %v4180 = vrsqrt.pop %v4047
        %v4181 = vmul.f32 %v4180, %v4047
        %v4182 = vmul.f32 %v4181, %v4180
        %v4183 = vmul.f32 0.5, %v4182
        %v4184 = vsub.f32 1.5, %v4183
        %v4185 = vmul.f32 %v4180, %v4184
        %vm4186 = vweird.f32 %v4047
        %vm4187 = vweird.f32 %v4180
        %vm4188 = vmor %vm4186, %vm4187
        %v4189 = vsel %vm4188, %v4180, %v4185
        %v4190 = vrsqrt.pop %v4048
        %v4191 = vmul.f32 %v4190, %v4048
        %v4192 = vmul.f32 %v4191, %v4190
        %v4193 = vmul.f32 0.5, %v4192
        %v4194 = vsub.f32 1.5, %v4193
        %v4195 = vmul.f32 %v4190, %v4194
        %vm4196 = vweird.f32 %v4048
        %vm4197 = vweird.f32 %v4190
        %vm4198 = vmor %vm4196, %vm4197
        %v4199 = vsel %vm4198, %v4190, %v4195
        %v4200 = vrsqrt.pop %v4049
        %v4201 = vmul.f32 %v4200, %v4049
        %v4202 = vmul.f32 %v4201, %v4200
        %v4203 = vmul.f32 0.5, %v4202
        %v4204 = vsub.f32 1.5, %v4203
        %v4205 = vmul.f32 %v4200, %v4204
        %vm4206 = vweird.f32 %v4049
        %vm4207 = vweird.f32 %v4200
        %vm4208 = vmor %vm4206, %vm4207
        %v4209 = vsel %vm4208, %v4200, %v4205
        %v4210 = vmul.f32 %v3947, %v4059
        %v4211 = vmul.f32 %v3949, %v4069
        %v4212 = vmul.f32 %v3952, %v4079
        %v4213 = vmul.f32 %v3954, %v4089
        %v4214 = vmul.f32 %v3957, %v4099
        %v4215 = vmul.f32 %v3959, %v4109
        %v4216 = vmul.f32 %v3962, %v4119
        %v4217 = vmul.f32 %v3964, %v4129
        %v4218 = vmul.f32 %v3967, %v4139
        %v4219 = vmul.f32 %v3969, %v4149
        %v4220 = vmul.f32 %v3972, %v4159
        %v4221 = vmul.f32 %v3974, %v4169
        %v4222 = vmul.f32 %v3977, %v4179
        %v4223 = vmul.f32 %v3979, %v4189
        %v4224 = vmul.f32 %v3982, %v4199
        %v4225 = vmul.f32 %v3984, %v4209
        %v4226 = vpack.c.bf16 %v4210, %v4210
        %v4227 = vpack.c.bf16 %v4211, %v4211
        %v4228 = vpack.c.bf16 %v4212, %v4212
        %v4229 = vpack.c.bf16 %v4213, %v4213
        %v4230 = vpack.c.bf16 %v4214, %v4214
        %v4231 = vpack.c.bf16 %v4215, %v4215
        %v4232 = vpack.c.bf16 %v4216, %v4216
        %v4233 = vpack.c.bf16 %v4217, %v4217
        %v4234 = vpack.c.bf16 %v4218, %v4218
        %v4235 = vpack.c.bf16 %v4219, %v4219
        %v4236 = vpack.c.bf16 %v4220, %v4220
        %v4237 = vpack.c.bf16 %v4221, %v4221
        %v4238 = vpack.c.bf16 %v4222, %v4222
        %v4239 = vpack.c.bf16 %v4223, %v4223
        %v4240 = vpack.c.bf16 %v4224, %v4224
        %v4241 = vpack.c.bf16 %v4225, %v4225
        %4242 = vst [vmem:[%s304] sm:$0xf] %v4226
        %4243 = vst [vmem:[%s304 + $0x4] sm:$0xf] %v4227
        %4244 = vst [vmem:[%s304 + $0x8] sm:$0xf] %v4228
        %4245 = vst [vmem:[%s304 + $0xc] sm:$0xf] %v4229
        %4246 = vst [vmem:[%s304 + $0x10] sm:$0xf] %v4230
        %4247 = vst [vmem:[%s304 + $0x14] sm:$0xf] %v4231
        %4248 = vst [vmem:[%s304 + $0x18] sm:$0xf] %v4232
        %4249 = vst [vmem:[%s304 + $0x1c] sm:$0xf] %v4233
        %4250 = vst [vmem:[%s304 + $0x20] sm:$0xf] %v4234
        %4251 = vst [vmem:[%s304 + $0x24] sm:$0xf] %v4235
        %4252 = vst [vmem:[%s304 + $0x28] sm:$0xf] %v4236
        %4253 = vst [vmem:[%s304 + $0x2c] sm:$0xf] %v4237
        %4254 = vst [vmem:[%s304 + $0x30] sm:$0xf] %v4238
        %4255 = vst [vmem:[%s304 + $0x34] sm:$0xf] %v4239
        %4256 = vst [vmem:[%s304 + $0x38] sm:$0xf] %v4240
        %4257 = vst [vmem:[%s304 + $0x3c] sm:$0xf] %v4241
        %s4258 = sand.u32 %s183, 1
        %s4259 = scalar_lea.sflag [#allocation4], %s4258
        %s4260 = sand.u32 %s183, 1
        %s4261 = smul.addr %s4260, 64
        %s4262 = scalar_lea.vmem [#allocation7], %s4261
        // Predicated region
        $region57: #{tpu_custom_call.1} parent=47 // pred_check
          %p4263 = pneg %p193
        $region58: #{tpu_custom_call.1} parent=47 // pred_check_branch
          %4265 = sbr.rel (%p4263) target = $region60
        $region59: #{tpu_custom_call.1} parent=47 // pred_region
          %s4266 = smul.u32 16, %s23
          %4268 = vsyncadd %s4259, 0
          %s4269 = smul.addr %s4266, 4
          %s4270 = scalar_lea.hbm %s7, %s4269
          %s4271 = sshll.u32 %s4262, 4
          %s4272 = int_to_ptr.vmem [resolvable:$true] %s4271
          %s4273 = sshll.u32 %s4270, 4
          %s4274 = int_to_ptr.hbm [resolvable:$true] %s4273
          %4279 = dma.vmem_to_hbm [thread:$0]  %s4272, 1024, %s4274, %s4259, 64, 64, 4
        $region60: #{tpu_custom_call.1} parent=47 // pred_fallthru
          _
      $region48: #{tpu_custom_call.1} parent=5 // pred_fallthru
        _
      %p4280 = scmp.le.s32.totalorder 2, %s18
      // Predicated region
      $region61: #{tpu_custom_call.1} parent=5 // pred_check
        %p4281 = pneg %p4280
      $region62: #{tpu_custom_call.1} parent=5 // pred_check_branch
        %4283 = sbr.rel (%p4281) target = $region64
      $region63: #{tpu_custom_call.1} parent=5 // pred_region
        %s4284 = ssub.s32 %s18, 2
        // Predicated region
        $region65: #{tpu_custom_call.1} parent=63 // pred_check
          %p4285 = pneg %p199
        $region66: #{tpu_custom_call.1} parent=63 // pred_check_branch
          %4287 = sbr.rel (%p4285) target = $region68
        $region67: #{tpu_custom_call.1} parent=63 // pred_region
          %s4288 = sand.u32 %s184, 1
          %s4289 = scalar_lea.sflag [#allocation4], %s4288
          %s4290 = sand.u32 %s184, 1
          %s4291 = smul.addr %s4290, 64
          %s4292 = scalar_lea.vmem [#allocation7], %s4291
          %4294 = dma.done %s4289, 1024
        $region68: #{tpu_custom_call.1} parent=63 // pred_fallthru
          _
      $region64: #{tpu_custom_call.1} parent=5 // pred_fallthru
        _
    $region6: #{tpu_custom_call.1} parent=1 // loop_footer
      %s22 = sadd.s32 1, %s18
    $region7: #{tpu_custom_call.1} parent=1 // loop_footer_branch
      %17 = sbr.rel target = $region3
    $region8: #{tpu_custom_call.1} parent=1 // loop_exit
      _
    %4295 = vsyncpa [#allocation3], 1
    %s4296 = scalar_lea.sflag [#allocation3], 1
    %4297 = vsyncpa %s4296, 1
    %4298 = vsyncpa [#allocation6], 1
    %4299 = vsyncpa [#allocation4], 1
    %s4300 = scalar_lea.sflag [#allocation4], 1
    %4301 = vsyncpa %s4300, 1

</llo_original>
